<compile_context>
chip_gen: v7x
topology: tpu7x:2x2x1
jax: 0.10.0
libtpu: 0.0.40
codegen_flags: <defaults>
</compile_context>

<pallas_src>
import functools

import jax
import jax.numpy as jnp
from jax import lax
from jax.experimental import pallas as pl
from jax.experimental.pallas import tpu as pltpu

LANES = 128   # lane-dense padded width for all channel / action dims
HID = 512     # fc1 width (only used for parameter shapes)

# Conv hyper-parameters fixed by the PyTorch module.
_K1, _S1 = 8, 4
_K2, _S2 = 4, 2
_K3, _S3 = 3, 1
_C1, _C2, _C3 = 32, 64, 64


def _conv_out(n, k, s):
    return (n - k) // s + 1


def _round_up(n, m):
    return (n + m - 1) // m * m


# ----------------------------------------------------------------------------
# Fused kernel: conv1 + conv2 + conv3 + folded(fc1,fc2); all intermediates in
# VMEM / vregs.  Row ordering of a1 (built by the wrapper): (tap2, tap3, pos3,
# batch_padded), so every per-tap input is a contiguous, 8-aligned row group
# of the previous layer's output.
# ----------------------------------------------------------------------------
def _dqn_fused_kernel(a1_ref, w1_ref, b1_ref, w2_ref, b2_ref, w3_ref, b3_ref,
                      fw_ref, fb_ref, o_ref, *, BP, P3, T3, T2):
    f32, bf16 = jnp.float32, jnp.bfloat16
    rows3 = P3 * BP          # conv3 output rows (per conv3 tap group)
    rows2 = T3 * rows3       # conv2 output rows (per conv2 tap group)

    # conv1 + bias + ReLU: one bf16 MXU matmul over all (duplicated) patch rows.
    h1 = jnp.dot(a1_ref[...], w1_ref[...], preferred_element_type=f32)
    h1 = jnp.maximum(h1 + b1_ref[...], 0.0)                   # (T2*rows2, 128) f32

    # conv2: tap-sum of matmuls over 8-aligned contiguous row groups of h1.
    y2 = jnp.dot(h1[0:rows2].astype(bf16), w2_ref[0], preferred_element_type=f32)
    for t in range(1, T2):
        y2 = y2 + jnp.dot(h1[t * rows2:(t + 1) * rows2].astype(bf16), w2_ref[t],
                          preferred_element_type=f32)
    y2 = jnp.maximum(y2 + b2_ref[...], 0.0)                   # (rows2, 128) f32

    # conv3: tap-sum.
    y3 = jnp.dot(y2[0:rows3].astype(bf16), w3_ref[0], preferred_element_type=f32)
    for t in range(1, T3):
        y3 = y3 + jnp.dot(y2[t * rows3:(t + 1) * rows3].astype(bf16), w3_ref[t],
                          preferred_element_type=f32)
    y3 = jnp.maximum(y3 + b3_ref[...], 0.0)                   # (rows3, 128) f32

    # Folded fc1+fc2: one dot per conv3 spatial position (fold is exact since
    # the module applies no nonlinearity between fc1 and fc2).
    out = jnp.dot(y3[0:BP].astype(bf16), fw_ref[0], preferred_element_type=f32)
    for p in range(1, P3):
        out = out + jnp.dot(y3[p * BP:(p + 1) * BP].astype(bf16), fw_ref[p],
                            preferred_element_type=f32)
    o_ref[...] = (out + fb_ref[...]).astype(o_ref.dtype)


def _full_spec(x):
    zeros = (0,) * x.ndim
    return pl.BlockSpec(x.shape, lambda zeros=zeros: zeros)


def _dqn_fused_call(a1, packed, *, BP, P3, T3, T2):
    args = (a1, packed["w1p"], packed["b1p"], packed["w2p"], packed["b2p"],
            packed["w3p"], packed["b3p"], packed["fwp"], packed["fbp"])
    kernel = functools.partial(_dqn_fused_kernel, BP=BP, P3=P3, T3=T3, T2=T2)
    return pl.pallas_call(
        kernel,
        out_shape=jax.ShapeDtypeStruct((BP, LANES), jnp.float32),
        # Tiny problem: single kernel invocation, whole (mostly bf16) operand
        # set resident in VMEM (~1.5 MiB incl. the im2col matrix).
        in_specs=[_full_spec(a) for a in args],
        out_specs=pl.BlockSpec((BP, LANES), lambda: (0, 0)),
        compiler_params=pltpu.CompilerParams(vmem_limit_bytes=32 * 1024 * 1024),
    )(*args)


# ----------------------------------------------------------------------------
# One-time weight packing (done once, OUTSIDE the per-step forward).
# ----------------------------------------------------------------------------
def pack_params(params, in_channels, input_size):
    H, W = input_size
    OH1, OW1 = _conv_out(H, _K1, _S1), _conv_out(W, _K1, _S1)
    OH2, OW2 = _conv_out(OH1, _K2, _S2), _conv_out(OW1, _K2, _S2)
    OH3, OW3 = _conv_out(OH2, _K3, _S3), _conv_out(OW2, _K3, _S3)
    P3 = OH3 * OW3
    f32, bf16 = jnp.float32, jnp.bfloat16
    num_actions = params["fw2"].shape[0]

    # Padding invariant: every padded output lane gets zero weight AND zero
    # bias, and ReLU(0) == 0, so padded lanes / padded batch rows can never
    # contaminate real outputs downstream.
    assert _C1 <= LANES and _C2 <= LANES and _C3 <= LANES
    assert num_actions <= LANES

    def pad_last(a, n):
        return jnp.pad(a, [(0, 0)] * (a.ndim - 1) + [(0, n - a.shape[-1])])

    # conv1: (OC, IC, kh, kw) -> ((kh, kw, IC), OC_pad), bf16 MXU operand.
    w1 = params["w1"].astype(f32).transpose(2, 3, 1, 0)
    w1p = pad_last(w1.reshape(_K1 * _K1 * in_channels, _C1), LANES).astype(bf16)
    b1p = pad_last(params["b1"].astype(f32), LANES).reshape(1, LANES)

    # conv2: per-tap (IC_pad, OC_pad); zero rows for padded input channels.
    w2 = params["w2"].astype(f32).transpose(2, 3, 1, 0).reshape(_K2 * _K2, _C1, _C2)
    w2p = jnp.pad(w2, ((0, 0), (0, LANES - _C1), (0, LANES - _C2))).astype(bf16)
    b2p = pad_last(params["b2"].astype(f32), LANES).reshape(1, LANES)

    # conv3: per-tap (IC_pad, OC_pad).
    w3 = params["w3"].astype(f32).transpose(2, 3, 1, 0).reshape(_K3 * _K3, _C2, _C3)
    w3p = jnp.pad(w3, ((0, 0), (0, LANES - _C2), (0, LANES - _C3))).astype(bf16)
    b3p = pad_last(params["b3"].astype(f32), LANES).reshape(1, LANES)

    # fc1+fc2 folded offline (exact: no nonlinearity between them in forward):
    #   out = flat @ (fw1.T @ fw2.T) + (fb1 @ fw2.T + fb2)
    # split per conv3 spatial position (NCHW flatten: idx = c*P3 + p).
    fw1 = params["fw1"].astype(f32)                               # (512, C3*P3)
    fw2 = params["fw2"].astype(f32)                               # (A, 512)
    wf = fw1.T @ fw2.T                                            # (C3*P3, A)
    bf = params["fb1"].astype(f32) @ fw2.T + params["fb2"].astype(f32)   # (A,)
    wf = wf.reshape(_C3, P3, num_actions).transpose(1, 0, 2)      # (P3, C3, A)
    fwp = jnp.pad(wf, ((0, 0), (0, LANES - _C3),
                       (0, LANES - num_actions))).astype(bf16)
    fbp = pad_last(bf, LANES).reshape(1, LANES)

    return dict(w1p=w1p, b1p=b1p, w2p=w2p, b2p=b2p, w3p=w3p, b3p=b3p,
                fwp=fwp, fbp=fbp)


# ----------------------------------------------------------------------------
# Forward: static-slice im2col prologue (fuses to copies in XLA), then the
# single fused Pallas kernel.
# ----------------------------------------------------------------------------
def dqn_forward(x, packed, num_actions):
    B, Cin, H, W = x.shape
    OH1, OW1 = _conv_out(H, _K1, _S1), _conv_out(W, _K1, _S1)
    OH2, OW2 = _conv_out(OH1, _K2, _S2), _conv_out(OW1, _K2, _S2)
    OH3, OW3 = _conv_out(OH2, _K3, _S3), _conv_out(OW2, _K3, _S3)
    P3, T3, T2 = OH3 * OW3, _K3 * _K3, _K2 * _K2
    BP = _round_up(B, 8)              # 8-sublane-aligned batch rows
    Kp = _K1 * _K1 * Cin

    # One layout change + zero batch padding: (B,C,H,W) -> (H,W,BP,C).  With
    # batch innermost, the (pos3, batch) row order falls out of static slices
    # directly -- no runtime gather, no post-hoc transpose.
    xp = x.transpose(2, 3, 0, 1).astype(jnp.float32)
    xp = jnp.pad(xp, ((0, 0), (0, 0), (0, BP - B), (0, 0)))

    # conv1 im2col with K ordering (kh1, kw1, c), matching w1p.
    cols = []
    for kh in range(_K1):
        for kw in range(_K1):
            cols.append(xp[kh:kh + OH1 * _S1:_S1, kw:kw + OW1 * _S1:_S1])
    patches = jnp.concatenate(cols, axis=-1)          # (OH1, OW1, BP, Kp)

    # conv1 patch rows in (tap2, tap3, pos3, batch) order, built entirely from
    # compile-time-constant strided slices.
    step = _S2 * _S3
    taps = []
    for kh2 in range(_K2):
        for kw2 in range(_K2):
            for kh3 in range(_K3):
                for kw3 in range(_K3):
                    bh = kh3 * _S2 + kh2
                    bw = kw3 * _S2 + kw2
                    sl = patches[bh:bh + OH3 * step:step,
                                 bw:bw + OW3 * step:step]   # (OH3, OW3, BP, Kp)
                    taps.append(sl.reshape(P3 * BP, Kp))
    a1 = jnp.concatenate(taps, axis=0).astype(jnp.bfloat16)  # (T2*T3*P3*BP, Kp)

    out = _dqn_fused_call(a1, packed, BP=BP, P3=P3, T3=T3, T2=T2)
    return out[:B, :num_actions]


# ----------------------------------------------------------------------------
# Reference (pure f32 JAX, no Pallas) for a correctness check.
# ----------------------------------------------------------------------------
def dqn_reference(x, params):
    def conv(x, w, b, s):
        y = lax.conv_general_dilated(
            x, w, window_strides=(s, s), padding="VALID",
            dimension_numbers=("NCHW", "OIHW", "NCHW"))
        return y + b.reshape(1, -1, 1, 1)

    x = jnp.maximum(conv(x, params["w1"], params["b1"], 4), 0.0)
    x = jnp.maximum(conv(x, params["w2"], params["b2"], 2), 0.0)
    x = jnp.maximum(conv(x, params["w3"], params["b3"], 1), 0.0)
    x = x.reshape(x.shape[0], -1)
    x = x @ params["fw1"].T + params["fb1"]      # no ReLU between fc1 and fc2
    return x @ params["fw2"].T + params["fb2"]


# ----------------------------------------------------------------------------
# Deterministic parameter init (synthetic — shapes follow the module __init__).
# ----------------------------------------------------------------------------
def init_params(key, in_channels, input_size, num_actions):
    H, W = input_size
    oh1, ow1 = _conv_out(H, _K1, _S1), _conv_out(W, _K1, _S1)
    oh2, ow2 = _conv_out(oh1, _K2, _S2), _conv_out(ow1, _K2, _S2)
    oh3, ow3 = _conv_out(oh2, _K3, _S3), _conv_out(ow2, _K3, _S3)
    flat = _C3 * oh3 * ow3

    ks = jax.random.split(key, 10)
    sc = 0.05
    return {
        "w1": jax.random.normal(ks[0], (_C1, in_channels, _K1, _K1), jnp.float32) * sc,
        "b1": jax.random.normal(ks[1], (_C1,), jnp.float32) * sc,
        "w2": jax.random.normal(ks[2], (_C2, _C1, _K2, _K2), jnp.float32) * sc,
        "b2": jax.random.normal(ks[3], (_C2,), jnp.float32) * sc,
        "w3": jax.random.normal(ks[4], (_C3, _C2, _K3, _K3), jnp.float32) * sc,
        "b3": jax.random.normal(ks[5], (_C3,), jnp.float32) * sc,
        "fw1": jax.random.normal(ks[6], (HID, flat), jnp.float32) * sc,
        "fb1": jax.random.normal(ks[7], (HID,), jnp.float32) * sc,
        "fw2": jax.random.normal(ks[8], (num_actions, HID), jnp.float32) * sc,
        "fb2": jax.random.normal(ks[9], (num_actions,), jnp.float32) * sc,
    }


if __name__ == "__main__":
    key = jax.random.PRNGKey(0)
    kx, kp = jax.random.split(key)

    batch = 2
    in_channels = 4
    input_size = (36, 36)   # -> conv1: 8x8, conv2: 3x3, conv3: 1x1
    num_actions = 6

    x = jax.random.normal(kx, (batch, in_channels, *input_size), jnp.float32)
    params = init_params(kp, in_channels, input_size, num_actions)

    # Pack / pad / fold / cast weights once, outside the per-step forward.
    packed = pack_params(params, in_channels, input_size)
    packed = jax.tree_util.tree_map(jax.block_until_ready, packed)

    fwd = jax.jit(functools.partial(dqn_forward, num_actions=num_actions))
    out = jax.block_until_ready(fwd(x, packed))
    assert out.shape == (batch, num_actions), out.shape

    ref = jax.block_until_ready(dqn_reference(x, params))
    max_err = float(jnp.max(jnp.abs(out - ref)))
    # bf16 MXU operands (f32 accumulation) -> a few 1e-3 of absolute error.
    assert jnp.allclose(out, ref, atol=5e-2, rtol=5e-2), max_err

    print("KERNEL_OK")
</pallas_src>

<mosaic_0001>
module attributes {stable_mosaic.version = 11 : i64} {
  func.func @_dqn_fused_kernel(%arg0: memref<1152x256xbf16, #tpu.memory_space<vmem>>, %arg1: memref<256x128xbf16, #tpu.memory_space<vmem>>, %arg2: memref<1x128xf32, #tpu.memory_space<vmem>>, %arg3: memref<16x128x128xbf16, #tpu.memory_space<vmem>>, %arg4: memref<1x128xf32, #tpu.memory_space<vmem>>, %arg5: memref<9x128x128xbf16, #tpu.memory_space<vmem>>, %arg6: memref<1x128xf32, #tpu.memory_space<vmem>>, %arg7: memref<1x128x128xbf16, #tpu.memory_space<vmem>>, %arg8: memref<1x128xf32, #tpu.memory_space<vmem>>, %arg9: memref<8x128xf32, #tpu.memory_space<vmem>>) attributes {dimension_semantics = [], scalar_prefetch = 0 : i64, scratch_operands = 0 : i64, tpu.core_type = #tpu.core_type<tc>} {
    %c0 = arith.constant 0 : index
    %c0_0 = arith.constant 0 : index
    %0 = vector.load %arg0[%c0, %c0_0] : memref<1152x256xbf16, #tpu.memory_space<vmem>>, vector<1152x256xbf16>
    %c0_1 = arith.constant 0 : index
    %c0_2 = arith.constant 0 : index
    %1 = vector.load %arg1[%c0_1, %c0_2] : memref<256x128xbf16, #tpu.memory_space<vmem>>, vector<256x128xbf16>
    %cst = arith.constant dense<0.000000e+00> : vector<1152x128xf32>
    %2 = tpu.matmul %0, %1, %cst {dimension_numbers = #tpu.dot_dimension_numbers<[1], [0], [0], [1], [0, 0, 1, 1], [], []>} : vector<1152x256xbf16>, vector<256x128xbf16>, vector<1152x128xf32> -> vector<1152x128xf32>
    %c0_3 = arith.constant 0 : index
    %c0_4 = arith.constant 0 : index
    %3 = vector.load %arg2[%c0_3, %c0_4] : memref<1x128xf32, #tpu.memory_space<vmem>>, vector<1x128xf32>
    %4 = vector.broadcast %3 : vector<1x128xf32> to vector<1152x128xf32>
    %5 = arith.addf %2, %4 : vector<1152x128xf32>
    %cst_5 = arith.constant 0.000000e+00 : f32
    %6 = vector.broadcast %cst_5 : f32 to vector<1152x128xf32>
    %7 = arith.maximumf %5, %6 : vector<1152x128xf32>
    %8 = vector.extract_strided_slice %7 {offsets = [0, 0], sizes = [72, 128], strides = [1, 1]} : vector<1152x128xf32> to vector<72x128xf32>
    %9 = arith.truncf %8 : vector<72x128xf32> to vector<72x128xbf16>
    %c0_6 = arith.constant 0 : index
    %c0_7 = arith.constant 0 : index
    %c0_8 = arith.constant 0 : index
    %10 = vector.load %arg3[%c0_6, %c0_7, %c0_8] : memref<16x128x128xbf16, #tpu.memory_space<vmem>>, vector<1x128x128xbf16>
    %11 = vector.shape_cast %10 : vector<1x128x128xbf16> to vector<128x128xbf16>
    %cst_9 = arith.constant dense<0.000000e+00> : vector<72x128xf32>
    %12 = tpu.matmul %9, %11, %cst_9 {dimension_numbers = #tpu.dot_dimension_numbers<[1], [0], [0], [1], [0, 0, 1, 1], [], []>} : vector<72x128xbf16>, vector<128x128xbf16>, vector<72x128xf32> -> vector<72x128xf32>
    %13 = vector.extract_strided_slice %7 {offsets = [72, 0], sizes = [72, 128], strides = [1, 1]} : vector<1152x128xf32> to vector<72x128xf32>
    %14 = arith.truncf %13 : vector<72x128xf32> to vector<72x128xbf16>
    %c1 = arith.constant 1 : index
    %c0_10 = arith.constant 0 : index
    %c0_11 = arith.constant 0 : index
    %15 = vector.load %arg3[%c1, %c0_10, %c0_11] : memref<16x128x128xbf16, #tpu.memory_space<vmem>>, vector<1x128x128xbf16>
    %16 = vector.shape_cast %15 : vector<1x128x128xbf16> to vector<128x128xbf16>
    %cst_12 = arith.constant dense<0.000000e+00> : vector<72x128xf32>
    %17 = tpu.matmul %14, %16, %cst_12 {dimension_numbers = #tpu.dot_dimension_numbers<[1], [0], [0], [1], [0, 0, 1, 1], [], []>} : vector<72x128xbf16>, vector<128x128xbf16>, vector<72x128xf32> -> vector<72x128xf32>
    %18 = arith.addf %12, %17 : vector<72x128xf32>
    %19 = vector.extract_strided_slice %7 {offsets = [144, 0], sizes = [72, 128], strides = [1, 1]} : vector<1152x128xf32> to vector<72x128xf32>
    %20 = arith.truncf %19 : vector<72x128xf32> to vector<72x128xbf16>
    %c2 = arith.constant 2 : index
    %c0_13 = arith.constant 0 : index
    %c0_14 = arith.constant 0 : index
    %21 = vector.load %arg3[%c2, %c0_13, %c0_14] : memref<16x128x128xbf16, #tpu.memory_space<vmem>>, vector<1x128x128xbf16>
    %22 = vector.shape_cast %21 : vector<1x128x128xbf16> to vector<128x128xbf16>
    %cst_15 = arith.constant dense<0.000000e+00> : vector<72x128xf32>
    %23 = tpu.matmul %20, %22, %cst_15 {dimension_numbers = #tpu.dot_dimension_numbers<[1], [0], [0], [1], [0, 0, 1, 1], [], []>} : vector<72x128xbf16>, vector<128x128xbf16>, vector<72x128xf32> -> vector<72x128xf32>
    %24 = arith.addf %18, %23 : vector<72x128xf32>
    %25 = vector.extract_strided_slice %7 {offsets = [216, 0], sizes = [72, 128], strides = [1, 1]} : vector<1152x128xf32> to vector<72x128xf32>
    %26 = arith.truncf %25 : vector<72x128xf32> to vector<72x128xbf16>
    %c3 = arith.constant 3 : index
    %c0_16 = arith.constant 0 : index
    %c0_17 = arith.constant 0 : index
    %27 = vector.load %arg3[%c3, %c0_16, %c0_17] : memref<16x128x128xbf16, #tpu.memory_space<vmem>>, vector<1x128x128xbf16>
    %28 = vector.shape_cast %27 : vector<1x128x128xbf16> to vector<128x128xbf16>
    %cst_18 = arith.constant dense<0.000000e+00> : vector<72x128xf32>
    %29 = tpu.matmul %26, %28, %cst_18 {dimension_numbers = #tpu.dot_dimension_numbers<[1], [0], [0], [1], [0, 0, 1, 1], [], []>} : vector<72x128xbf16>, vector<128x128xbf16>, vector<72x128xf32> -> vector<72x128xf32>
    %30 = arith.addf %24, %29 : vector<72x128xf32>
    %31 = vector.extract_strided_slice %7 {offsets = [288, 0], sizes = [72, 128], strides = [1, 1]} : vector<1152x128xf32> to vector<72x128xf32>
    %32 = arith.truncf %31 : vector<72x128xf32> to vector<72x128xbf16>
    %c4 = arith.constant 4 : index
    %c0_19 = arith.constant 0 : index
    %c0_20 = arith.constant 0 : index
    %33 = vector.load %arg3[%c4, %c0_19, %c0_20] : memref<16x128x128xbf16, #tpu.memory_space<vmem>>, vector<1x128x128xbf16>
    %34 = vector.shape_cast %33 : vector<1x128x128xbf16> to vector<128x128xbf16>
    %cst_21 = arith.constant dense<0.000000e+00> : vector<72x128xf32>
    %35 = tpu.matmul %32, %34, %cst_21 {dimension_numbers = #tpu.dot_dimension_numbers<[1], [0], [0], [1], [0, 0, 1, 1], [], []>} : vector<72x128xbf16>, vector<128x128xbf16>, vector<72x128xf32> -> vector<72x128xf32>
    %36 = arith.addf %30, %35 : vector<72x128xf32>
    %37 = vector.extract_strided_slice %7 {offsets = [360, 0], sizes = [72, 128], strides = [1, 1]} : vector<1152x128xf32> to vector<72x128xf32>
    %38 = arith.truncf %37 : vector<72x128xf32> to vector<72x128xbf16>
    %c5 = arith.constant 5 : index
    %c0_22 = arith.constant 0 : index
    %c0_23 = arith.constant 0 : index
    %39 = vector.load %arg3[%c5, %c0_22, %c0_23] : memref<16x128x128xbf16, #tpu.memory_space<vmem>>, vector<1x128x128xbf16>
    %40 = vector.shape_cast %39 : vector<1x128x128xbf16> to vector<128x128xbf16>
    %cst_24 = arith.constant dense<0.000000e+00> : vector<72x128xf32>
    %41 = tpu.matmul %38, %40, %cst_24 {dimension_numbers = #tpu.dot_dimension_numbers<[1], [0], [0], [1], [0, 0, 1, 1], [], []>} : vector<72x128xbf16>, vector<128x128xbf16>, vector<72x128xf32> -> vector<72x128xf32>
    %42 = arith.addf %36, %41 : vector<72x128xf32>
    %43 = vector.extract_strided_slice %7 {offsets = [432, 0], sizes = [72, 128], strides = [1, 1]} : vector<1152x128xf32> to vector<72x128xf32>
    %44 = arith.truncf %43 : vector<72x128xf32> to vector<72x128xbf16>
    %c6 = arith.constant 6 : index
    %c0_25 = arith.constant 0 : index
    %c0_26 = arith.constant 0 : index
    %45 = vector.load %arg3[%c6, %c0_25, %c0_26] : memref<16x128x128xbf16, #tpu.memory_space<vmem>>, vector<1x128x128xbf16>
    %46 = vector.shape_cast %45 : vector<1x128x128xbf16> to vector<128x128xbf16>
    %cst_27 = arith.constant dense<0.000000e+00> : vector<72x128xf32>
    %47 = tpu.matmul %44, %46, %cst_27 {dimension_numbers = #tpu.dot_dimension_numbers<[1], [0], [0], [1], [0, 0, 1, 1], [], []>} : vector<72x128xbf16>, vector<128x128xbf16>, vector<72x128xf32> -> vector<72x128xf32>
    %48 = arith.addf %42, %47 : vector<72x128xf32>
    %49 = vector.extract_strided_slice %7 {offsets = [504, 0], sizes = [72, 128], strides = [1, 1]} : vector<1152x128xf32> to vector<72x128xf32>
    %50 = arith.truncf %49 : vector<72x128xf32> to vector<72x128xbf16>
    %c7 = arith.constant 7 : index
    %c0_28 = arith.constant 0 : index
    %c0_29 = arith.constant 0 : index
    %51 = vector.load %arg3[%c7, %c0_28, %c0_29] : memref<16x128x128xbf16, #tpu.memory_space<vmem>>, vector<1x128x128xbf16>
    %52 = vector.shape_cast %51 : vector<1x128x128xbf16> to vector<128x128xbf16>
    %cst_30 = arith.constant dense<0.000000e+00> : vector<72x128xf32>
    %53 = tpu.matmul %50, %52, %cst_30 {dimension_numbers = #tpu.dot_dimension_numbers<[1], [0], [0], [1], [0, 0, 1, 1], [], []>} : vector<72x128xbf16>, vector<128x128xbf16>, vector<72x128xf32> -> vector<72x128xf32>
    %54 = arith.addf %48, %53 : vector<72x128xf32>
    %55 = vector.extract_strided_slice %7 {offsets = [576, 0], sizes = [72, 128], strides = [1, 1]} : vector<1152x128xf32> to vector<72x128xf32>
    %56 = arith.truncf %55 : vector<72x128xf32> to vector<72x128xbf16>
    %c8 = arith.constant 8 : index
    %c0_31 = arith.constant 0 : index
    %c0_32 = arith.constant 0 : index
    %57 = vector.load %arg3[%c8, %c0_31, %c0_32] : memref<16x128x128xbf16, #tpu.memory_space<vmem>>, vector<1x128x128xbf16>
    %58 = vector.shape_cast %57 : vector<1x128x128xbf16> to vector<128x128xbf16>
    %cst_33 = arith.constant dense<0.000000e+00> : vector<72x128xf32>
    %59 = tpu.matmul %56, %58, %cst_33 {dimension_numbers = #tpu.dot_dimension_numbers<[1], [0], [0], [1], [0, 0, 1, 1], [], []>} : vector<72x128xbf16>, vector<128x128xbf16>, vector<72x128xf32> -> vector<72x128xf32>
    %60 = arith.addf %54, %59 : vector<72x128xf32>
    %61 = vector.extract_strided_slice %7 {offsets = [648, 0], sizes = [72, 128], strides = [1, 1]} : vector<1152x128xf32> to vector<72x128xf32>
    %62 = arith.truncf %61 : vector<72x128xf32> to vector<72x128xbf16>
    %c9 = arith.constant 9 : index
    %c0_34 = arith.constant 0 : index
    %c0_35 = arith.constant 0 : index
    %63 = vector.load %arg3[%c9, %c0_34, %c0_35] : memref<16x128x128xbf16, #tpu.memory_space<vmem>>, vector<1x128x128xbf16>
    %64 = vector.shape_cast %63 : vector<1x128x128xbf16> to vector<128x128xbf16>
    %cst_36 = arith.constant dense<0.000000e+00> : vector<72x128xf32>
    %65 = tpu.matmul %62, %64, %cst_36 {dimension_numbers = #tpu.dot_dimension_numbers<[1], [0], [0], [1], [0, 0, 1, 1], [], []>} : vector<72x128xbf16>, vector<128x128xbf16>, vector<72x128xf32> -> vector<72x128xf32>
    %66 = arith.addf %60, %65 : vector<72x128xf32>
    %67 = vector.extract_strided_slice %7 {offsets = [720, 0], sizes = [72, 128], strides = [1, 1]} : vector<1152x128xf32> to vector<72x128xf32>
    %68 = arith.truncf %67 : vector<72x128xf32> to vector<72x128xbf16>
    %c10 = arith.constant 10 : index
    %c0_37 = arith.constant 0 : index
    %c0_38 = arith.constant 0 : index
    %69 = vector.load %arg3[%c10, %c0_37, %c0_38] : memref<16x128x128xbf16, #tpu.memory_space<vmem>>, vector<1x128x128xbf16>
    %70 = vector.shape_cast %69 : vector<1x128x128xbf16> to vector<128x128xbf16>
    %cst_39 = arith.constant dense<0.000000e+00> : vector<72x128xf32>
    %71 = tpu.matmul %68, %70, %cst_39 {dimension_numbers = #tpu.dot_dimension_numbers<[1], [0], [0], [1], [0, 0, 1, 1], [], []>} : vector<72x128xbf16>, vector<128x128xbf16>, vector<72x128xf32> -> vector<72x128xf32>
    %72 = arith.addf %66, %71 : vector<72x128xf32>
    %73 = vector.extract_strided_slice %7 {offsets = [792, 0], sizes = [72, 128], strides = [1, 1]} : vector<1152x128xf32> to vector<72x128xf32>
    %74 = arith.truncf %73 : vector<72x128xf32> to vector<72x128xbf16>
    %c11 = arith.constant 11 : index
    %c0_40 = arith.constant 0 : index
    %c0_41 = arith.constant 0 : index
    %75 = vector.load %arg3[%c11, %c0_40, %c0_41] : memref<16x128x128xbf16, #tpu.memory_space<vmem>>, vector<1x128x128xbf16>
    %76 = vector.shape_cast %75 : vector<1x128x128xbf16> to vector<128x128xbf16>
    %cst_42 = arith.constant dense<0.000000e+00> : vector<72x128xf32>
    %77 = tpu.matmul %74, %76, %cst_42 {dimension_numbers = #tpu.dot_dimension_numbers<[1], [0], [0], [1], [0, 0, 1, 1], [], []>} : vector<72x128xbf16>, vector<128x128xbf16>, vector<72x128xf32> -> vector<72x128xf32>
    %78 = arith.addf %72, %77 : vector<72x128xf32>
    %79 = vector.extract_strided_slice %7 {offsets = [864, 0], sizes = [72, 128], strides = [1, 1]} : vector<1152x128xf32> to vector<72x128xf32>
    %80 = arith.truncf %79 : vector<72x128xf32> to vector<72x128xbf16>
    %c12 = arith.constant 12 : index
    %c0_43 = arith.constant 0 : index
    %c0_44 = arith.constant 0 : index
    %81 = vector.load %arg3[%c12, %c0_43, %c0_44] : memref<16x128x128xbf16, #tpu.memory_space<vmem>>, vector<1x128x128xbf16>
    %82 = vector.shape_cast %81 : vector<1x128x128xbf16> to vector<128x128xbf16>
    %cst_45 = arith.constant dense<0.000000e+00> : vector<72x128xf32>
    %83 = tpu.matmul %80, %82, %cst_45 {dimension_numbers = #tpu.dot_dimension_numbers<[1], [0], [0], [1], [0, 0, 1, 1], [], []>} : vector<72x128xbf16>, vector<128x128xbf16>, vector<72x128xf32> -> vector<72x128xf32>
    %84 = arith.addf %78, %83 : vector<72x128xf32>
    %85 = vector.extract_strided_slice %7 {offsets = [936, 0], sizes = [72, 128], strides = [1, 1]} : vector<1152x128xf32> to vector<72x128xf32>
    %86 = arith.truncf %85 : vector<72x128xf32> to vector<72x128xbf16>
    %c13 = arith.constant 13 : index
    %c0_46 = arith.constant 0 : index
    %c0_47 = arith.constant 0 : index
    %87 = vector.load %arg3[%c13, %c0_46, %c0_47] : memref<16x128x128xbf16, #tpu.memory_space<vmem>>, vector<1x128x128xbf16>
    %88 = vector.shape_cast %87 : vector<1x128x128xbf16> to vector<128x128xbf16>
    %cst_48 = arith.constant dense<0.000000e+00> : vector<72x128xf32>
    %89 = tpu.matmul %86, %88, %cst_48 {dimension_numbers = #tpu.dot_dimension_numbers<[1], [0], [0], [1], [0, 0, 1, 1], [], []>} : vector<72x128xbf16>, vector<128x128xbf16>, vector<72x128xf32> -> vector<72x128xf32>
    %90 = arith.addf %84, %89 : vector<72x128xf32>
    %91 = vector.extract_strided_slice %7 {offsets = [1008, 0], sizes = [72, 128], strides = [1, 1]} : vector<1152x128xf32> to vector<72x128xf32>
    %92 = arith.truncf %91 : vector<72x128xf32> to vector<72x128xbf16>
    %c14 = arith.constant 14 : index
    %c0_49 = arith.constant 0 : index
    %c0_50 = arith.constant 0 : index
    %93 = vector.load %arg3[%c14, %c0_49, %c0_50] : memref<16x128x128xbf16, #tpu.memory_space<vmem>>, vector<1x128x128xbf16>
    %94 = vector.shape_cast %93 : vector<1x128x128xbf16> to vector<128x128xbf16>
    %cst_51 = arith.constant dense<0.000000e+00> : vector<72x128xf32>
    %95 = tpu.matmul %92, %94, %cst_51 {dimension_numbers = #tpu.dot_dimension_numbers<[1], [0], [0], [1], [0, 0, 1, 1], [], []>} : vector<72x128xbf16>, vector<128x128xbf16>, vector<72x128xf32> -> vector<72x128xf32>
    %96 = arith.addf %90, %95 : vector<72x128xf32>
    %97 = vector.extract_strided_slice %7 {offsets = [1080, 0], sizes = [72, 128], strides = [1, 1]} : vector<1152x128xf32> to vector<72x128xf32>
    %98 = arith.truncf %97 : vector<72x128xf32> to vector<72x128xbf16>
    %c15 = arith.constant 15 : index
    %c0_52 = arith.constant 0 : index
    %c0_53 = arith.constant 0 : index
    %99 = vector.load %arg3[%c15, %c0_52, %c0_53] : memref<16x128x128xbf16, #tpu.memory_space<vmem>>, vector<1x128x128xbf16>
    %100 = vector.shape_cast %99 : vector<1x128x128xbf16> to vector<128x128xbf16>
    %cst_54 = arith.constant dense<0.000000e+00> : vector<72x128xf32>
    %101 = tpu.matmul %98, %100, %cst_54 {dimension_numbers = #tpu.dot_dimension_numbers<[1], [0], [0], [1], [0, 0, 1, 1], [], []>} : vector<72x128xbf16>, vector<128x128xbf16>, vector<72x128xf32> -> vector<72x128xf32>
    %102 = arith.addf %96, %101 : vector<72x128xf32>
    %c0_55 = arith.constant 0 : index
    %c0_56 = arith.constant 0 : index
    %103 = vector.load %arg4[%c0_55, %c0_56] : memref<1x128xf32, #tpu.memory_space<vmem>>, vector<1x128xf32>
    %104 = vector.broadcast %103 : vector<1x128xf32> to vector<72x128xf32>
    %105 = arith.addf %102, %104 : vector<72x128xf32>
    %cst_57 = arith.constant 0.000000e+00 : f32
    %106 = vector.broadcast %cst_57 : f32 to vector<72x128xf32>
    %107 = arith.maximumf %105, %106 : vector<72x128xf32>
    %108 = vector.extract_strided_slice %107 {offsets = [0, 0], sizes = [8, 128], strides = [1, 1]} : vector<72x128xf32> to vector<8x128xf32>
    %109 = arith.truncf %108 : vector<8x128xf32> to vector<8x128xbf16>
    %c0_58 = arith.constant 0 : index
    %c0_59 = arith.constant 0 : index
    %c0_60 = arith.constant 0 : index
    %110 = vector.load %arg5[%c0_58, %c0_59, %c0_60] : memref<9x128x128xbf16, #tpu.memory_space<vmem>>, vector<1x128x128xbf16>
    %111 = vector.shape_cast %110 : vector<1x128x128xbf16> to vector<128x128xbf16>
    %cst_61 = arith.constant dense<0.000000e+00> : vector<8x128xf32>
    %112 = tpu.matmul %109, %111, %cst_61 {dimension_numbers = #tpu.dot_dimension_numbers<[1], [0], [0], [1], [0, 0, 1, 1], [], []>} : vector<8x128xbf16>, vector<128x128xbf16>, vector<8x128xf32> -> vector<8x128xf32>
    %113 = vector.extract_strided_slice %107 {offsets = [8, 0], sizes = [8, 128], strides = [1, 1]} : vector<72x128xf32> to vector<8x128xf32>
    %114 = arith.truncf %113 : vector<8x128xf32> to vector<8x128xbf16>
    %c1_62 = arith.constant 1 : index
    %c0_63 = arith.constant 0 : index
    %c0_64 = arith.constant 0 : index
    %115 = vector.load %arg5[%c1_62, %c0_63, %c0_64] : memref<9x128x128xbf16, #tpu.memory_space<vmem>>, vector<1x128x128xbf16>
    %116 = vector.shape_cast %115 : vector<1x128x128xbf16> to vector<128x128xbf16>
    %cst_65 = arith.constant dense<0.000000e+00> : vector<8x128xf32>
    %117 = tpu.matmul %114, %116, %cst_65 {dimension_numbers = #tpu.dot_dimension_numbers<[1], [0], [0], [1], [0, 0, 1, 1], [], []>} : vector<8x128xbf16>, vector<128x128xbf16>, vector<8x128xf32> -> vector<8x128xf32>
    %118 = arith.addf %112, %117 : vector<8x128xf32>
    %119 = vector.extract_strided_slice %107 {offsets = [16, 0], sizes = [8, 128], strides = [1, 1]} : vector<72x128xf32> to vector<8x128xf32>
    %120 = arith.truncf %119 : vector<8x128xf32> to vector<8x128xbf16>
    %c2_66 = arith.constant 2 : index
    %c0_67 = arith.constant 0 : index
    %c0_68 = arith.constant 0 : index
    %121 = vector.load %arg5[%c2_66, %c0_67, %c0_68] : memref<9x128x128xbf16, #tpu.memory_space<vmem>>, vector<1x128x128xbf16>
    %122 = vector.shape_cast %121 : vector<1x128x128xbf16> to vector<128x128xbf16>
    %cst_69 = arith.constant dense<0.000000e+00> : vector<8x128xf32>
    %123 = tpu.matmul %120, %122, %cst_69 {dimension_numbers = #tpu.dot_dimension_numbers<[1], [0], [0], [1], [0, 0, 1, 1], [], []>} : vector<8x128xbf16>, vector<128x128xbf16>, vector<8x128xf32> -> vector<8x128xf32>
    %124 = arith.addf %118, %123 : vector<8x128xf32>
    %125 = vector.extract_strided_slice %107 {offsets = [24, 0], sizes = [8, 128], strides = [1, 1]} : vector<72x128xf32> to vector<8x128xf32>
    %126 = arith.truncf %125 : vector<8x128xf32> to vector<8x128xbf16>
    %c3_70 = arith.constant 3 : index
    %c0_71 = arith.constant 0 : index
    %c0_72 = arith.constant 0 : index
    %127 = vector.load %arg5[%c3_70, %c0_71, %c0_72] : memref<9x128x128xbf16, #tpu.memory_space<vmem>>, vector<1x128x128xbf16>
    %128 = vector.shape_cast %127 : vector<1x128x128xbf16> to vector<128x128xbf16>
    %cst_73 = arith.constant dense<0.000000e+00> : vector<8x128xf32>
    %129 = tpu.matmul %126, %128, %cst_73 {dimension_numbers = #tpu.dot_dimension_numbers<[1], [0], [0], [1], [0, 0, 1, 1], [], []>} : vector<8x128xbf16>, vector<128x128xbf16>, vector<8x128xf32> -> vector<8x128xf32>
    %130 = arith.addf %124, %129 : vector<8x128xf32>
    %131 = vector.extract_strided_slice %107 {offsets = [32, 0], sizes = [8, 128], strides = [1, 1]} : vector<72x128xf32> to vector<8x128xf32>
    %132 = arith.truncf %131 : vector<8x128xf32> to vector<8x128xbf16>
    %c4_74 = arith.constant 4 : index
    %c0_75 = arith.constant 0 : index
    %c0_76 = arith.constant 0 : index
    %133 = vector.load %arg5[%c4_74, %c0_75, %c0_76] : memref<9x128x128xbf16, #tpu.memory_space<vmem>>, vector<1x128x128xbf16>
    %134 = vector.shape_cast %133 : vector<1x128x128xbf16> to vector<128x128xbf16>
    %cst_77 = arith.constant dense<0.000000e+00> : vector<8x128xf32>
    %135 = tpu.matmul %132, %134, %cst_77 {dimension_numbers = #tpu.dot_dimension_numbers<[1], [0], [0], [1], [0, 0, 1, 1], [], []>} : vector<8x128xbf16>, vector<128x128xbf16>, vector<8x128xf32> -> vector<8x128xf32>
    %136 = arith.addf %130, %135 : vector<8x128xf32>
    %137 = vector.extract_strided_slice %107 {offsets = [40, 0], sizes = [8, 128], strides = [1, 1]} : vector<72x128xf32> to vector<8x128xf32>
    %138 = arith.truncf %137 : vector<8x128xf32> to vector<8x128xbf16>
    %c5_78 = arith.constant 5 : index
    %c0_79 = arith.constant 0 : index
    %c0_80 = arith.constant 0 : index
    %139 = vector.load %arg5[%c5_78, %c0_79, %c0_80] : memref<9x128x128xbf16, #tpu.memory_space<vmem>>, vector<1x128x128xbf16>
    %140 = vector.shape_cast %139 : vector<1x128x128xbf16> to vector<128x128xbf16>
    %cst_81 = arith.constant dense<0.000000e+00> : vector<8x128xf32>
    %141 = tpu.matmul %138, %140, %cst_81 {dimension_numbers = #tpu.dot_dimension_numbers<[1], [0], [0], [1], [0, 0, 1, 1], [], []>} : vector<8x128xbf16>, vector<128x128xbf16>, vector<8x128xf32> -> vector<8x128xf32>
    %142 = arith.addf %136, %141 : vector<8x128xf32>
    %143 = vector.extract_strided_slice %107 {offsets = [48, 0], sizes = [8, 128], strides = [1, 1]} : vector<72x128xf32> to vector<8x128xf32>
    %144 = arith.truncf %143 : vector<8x128xf32> to vector<8x128xbf16>
    %c6_82 = arith.constant 6 : index
    %c0_83 = arith.constant 0 : index
    %c0_84 = arith.constant 0 : index
    %145 = vector.load %arg5[%c6_82, %c0_83, %c0_84] : memref<9x128x128xbf16, #tpu.memory_space<vmem>>, vector<1x128x128xbf16>
    %146 = vector.shape_cast %145 : vector<1x128x128xbf16> to vector<128x128xbf16>
    %cst_85 = arith.constant dense<0.000000e+00> : vector<8x128xf32>
    %147 = tpu.matmul %144, %146, %cst_85 {dimension_numbers = #tpu.dot_dimension_numbers<[1], [0], [0], [1], [0, 0, 1, 1], [], []>} : vector<8x128xbf16>, vector<128x128xbf16>, vector<8x128xf32> -> vector<8x128xf32>
    %148 = arith.addf %142, %147 : vector<8x128xf32>
    %149 = vector.extract_strided_slice %107 {offsets = [56, 0], sizes = [8, 128], strides = [1, 1]} : vector<72x128xf32> to vector<8x128xf32>
    %150 = arith.truncf %149 : vector<8x128xf32> to vector<8x128xbf16>
    %c7_86 = arith.constant 7 : index
    %c0_87 = arith.constant 0 : index
    %c0_88 = arith.constant 0 : index
    %151 = vector.load %arg5[%c7_86, %c0_87, %c0_88] : memref<9x128x128xbf16, #tpu.memory_space<vmem>>, vector<1x128x128xbf16>
    %152 = vector.shape_cast %151 : vector<1x128x128xbf16> to vector<128x128xbf16>
    %cst_89 = arith.constant dense<0.000000e+00> : vector<8x128xf32>
    %153 = tpu.matmul %150, %152, %cst_89 {dimension_numbers = #tpu.dot_dimension_numbers<[1], [0], [0], [1], [0, 0, 1, 1], [], []>} : vector<8x128xbf16>, vector<128x128xbf16>, vector<8x128xf32> -> vector<8x128xf32>
    %154 = arith.addf %148, %153 : vector<8x128xf32>
    %155 = vector.extract_strided_slice %107 {offsets = [64, 0], sizes = [8, 128], strides = [1, 1]} : vector<72x128xf32> to vector<8x128xf32>
    %156 = arith.truncf %155 : vector<8x128xf32> to vector<8x128xbf16>
    %c8_90 = arith.constant 8 : index
    %c0_91 = arith.constant 0 : index
    %c0_92 = arith.constant 0 : index
    %157 = vector.load %arg5[%c8_90, %c0_91, %c0_92] : memref<9x128x128xbf16, #tpu.memory_space<vmem>>, vector<1x128x128xbf16>
    %158 = vector.shape_cast %157 : vector<1x128x128xbf16> to vector<128x128xbf16>
    %cst_93 = arith.constant dense<0.000000e+00> : vector<8x128xf32>
    %159 = tpu.matmul %156, %158, %cst_93 {dimension_numbers = #tpu.dot_dimension_numbers<[1], [0], [0], [1], [0, 0, 1, 1], [], []>} : vector<8x128xbf16>, vector<128x128xbf16>, vector<8x128xf32> -> vector<8x128xf32>
    %160 = arith.addf %154, %159 : vector<8x128xf32>
    %c0_94 = arith.constant 0 : index
    %c0_95 = arith.constant 0 : index
    %161 = vector.load %arg6[%c0_94, %c0_95] : memref<1x128xf32, #tpu.memory_space<vmem>>, vector<1x128xf32>
    %162 = vector.broadcast %161 : vector<1x128xf32> to vector<8x128xf32>
    %163 = arith.addf %160, %162 : vector<8x128xf32>
    %cst_96 = arith.constant 0.000000e+00 : f32
    %164 = vector.broadcast %cst_96 : f32 to vector<8x128xf32>
    %165 = arith.maximumf %163, %164 : vector<8x128xf32>
    %166 = arith.truncf %165 : vector<8x128xf32> to vector<8x128xbf16>
    %c0_97 = arith.constant 0 : index
    %c0_98 = arith.constant 0 : index
    %c0_99 = arith.constant 0 : index
    %167 = vector.load %arg7[%c0_97, %c0_98, %c0_99] : memref<1x128x128xbf16, #tpu.memory_space<vmem>>, vector<1x128x128xbf16>
    %168 = vector.shape_cast %167 : vector<1x128x128xbf16> to vector<128x128xbf16>
    %cst_100 = arith.constant dense<0.000000e+00> : vector<8x128xf32>
    %169 = tpu.matmul %166, %168, %cst_100 {dimension_numbers = #tpu.dot_dimension_numbers<[1], [0], [0], [1], [0, 0, 1, 1], [], []>} : vector<8x128xbf16>, vector<128x128xbf16>, vector<8x128xf32> -> vector<8x128xf32>
    %c0_101 = arith.constant 0 : index
    %c0_102 = arith.constant 0 : index
    %170 = vector.load %arg8[%c0_101, %c0_102] : memref<1x128xf32, #tpu.memory_space<vmem>>, vector<1x128xf32>
    %171 = vector.broadcast %170 : vector<1x128xf32> to vector<8x128xf32>
    %172 = arith.addf %169, %171 : vector<8x128xf32>
    %c0_103 = arith.constant 0 : index
    %c0_104 = arith.constant 0 : index
    %173 = vector.load %arg9[%c0_103, %c0_104] : memref<8x128xf32, #tpu.memory_space<vmem>>, vector<8x128xf32>
    tpu.vector_store %arg9[%c0_103, %c0_104], %172 {strides = array<i32>} : memref<8x128xf32, #tpu.memory_space<vmem>>, vector<8x128xf32>,
    return
  }
}

</mosaic_0001>

<llo_original>
// kernel: dqn_forward.1
$region0: #{dqn_forward.1}
  #allocation0 [shape = 'u32[]', space=smem, size = 0x4, offset = 0x4, fixed_abs, tag = 'smem constant byte address 0x4 - core index']
  #allocation1 [shape = 'u32[144,128]{1,0:T(1,128)}', space=vmem, size = 0x12000, scoped, tag = 'internal scratch']
  %s0 = inlined_call_operand.vmem [shape: bf16[1152,256], index: 0, kind: input, shape index: {}]
  %s1 = inlined_call_operand.vmem [shape: bf16[256,128], index: 1, kind: input, shape index: {}]
  %s2 = inlined_call_operand.vmem [shape: f32[1,128], index: 2, kind: input, shape index: {}]
  %s3 = inlined_call_operand.vmem [shape: bf16[16,128,128], index: 3, kind: input, shape index: {}]
  %s4 = inlined_call_operand.vmem [shape: f32[1,128], index: 4, kind: input, shape index: {}]
  %s5 = inlined_call_operand.vmem [shape: bf16[9,128,128], index: 5, kind: input, shape index: {}]
  %s6 = inlined_call_operand.vmem [shape: f32[1,128], index: 6, kind: input, shape index: {}]
  %s7 = inlined_call_operand.vmem [shape: bf16[1,128,128], index: 7, kind: input, shape index: {}]
  %s8 = inlined_call_operand.vmem [shape: f32[1,128], index: 8, kind: input, shape index: {}]
  %s9 = inlined_call_operand.vmem [shape: f32[8,128], index: 9, kind: output, shape index: {}]
  %s10 = sld [smem:[#allocation0]]
  $region46: #{dqn_forward.1} parent=0
    _
  %s12 = ssub.s32 1, %s10
  %s13 = scalar_select 0, %s12, %s10
  // Predicated region
  $region2: #{dqn_forward.1} parent=0 // pred_check
    _
  $region3: #{dqn_forward.1} parent=0 // pred_check_branch
    %15 = sbr.rel (0) target = $region5
  $region4: #{dqn_forward.1} parent=0 // pred_region
    _
  $region5: #{dqn_forward.1} parent=0 // pred_fallthru
    _
  // Predicated region
  $region6: #{dqn_forward.1} parent=0 // pred_check
    _
  $region7: #{dqn_forward.1} parent=0 // pred_check_branch
    %17 = sbr.rel (0) target = $region9
  $region8: #{dqn_forward.1} parent=0 // pred_region
    _
  $region9: #{dqn_forward.1} parent=0 // pred_fallthru
    _
  // Predicated region
  $region10: #{dqn_forward.1} parent=0 // pred_check
    _
  $region11: #{dqn_forward.1} parent=0 // pred_check_branch
    %19 = sbr.rel (0) target = $region13
  $region12: #{dqn_forward.1} parent=0 // pred_region
    _
  $region13: #{dqn_forward.1} parent=0 // pred_fallthru
    _
  // Predicated region
  $region14: #{dqn_forward.1} parent=0 // pred_check
    _
  $region15: #{dqn_forward.1} parent=0 // pred_check_branch
    %21 = sbr.rel (0) target = $region17
  $region16: #{dqn_forward.1} parent=0 // pred_region
    _
  $region17: #{dqn_forward.1} parent=0 // pred_fallthru
    _
  // Predicated region
  $region18: #{dqn_forward.1} parent=0 // pred_check
    _
  $region19: #{dqn_forward.1} parent=0 // pred_check_branch
    %23 = sbr.rel (0) target = $region21
  $region20: #{dqn_forward.1} parent=0 // pred_region
    _
  $region21: #{dqn_forward.1} parent=0 // pred_fallthru
    _
  // Predicated region
  $region22: #{dqn_forward.1} parent=0 // pred_check
    _
  $region23: #{dqn_forward.1} parent=0 // pred_check_branch
    %25 = sbr.rel (0) target = $region25
  $region24: #{dqn_forward.1} parent=0 // pred_region
    _
  $region25: #{dqn_forward.1} parent=0 // pred_fallthru
    _
  // Predicated region
  $region26: #{dqn_forward.1} parent=0 // pred_check
    _
  $region27: #{dqn_forward.1} parent=0 // pred_check_branch
    %27 = sbr.rel (0) target = $region29
  $region28: #{dqn_forward.1} parent=0 // pred_region
    _
  $region29: #{dqn_forward.1} parent=0 // pred_fallthru
    _
  // Predicated region
  $region30: #{dqn_forward.1} parent=0 // pred_check
    _
  $region31: #{dqn_forward.1} parent=0 // pred_check_branch
    %29 = sbr.rel (0) target = $region33
  $region32: #{dqn_forward.1} parent=0 // pred_region
    _
  $region33: #{dqn_forward.1} parent=0 // pred_fallthru
    _
  // Predicated region
  $region34: #{dqn_forward.1} parent=0 // pred_check
    _
  $region35: #{dqn_forward.1} parent=0 // pred_check_branch
    %31 = sbr.rel (0) target = $region37
  $region36: #{dqn_forward.1} parent=0 // pred_region
    _
  $region37: #{dqn_forward.1} parent=0 // pred_fallthru
    _
  %v33 = vld [vmem:[%s0] sm:$0xff]
  %v34 = vld [vmem:[%s0 + $0x8] sm:$0xff]
  %v35 = vld [vmem:[%s0 + $0x10] sm:$0xff]
  %v36 = vld [vmem:[%s0 + $0x18] sm:$0xff]
  %v37 = vld [vmem:[%s0 + $0x20] sm:$0xff]
  %v38 = vld [vmem:[%s0 + $0x28] sm:$0xff]
  %v39 = vld [vmem:[%s0 + $0x30] sm:$0xff]
  %v40 = vld [vmem:[%s0 + $0x38] sm:$0xff]
  %v41 = vld [vmem:[%s0 + $0x40] sm:$0xff]
  %v42 = vld [vmem:[%s0 + $0x48] sm:$0xff]
  %v43 = vld [vmem:[%s0 + $0x50] sm:$0xff]
  %v44 = vld [vmem:[%s0 + $0x58] sm:$0xff]
  %v45 = vld [vmem:[%s0 + $0x60] sm:$0xff]
  %v46 = vld [vmem:[%s0 + $0x68] sm:$0xff]
  %v47 = vld [vmem:[%s0 + $0x70] sm:$0xff]
  %v48 = vld [vmem:[%s0 + $0x78] sm:$0xff]
  %v49 = vld [vmem:[%s0 + $0x80] sm:$0xff]
  %v50 = vld [vmem:[%s0 + $0x88] sm:$0xff]
  %v51 = vld [vmem:[%s0 + $0x90] sm:$0xff]
  %v52 = vld [vmem:[%s0 + $0x98] sm:$0xff]
  %v53 = vld [vmem:[%s0 + $0xa0] sm:$0xff]
  %v54 = vld [vmem:[%s0 + $0xa8] sm:$0xff]
  %v55 = vld [vmem:[%s0 + $0xb0] sm:$0xff]
  %v56 = vld [vmem:[%s0 + $0xb8] sm:$0xff]
  %v57 = vld [vmem:[%s0 + $0xc0] sm:$0xff]
  %v58 = vld [vmem:[%s0 + $0xc8] sm:$0xff]
  %v59 = vld [vmem:[%s0 + $0xd0] sm:$0xff]
  %v60 = vld [vmem:[%s0 + $0xd8] sm:$0xff]
  %v61 = vld [vmem:[%s0 + $0xe0] sm:$0xff]
  %v62 = vld [vmem:[%s0 + $0xe8] sm:$0xff]
  %v63 = vld [vmem:[%s0 + $0xf0] sm:$0xff]
  %v64 = vld [vmem:[%s0 + $0xf8] sm:$0xff]
  %v65 = vld [vmem:[%s0 + $0x100] sm:$0xff]
  %v66 = vld [vmem:[%s0 + $0x108] sm:$0xff]
  %v67 = vld [vmem:[%s0 + $0x110] sm:$0xff]
  %v68 = vld [vmem:[%s0 + $0x118] sm:$0xff]
  %v69 = vld [vmem:[%s0 + $0x120] sm:$0xff]
  %v70 = vld [vmem:[%s0 + $0x128] sm:$0xff]
  %v71 = vld [vmem:[%s0 + $0x130] sm:$0xff]
  %v72 = vld [vmem:[%s0 + $0x138] sm:$0xff]
  %v73 = vld [vmem:[%s0 + $0x140] sm:$0xff]
  %v74 = vld [vmem:[%s0 + $0x148] sm:$0xff]
  %v75 = vld [vmem:[%s0 + $0x150] sm:$0xff]
  %v76 = vld [vmem:[%s0 + $0x158] sm:$0xff]
  %v77 = vld [vmem:[%s0 + $0x160] sm:$0xff]
  %v78 = vld [vmem:[%s0 + $0x168] sm:$0xff]
  %v79 = vld [vmem:[%s0 + $0x170] sm:$0xff]
  %v80 = vld [vmem:[%s0 + $0x178] sm:$0xff]
  %v81 = vld [vmem:[%s0 + $0x180] sm:$0xff]
  %v82 = vld [vmem:[%s0 + $0x188] sm:$0xff]
  %v83 = vld [vmem:[%s0 + $0x190] sm:$0xff]
  %v84 = vld [vmem:[%s0 + $0x198] sm:$0xff]
  %v85 = vld [vmem:[%s0 + $0x1a0] sm:$0xff]
  %v86 = vld [vmem:[%s0 + $0x1a8] sm:$0xff]
  %v87 = vld [vmem:[%s0 + $0x1b0] sm:$0xff]
  %v88 = vld [vmem:[%s0 + $0x1b8] sm:$0xff]
  %v89 = vld [vmem:[%s0 + $0x1c0] sm:$0xff]
  %v90 = vld [vmem:[%s0 + $0x1c8] sm:$0xff]
  %v91 = vld [vmem:[%s0 + $0x1d0] sm:$0xff]
  %v92 = vld [vmem:[%s0 + $0x1d8] sm:$0xff]
  %v93 = vld [vmem:[%s0 + $0x1e0] sm:$0xff]
  %v94 = vld [vmem:[%s0 + $0x1e8] sm:$0xff]
  %v95 = vld [vmem:[%s0 + $0x1f0] sm:$0xff]
  %v96 = vld [vmem:[%s0 + $0x1f8] sm:$0xff]
  %v97 = vld [vmem:[%s0 + $0x200] sm:$0xff]
  %v98 = vld [vmem:[%s0 + $0x208] sm:$0xff]
  %v99 = vld [vmem:[%s0 + $0x210] sm:$0xff]
  %v100 = vld [vmem:[%s0 + $0x218] sm:$0xff]
  %v101 = vld [vmem:[%s0 + $0x220] sm:$0xff]
  %v102 = vld [vmem:[%s0 + $0x228] sm:$0xff]
  %v103 = vld [vmem:[%s0 + $0x230] sm:$0xff]
  %v104 = vld [vmem:[%s0 + $0x238] sm:$0xff]
  %v105 = vld [vmem:[%s0 + $0x240] sm:$0xff]
  %v106 = vld [vmem:[%s0 + $0x248] sm:$0xff]
  %v107 = vld [vmem:[%s0 + $0x250] sm:$0xff]
  %v108 = vld [vmem:[%s0 + $0x258] sm:$0xff]
  %v109 = vld [vmem:[%s0 + $0x260] sm:$0xff]
  %v110 = vld [vmem:[%s0 + $0x268] sm:$0xff]
  %v111 = vld [vmem:[%s0 + $0x270] sm:$0xff]
  %v112 = vld [vmem:[%s0 + $0x278] sm:$0xff]
  %v113 = vld [vmem:[%s0 + $0x280] sm:$0xff]
  %v114 = vld [vmem:[%s0 + $0x288] sm:$0xff]
  %v115 = vld [vmem:[%s0 + $0x290] sm:$0xff]
  %v116 = vld [vmem:[%s0 + $0x298] sm:$0xff]
  %v117 = vld [vmem:[%s0 + $0x2a0] sm:$0xff]
  %v118 = vld [vmem:[%s0 + $0x2a8] sm:$0xff]
  %v119 = vld [vmem:[%s0 + $0x2b0] sm:$0xff]
  %v120 = vld [vmem:[%s0 + $0x2b8] sm:$0xff]
  %v121 = vld [vmem:[%s0 + $0x2c0] sm:$0xff]
  %v122 = vld [vmem:[%s0 + $0x2c8] sm:$0xff]
  %v123 = vld [vmem:[%s0 + $0x2d0] sm:$0xff]
  %v124 = vld [vmem:[%s0 + $0x2d8] sm:$0xff]
  %v125 = vld [vmem:[%s0 + $0x2e0] sm:$0xff]
  %v126 = vld [vmem:[%s0 + $0x2e8] sm:$0xff]
  %v127 = vld [vmem:[%s0 + $0x2f0] sm:$0xff]
  %v128 = vld [vmem:[%s0 + $0x2f8] sm:$0xff]
  %v129 = vld [vmem:[%s0 + $0x300] sm:$0xff]
  %v130 = vld [vmem:[%s0 + $0x308] sm:$0xff]
  %v131 = vld [vmem:[%s0 + $0x310] sm:$0xff]
  %v132 = vld [vmem:[%s0 + $0x318] sm:$0xff]
  %v133 = vld [vmem:[%s0 + $0x320] sm:$0xff]
  %v134 = vld [vmem:[%s0 + $0x328] sm:$0xff]
  %v135 = vld [vmem:[%s0 + $0x330] sm:$0xff]
  %v136 = vld [vmem:[%s0 + $0x338] sm:$0xff]
  %v137 = vld [vmem:[%s0 + $0x340] sm:$0xff]
  %v138 = vld [vmem:[%s0 + $0x348] sm:$0xff]
  %v139 = vld [vmem:[%s0 + $0x350] sm:$0xff]
  %v140 = vld [vmem:[%s0 + $0x358] sm:$0xff]
  %v141 = vld [vmem:[%s0 + $0x360] sm:$0xff]
  %v142 = vld [vmem:[%s0 + $0x368] sm:$0xff]
  %v143 = vld [vmem:[%s0 + $0x370] sm:$0xff]
  %v144 = vld [vmem:[%s0 + $0x378] sm:$0xff]
  %v145 = vld [vmem:[%s0 + $0x380] sm:$0xff]
  %v146 = vld [vmem:[%s0 + $0x388] sm:$0xff]
  %v147 = vld [vmem:[%s0 + $0x390] sm:$0xff]
  %v148 = vld [vmem:[%s0 + $0x398] sm:$0xff]
  %v149 = vld [vmem:[%s0 + $0x3a0] sm:$0xff]
  %v150 = vld [vmem:[%s0 + $0x3a8] sm:$0xff]
  %v151 = vld [vmem:[%s0 + $0x3b0] sm:$0xff]
  %v152 = vld [vmem:[%s0 + $0x3b8] sm:$0xff]
  %v153 = vld [vmem:[%s0 + $0x3c0] sm:$0xff]
  %v154 = vld [vmem:[%s0 + $0x3c8] sm:$0xff]
  %v155 = vld [vmem:[%s0 + $0x3d0] sm:$0xff]
  %v156 = vld [vmem:[%s0 + $0x3d8] sm:$0xff]
  %v157 = vld [vmem:[%s0 + $0x3e0] sm:$0xff]
  %v158 = vld [vmem:[%s0 + $0x3e8] sm:$0xff]
  %v159 = vld [vmem:[%s0 + $0x3f0] sm:$0xff]
  %v160 = vld [vmem:[%s0 + $0x3f8] sm:$0xff]
  %v161 = vld [vmem:[%s0 + $0x400] sm:$0xff]
  %v162 = vld [vmem:[%s0 + $0x408] sm:$0xff]
  %v163 = vld [vmem:[%s0 + $0x410] sm:$0xff]
  %v164 = vld [vmem:[%s0 + $0x418] sm:$0xff]
  %v165 = vld [vmem:[%s0 + $0x420] sm:$0xff]
  %v166 = vld [vmem:[%s0 + $0x428] sm:$0xff]
  %v167 = vld [vmem:[%s0 + $0x430] sm:$0xff]
  %v168 = vld [vmem:[%s0 + $0x438] sm:$0xff]
  %v169 = vld [vmem:[%s0 + $0x440] sm:$0xff]
  %v170 = vld [vmem:[%s0 + $0x448] sm:$0xff]
  %v171 = vld [vmem:[%s0 + $0x450] sm:$0xff]
  %v172 = vld [vmem:[%s0 + $0x458] sm:$0xff]
  %v173 = vld [vmem:[%s0 + $0x460] sm:$0xff]
  %v174 = vld [vmem:[%s0 + $0x468] sm:$0xff]
  %v175 = vld [vmem:[%s0 + $0x470] sm:$0xff]
  %v176 = vld [vmem:[%s0 + $0x478] sm:$0xff]
  %v177 = vld [vmem:[%s1] sm:$0xf]
  %v178 = vld [vmem:[%s1 + $0x4] sm:$0xf]
  %v179 = vld [vmem:[%s1 + $0x8] sm:$0xf]
  %v180 = vld [vmem:[%s1 + $0xc] sm:$0xf]
  %v181 = vld [vmem:[%s1 + $0x10] sm:$0xf]
  %v182 = vld [vmem:[%s1 + $0x14] sm:$0xf]
  %v183 = vld [vmem:[%s1 + $0x18] sm:$0xf]
  %v184 = vld [vmem:[%s1 + $0x1c] sm:$0xf]
  %v185 = vld [vmem:[%s1 + $0x20] sm:$0xf]
  %v186 = vld [vmem:[%s1 + $0x24] sm:$0xf]
  %v187 = vld [vmem:[%s1 + $0x28] sm:$0xf]
  %v188 = vld [vmem:[%s1 + $0x2c] sm:$0xf]
  %v189 = vld [vmem:[%s1 + $0x30] sm:$0xf]
  %v190 = vld [vmem:[%s1 + $0x34] sm:$0xf]
  %v191 = vld [vmem:[%s1 + $0x38] sm:$0xf]
  %v192 = vld [vmem:[%s1 + $0x3c] sm:$0xf]
  %v193 = vld [vmem:[%s1 + $0x40] sm:$0xf]
  %v194 = vld [vmem:[%s1 + $0x44] sm:$0xf]
  %v195 = vld [vmem:[%s1 + $0x48] sm:$0xf]
  %v196 = vld [vmem:[%s1 + $0x4c] sm:$0xf]
  %v197 = vld [vmem:[%s1 + $0x50] sm:$0xf]
  %v198 = vld [vmem:[%s1 + $0x54] sm:$0xf]
  %v199 = vld [vmem:[%s1 + $0x58] sm:$0xf]
  %v200 = vld [vmem:[%s1 + $0x5c] sm:$0xf]
  %v201 = vld [vmem:[%s1 + $0x60] sm:$0xf]
  %v202 = vld [vmem:[%s1 + $0x64] sm:$0xf]
  %v203 = vld [vmem:[%s1 + $0x68] sm:$0xf]
  %v204 = vld [vmem:[%s1 + $0x6c] sm:$0xf]
  %v205 = vld [vmem:[%s1 + $0x70] sm:$0xf]
  %v206 = vld [vmem:[%s1 + $0x74] sm:$0xf]
  %v207 = vld [vmem:[%s1 + $0x78] sm:$0xf]
  %v208 = vld [vmem:[%s1 + $0x7c] sm:$0xf]
  %v209 = vld [vmem:[%s2] sm:$0x1]
  %v211 = vlaneseq
  %v212 = vshrl.u32 %v211, 7
  %v213 = vsub.s32 0, %v212
  %v214 = vrot.slane %v209, %v213
  %v360 = vunpack.c.l.b16 %v33
  %v361 = vunpack.c.h.b16 %v33
  %v362 = vunpack.c.l.b16 %v34
  %v363 = vunpack.c.h.b16 %v34
  %v364 = vunpack.c.l.b16 %v35
  %v365 = vunpack.c.h.b16 %v35
  %v366 = vunpack.c.l.b16 %v36
  %v367 = vunpack.c.h.b16 %v36
  %v368 = vunpack.c.l.b16 %v37
  %v369 = vunpack.c.h.b16 %v37
  %v370 = vunpack.c.l.b16 %v38
  %v371 = vunpack.c.h.b16 %v38
  %v372 = vunpack.c.l.b16 %v39
  %v373 = vunpack.c.h.b16 %v39
  %v374 = vunpack.c.l.b16 %v40
  %v375 = vunpack.c.h.b16 %v40
  %v376 = vunpack.c.l.b16 %v41
  %v377 = vunpack.c.h.b16 %v41
  %v378 = vunpack.c.l.b16 %v42
  %v379 = vunpack.c.h.b16 %v42
  %v380 = vunpack.c.l.b16 %v43
  %v381 = vunpack.c.h.b16 %v43
  %v382 = vunpack.c.l.b16 %v44
  %v383 = vunpack.c.h.b16 %v44
  %v384 = vunpack.c.l.b16 %v45
  %v385 = vunpack.c.h.b16 %v45
  %v386 = vunpack.c.l.b16 %v46
  %v387 = vunpack.c.h.b16 %v46
  %v388 = vunpack.c.l.b16 %v47
  %v389 = vunpack.c.h.b16 %v47
  %v390 = vunpack.c.l.b16 %v48
  %v391 = vunpack.c.h.b16 %v48
  %v392 = vunpack.c.l.b16 %v49
  %v393 = vunpack.c.h.b16 %v49
  %v394 = vunpack.c.l.b16 %v50
  %v395 = vunpack.c.h.b16 %v50
  %v396 = vunpack.c.l.b16 %v51
  %v397 = vunpack.c.h.b16 %v51
  %v398 = vunpack.c.l.b16 %v52
  %v399 = vunpack.c.h.b16 %v52
  %v400 = vunpack.c.l.b16 %v53
  %v401 = vunpack.c.h.b16 %v53
  %v402 = vunpack.c.l.b16 %v54
  %v403 = vunpack.c.h.b16 %v54
  %v404 = vunpack.c.l.b16 %v55
  %v405 = vunpack.c.h.b16 %v55
  %v406 = vunpack.c.l.b16 %v56
  %v407 = vunpack.c.h.b16 %v56
  %v408 = vunpack.c.l.b16 %v57
  %v409 = vunpack.c.h.b16 %v57
  %v410 = vunpack.c.l.b16 %v58
  %v411 = vunpack.c.h.b16 %v58
  %v412 = vunpack.c.l.b16 %v59
  %v413 = vunpack.c.h.b16 %v59
  %v414 = vunpack.c.l.b16 %v60
  %v415 = vunpack.c.h.b16 %v60
  %v416 = vunpack.c.l.b16 %v61
  %v417 = vunpack.c.h.b16 %v61
  %v418 = vunpack.c.l.b16 %v62
  %v419 = vunpack.c.h.b16 %v62
  %v420 = vunpack.c.l.b16 %v63
  %v421 = vunpack.c.h.b16 %v63
  %v422 = vunpack.c.l.b16 %v64
  %v423 = vunpack.c.h.b16 %v64
  %v424 = vunpack.c.l.b16 %v65
  %v425 = vunpack.c.h.b16 %v65
  %v426 = vunpack.c.l.b16 %v66
  %v427 = vunpack.c.h.b16 %v66
  %v428 = vunpack.c.l.b16 %v67
  %v429 = vunpack.c.h.b16 %v67
  %v430 = vunpack.c.l.b16 %v68
  %v431 = vunpack.c.h.b16 %v68
  %v432 = vunpack.c.l.b16 %v69
  %v433 = vunpack.c.h.b16 %v69
  %v434 = vunpack.c.l.b16 %v70
  %v435 = vunpack.c.h.b16 %v70
  %v436 = vunpack.c.l.b16 %v71
  %v437 = vunpack.c.h.b16 %v71
  %v438 = vunpack.c.l.b16 %v72
  %v439 = vunpack.c.h.b16 %v72
  %v440 = vunpack.c.l.b16 %v73
  %v441 = vunpack.c.h.b16 %v73
  %v442 = vunpack.c.l.b16 %v74
  %v443 = vunpack.c.h.b16 %v74
  %v444 = vunpack.c.l.b16 %v75
  %v445 = vunpack.c.h.b16 %v75
  %v446 = vunpack.c.l.b16 %v76
  %v447 = vunpack.c.h.b16 %v76
  %v448 = vunpack.c.l.b16 %v77
  %v449 = vunpack.c.h.b16 %v77
  %v450 = vunpack.c.l.b16 %v78
  %v451 = vunpack.c.h.b16 %v78
  %v452 = vunpack.c.l.b16 %v79
  %v453 = vunpack.c.h.b16 %v79
  %v454 = vunpack.c.l.b16 %v80
  %v455 = vunpack.c.h.b16 %v80
  %v456 = vunpack.c.l.b16 %v81
  %v457 = vunpack.c.h.b16 %v81
  %v458 = vunpack.c.l.b16 %v82
  %v459 = vunpack.c.h.b16 %v82
  %v460 = vunpack.c.l.b16 %v83
  %v461 = vunpack.c.h.b16 %v83
  %v462 = vunpack.c.l.b16 %v84
  %v463 = vunpack.c.h.b16 %v84
  %v464 = vunpack.c.l.b16 %v85
  %v465 = vunpack.c.h.b16 %v85
  %v466 = vunpack.c.l.b16 %v86
  %v467 = vunpack.c.h.b16 %v86
  %v468 = vunpack.c.l.b16 %v87
  %v469 = vunpack.c.h.b16 %v87
  %v470 = vunpack.c.l.b16 %v88
  %v471 = vunpack.c.h.b16 %v88
  %v472 = vunpack.c.l.b16 %v89
  %v473 = vunpack.c.h.b16 %v89
  %v474 = vunpack.c.l.b16 %v90
  %v475 = vunpack.c.h.b16 %v90
  %v476 = vunpack.c.l.b16 %v91
  %v477 = vunpack.c.h.b16 %v91
  %v478 = vunpack.c.l.b16 %v92
  %v479 = vunpack.c.h.b16 %v92
  %v480 = vunpack.c.l.b16 %v93
  %v481 = vunpack.c.h.b16 %v93
  %v482 = vunpack.c.l.b16 %v94
  %v483 = vunpack.c.h.b16 %v94
  %v484 = vunpack.c.l.b16 %v95
  %v485 = vunpack.c.h.b16 %v95
  %v486 = vunpack.c.l.b16 %v96
  %v487 = vunpack.c.h.b16 %v96
  %v488 = vunpack.c.l.b16 %v97
  %v489 = vunpack.c.h.b16 %v97
  %v490 = vunpack.c.l.b16 %v98
  %v491 = vunpack.c.h.b16 %v98
  %v492 = vunpack.c.l.b16 %v99
  %v493 = vunpack.c.h.b16 %v99
  %v494 = vunpack.c.l.b16 %v100
  %v495 = vunpack.c.h.b16 %v100
  %v496 = vunpack.c.l.b16 %v101
  %v497 = vunpack.c.h.b16 %v101
  %v498 = vunpack.c.l.b16 %v102
  %v499 = vunpack.c.h.b16 %v102
  %v500 = vunpack.c.l.b16 %v103
  %v501 = vunpack.c.h.b16 %v103
  %v502 = vunpack.c.l.b16 %v104
  %v503 = vunpack.c.h.b16 %v104
  %v504 = vunpack.c.l.b16 %v105
  %v505 = vunpack.c.h.b16 %v105
  %v506 = vunpack.c.l.b16 %v106
  %v507 = vunpack.c.h.b16 %v106
  %v508 = vunpack.c.l.b16 %v107
  %v509 = vunpack.c.h.b16 %v107
  %v510 = vunpack.c.l.b16 %v108
  %v511 = vunpack.c.h.b16 %v108
  %v512 = vunpack.c.l.b16 %v109
  %v513 = vunpack.c.h.b16 %v109
  %v514 = vunpack.c.l.b16 %v110
  %v515 = vunpack.c.h.b16 %v110
  %v516 = vunpack.c.l.b16 %v111
  %v517 = vunpack.c.h.b16 %v111
  %v518 = vunpack.c.l.b16 %v112
  %v519 = vunpack.c.h.b16 %v112
  %v520 = vunpack.c.l.b16 %v113
  %v521 = vunpack.c.h.b16 %v113
  %v522 = vunpack.c.l.b16 %v114
  %v523 = vunpack.c.h.b16 %v114
  %v524 = vunpack.c.l.b16 %v115
  %v525 = vunpack.c.h.b16 %v115
  %v526 = vunpack.c.l.b16 %v116
  %v527 = vunpack.c.h.b16 %v116
  %v528 = vunpack.c.l.b16 %v117
  %v529 = vunpack.c.h.b16 %v117
  %v530 = vunpack.c.l.b16 %v118
  %v531 = vunpack.c.h.b16 %v118
  %v532 = vunpack.c.l.b16 %v119
  %v533 = vunpack.c.h.b16 %v119
  %v534 = vunpack.c.l.b16 %v120
  %v535 = vunpack.c.h.b16 %v120
  %v536 = vunpack.c.l.b16 %v121
  %v537 = vunpack.c.h.b16 %v121
  %v538 = vunpack.c.l.b16 %v122
  %v539 = vunpack.c.h.b16 %v122
  %v540 = vunpack.c.l.b16 %v123
  %v541 = vunpack.c.h.b16 %v123
  %v542 = vunpack.c.l.b16 %v124
  %v543 = vunpack.c.h.b16 %v124
  %v544 = vunpack.c.l.b16 %v125
  %v545 = vunpack.c.h.b16 %v125
  %v546 = vunpack.c.l.b16 %v126
  %v547 = vunpack.c.h.b16 %v126
  %v548 = vunpack.c.l.b16 %v127
  %v549 = vunpack.c.h.b16 %v127
  %v550 = vunpack.c.l.b16 %v128
  %v551 = vunpack.c.h.b16 %v128
  %v552 = vunpack.c.l.b16 %v129
  %v553 = vunpack.c.h.b16 %v129
  %v554 = vunpack.c.l.b16 %v130
  %v555 = vunpack.c.h.b16 %v130
  %v556 = vunpack.c.l.b16 %v131
  %v557 = vunpack.c.h.b16 %v131
  %v558 = vunpack.c.l.b16 %v132
  %v559 = vunpack.c.h.b16 %v132
  %v560 = vunpack.c.l.b16 %v133
  %v561 = vunpack.c.h.b16 %v133
  %v562 = vunpack.c.l.b16 %v134
  %v563 = vunpack.c.h.b16 %v134
  %v564 = vunpack.c.l.b16 %v135
  %v565 = vunpack.c.h.b16 %v135
  %v566 = vunpack.c.l.b16 %v136
  %v567 = vunpack.c.h.b16 %v136
  %v568 = vunpack.c.l.b16 %v137
  %v569 = vunpack.c.h.b16 %v137
  %v570 = vunpack.c.l.b16 %v138
  %v571 = vunpack.c.h.b16 %v138
  %v572 = vunpack.c.l.b16 %v139
  %v573 = vunpack.c.h.b16 %v139
  %v574 = vunpack.c.l.b16 %v140
  %v575 = vunpack.c.h.b16 %v140
  %v576 = vunpack.c.l.b16 %v141
  %v577 = vunpack.c.h.b16 %v141
  %v578 = vunpack.c.l.b16 %v142
  %v579 = vunpack.c.h.b16 %v142
  %v580 = vunpack.c.l.b16 %v143
  %v581 = vunpack.c.h.b16 %v143
  %v582 = vunpack.c.l.b16 %v144
  %v583 = vunpack.c.h.b16 %v144
  %v584 = vunpack.c.l.b16 %v145
  %v585 = vunpack.c.h.b16 %v145
  %v586 = vunpack.c.l.b16 %v146
  %v587 = vunpack.c.h.b16 %v146
  %v588 = vunpack.c.l.b16 %v147
  %v589 = vunpack.c.h.b16 %v147
  %v590 = vunpack.c.l.b16 %v148
  %v591 = vunpack.c.h.b16 %v148
  %v592 = vunpack.c.l.b16 %v149
  %v593 = vunpack.c.h.b16 %v149
  %v594 = vunpack.c.l.b16 %v150
  %v595 = vunpack.c.h.b16 %v150
  %v596 = vunpack.c.l.b16 %v151
  %v597 = vunpack.c.h.b16 %v151
  %v598 = vunpack.c.l.b16 %v152
  %v599 = vunpack.c.h.b16 %v152
  %v600 = vunpack.c.l.b16 %v153
  %v601 = vunpack.c.h.b16 %v153
  %v602 = vunpack.c.l.b16 %v154
  %v603 = vunpack.c.h.b16 %v154
  %v604 = vunpack.c.l.b16 %v155
  %v605 = vunpack.c.h.b16 %v155
  %v606 = vunpack.c.l.b16 %v156
  %v607 = vunpack.c.h.b16 %v156
  %v608 = vunpack.c.l.b16 %v157
  %v609 = vunpack.c.h.b16 %v157
  %v610 = vunpack.c.l.b16 %v158
  %v611 = vunpack.c.h.b16 %v158
  %v612 = vunpack.c.l.b16 %v159
  %v613 = vunpack.c.h.b16 %v159
  %v614 = vunpack.c.l.b16 %v160
  %v615 = vunpack.c.h.b16 %v160
  %v616 = vunpack.c.l.b16 %v161
  %v617 = vunpack.c.h.b16 %v161
  %v618 = vunpack.c.l.b16 %v162
  %v619 = vunpack.c.h.b16 %v162
  %v620 = vunpack.c.l.b16 %v163
  %v621 = vunpack.c.h.b16 %v163
  %v622 = vunpack.c.l.b16 %v164
  %v623 = vunpack.c.h.b16 %v164
  %v624 = vunpack.c.l.b16 %v165
  %v625 = vunpack.c.h.b16 %v165
  %v626 = vunpack.c.l.b16 %v166
  %v627 = vunpack.c.h.b16 %v166
  %v628 = vunpack.c.l.b16 %v167
  %v629 = vunpack.c.h.b16 %v167
  %v630 = vunpack.c.l.b16 %v168
  %v631 = vunpack.c.h.b16 %v168
  %v632 = vunpack.c.l.b16 %v169
  %v633 = vunpack.c.h.b16 %v169
  %v634 = vunpack.c.l.b16 %v170
  %v635 = vunpack.c.h.b16 %v170
  %v636 = vunpack.c.l.b16 %v171
  %v637 = vunpack.c.h.b16 %v171
  %v638 = vunpack.c.l.b16 %v172
  %v639 = vunpack.c.h.b16 %v172
  %v640 = vunpack.c.l.b16 %v173
  %v641 = vunpack.c.h.b16 %v173
  %v642 = vunpack.c.l.b16 %v174
  %v643 = vunpack.c.h.b16 %v174
  %v644 = vunpack.c.l.b16 %v175
  %v645 = vunpack.c.h.b16 %v175
  %v646 = vunpack.c.l.b16 %v176
  %v647 = vunpack.c.h.b16 %v176
  %v648 = vpack.c.b16 %v362, %v360
  %v649 = vpack.c.b16 %v363, %v361
  %v650 = vpack.c.b16 %v366, %v364
  %v651 = vpack.c.b16 %v367, %v365
  %v652 = vpack.c.b16 %v370, %v368
  %v653 = vpack.c.b16 %v371, %v369
  %v654 = vpack.c.b16 %v374, %v372
  %v655 = vpack.c.b16 %v375, %v373
  %v656 = vpack.c.b16 %v378, %v376
  %v657 = vpack.c.b16 %v379, %v377
  %v658 = vpack.c.b16 %v382, %v380
  %v659 = vpack.c.b16 %v383, %v381
  %v660 = vpack.c.b16 %v386, %v384
  %v661 = vpack.c.b16 %v387, %v385
  %v662 = vpack.c.b16 %v390, %v388
  %v663 = vpack.c.b16 %v391, %v389
  %v664 = vpack.c.b16 %v394, %v392
  %v665 = vpack.c.b16 %v395, %v393
  %v666 = vpack.c.b16 %v398, %v396
  %v667 = vpack.c.b16 %v399, %v397
  %v668 = vpack.c.b16 %v402, %v400
  %v669 = vpack.c.b16 %v403, %v401
  %v670 = vpack.c.b16 %v406, %v404
  %v671 = vpack.c.b16 %v407, %v405
  %v672 = vpack.c.b16 %v410, %v408
  %v673 = vpack.c.b16 %v411, %v409
  %v674 = vpack.c.b16 %v414, %v412
  %v675 = vpack.c.b16 %v415, %v413
  %v676 = vpack.c.b16 %v418, %v416
  %v677 = vpack.c.b16 %v419, %v417
  %v678 = vpack.c.b16 %v422, %v420
  %v679 = vpack.c.b16 %v423, %v421
  %v680 = vpack.c.b16 %v426, %v424
  %v681 = vpack.c.b16 %v427, %v425
  %v682 = vpack.c.b16 %v430, %v428
  %v683 = vpack.c.b16 %v431, %v429
  %v684 = vpack.c.b16 %v434, %v432
  %v685 = vpack.c.b16 %v435, %v433
  %v686 = vpack.c.b16 %v438, %v436
  %v687 = vpack.c.b16 %v439, %v437
  %v688 = vpack.c.b16 %v442, %v440
  %v689 = vpack.c.b16 %v443, %v441
  %v690 = vpack.c.b16 %v446, %v444
  %v691 = vpack.c.b16 %v447, %v445
  %v692 = vpack.c.b16 %v450, %v448
  %v693 = vpack.c.b16 %v451, %v449
  %v694 = vpack.c.b16 %v454, %v452
  %v695 = vpack.c.b16 %v455, %v453
  %v696 = vpack.c.b16 %v458, %v456
  %v697 = vpack.c.b16 %v459, %v457
  %v698 = vpack.c.b16 %v462, %v460
  %v699 = vpack.c.b16 %v463, %v461
  %v700 = vpack.c.b16 %v466, %v464
  %v701 = vpack.c.b16 %v467, %v465
  %v702 = vpack.c.b16 %v470, %v468
  %v703 = vpack.c.b16 %v471, %v469
  %v704 = vpack.c.b16 %v474, %v472
  %v705 = vpack.c.b16 %v475, %v473
  %v706 = vpack.c.b16 %v478, %v476
  %v707 = vpack.c.b16 %v479, %v477
  %v708 = vpack.c.b16 %v482, %v480
  %v709 = vpack.c.b16 %v483, %v481
  %v710 = vpack.c.b16 %v486, %v484
  %v711 = vpack.c.b16 %v487, %v485
  %v712 = vpack.c.b16 %v490, %v488
  %v713 = vpack.c.b16 %v491, %v489
  %v714 = vpack.c.b16 %v494, %v492
  %v715 = vpack.c.b16 %v495, %v493
  %v716 = vpack.c.b16 %v498, %v496
  %v717 = vpack.c.b16 %v499, %v497
  %v718 = vpack.c.b16 %v502, %v500
  %v719 = vpack.c.b16 %v503, %v501
  %v720 = vpack.c.b16 %v506, %v504
  %v721 = vpack.c.b16 %v507, %v505
  %v722 = vpack.c.b16 %v510, %v508
  %v723 = vpack.c.b16 %v511, %v509
  %v724 = vpack.c.b16 %v514, %v512
  %v725 = vpack.c.b16 %v515, %v513
  %v726 = vpack.c.b16 %v518, %v516
  %v727 = vpack.c.b16 %v519, %v517
  %v728 = vpack.c.b16 %v522, %v520
  %v729 = vpack.c.b16 %v523, %v521
  %v730 = vpack.c.b16 %v526, %v524
  %v731 = vpack.c.b16 %v527, %v525
  %v732 = vpack.c.b16 %v530, %v528
  %v733 = vpack.c.b16 %v531, %v529
  %v734 = vpack.c.b16 %v534, %v532
  %v735 = vpack.c.b16 %v535, %v533
  %v736 = vpack.c.b16 %v538, %v536
  %v737 = vpack.c.b16 %v539, %v537
  %v738 = vpack.c.b16 %v542, %v540
  %v739 = vpack.c.b16 %v543, %v541
  %v740 = vpack.c.b16 %v546, %v544
  %v741 = vpack.c.b16 %v547, %v545
  %v742 = vpack.c.b16 %v550, %v548
  %v743 = vpack.c.b16 %v551, %v549
  %v744 = vpack.c.b16 %v554, %v552
  %v745 = vpack.c.b16 %v555, %v553
  %v746 = vpack.c.b16 %v558, %v556
  %v747 = vpack.c.b16 %v559, %v557
  %v748 = vpack.c.b16 %v562, %v560
  %v749 = vpack.c.b16 %v563, %v561
  %v750 = vpack.c.b16 %v566, %v564
  %v751 = vpack.c.b16 %v567, %v565
  %v752 = vpack.c.b16 %v570, %v568
  %v753 = vpack.c.b16 %v571, %v569
  %v754 = vpack.c.b16 %v574, %v572
  %v755 = vpack.c.b16 %v575, %v573
  %v756 = vpack.c.b16 %v578, %v576
  %v757 = vpack.c.b16 %v579, %v577
  %v758 = vpack.c.b16 %v582, %v580
  %v759 = vpack.c.b16 %v583, %v581
  %v760 = vpack.c.b16 %v586, %v584
  %v761 = vpack.c.b16 %v587, %v585
  %v762 = vpack.c.b16 %v590, %v588
  %v763 = vpack.c.b16 %v591, %v589
  %v764 = vpack.c.b16 %v594, %v592
  %v765 = vpack.c.b16 %v595, %v593
  %v766 = vpack.c.b16 %v598, %v596
  %v767 = vpack.c.b16 %v599, %v597
  %v768 = vpack.c.b16 %v602, %v600
  %v769 = vpack.c.b16 %v603, %v601
  %v770 = vpack.c.b16 %v606, %v604
  %v771 = vpack.c.b16 %v607, %v605
  %v772 = vpack.c.b16 %v610, %v608
  %v773 = vpack.c.b16 %v611, %v609
  %v774 = vpack.c.b16 %v614, %v612
  %v775 = vpack.c.b16 %v615, %v613
  %v776 = vpack.c.b16 %v618, %v616
  %v777 = vpack.c.b16 %v619, %v617
  %v778 = vpack.c.b16 %v622, %v620
  %v779 = vpack.c.b16 %v623, %v621
  %v780 = vpack.c.b16 %v626, %v624
  %v781 = vpack.c.b16 %v627, %v625
  %v782 = vpack.c.b16 %v630, %v628
  %v783 = vpack.c.b16 %v631, %v629
  %v784 = vpack.c.b16 %v634, %v632
  %v785 = vpack.c.b16 %v635, %v633
  %v786 = vpack.c.b16 %v638, %v636
  %v787 = vpack.c.b16 %v639, %v637
  %v788 = vpack.c.b16 %v642, %v640
  %v789 = vpack.c.b16 %v643, %v641
  %v790 = vpack.c.b16 %v646, %v644
  %v791 = vpack.c.b16 %v647, %v645
  %v968 = vunpack.c.l.b16 %v177
  %v969 = vunpack.c.l.b16 %v178
  %v970 = vunpack.c.l.b16 %v179
  %v971 = vunpack.c.l.b16 %v180
  %v972 = vunpack.c.l.b16 %v181
  %v973 = vunpack.c.l.b16 %v182
  %v974 = vunpack.c.l.b16 %v183
  %v975 = vunpack.c.l.b16 %v184
  %v976 = vunpack.c.l.b16 %v185
  %v977 = vunpack.c.l.b16 %v186
  %v978 = vunpack.c.l.b16 %v187
  %v979 = vunpack.c.l.b16 %v188
  %v980 = vunpack.c.l.b16 %v189
  %v981 = vunpack.c.l.b16 %v190
  %v982 = vunpack.c.l.b16 %v191
  %v983 = vunpack.c.l.b16 %v192
  %v984 = vunpack.c.l.b16 %v193
  %v985 = vunpack.c.l.b16 %v194
  %v986 = vunpack.c.l.b16 %v195
  %v987 = vunpack.c.l.b16 %v196
  %v988 = vunpack.c.l.b16 %v197
  %v989 = vunpack.c.l.b16 %v198
  %v990 = vunpack.c.l.b16 %v199
  %v991 = vunpack.c.l.b16 %v200
  %v992 = vunpack.c.l.b16 %v201
  %v993 = vunpack.c.l.b16 %v202
  %v994 = vunpack.c.l.b16 %v203
  %v995 = vunpack.c.l.b16 %v204
  %v996 = vunpack.c.l.b16 %v205
  %v997 = vunpack.c.l.b16 %v206
  %v998 = vunpack.c.l.b16 %v207
  %v999 = vunpack.c.l.b16 %v208
  %v1000 = vpack.c.b16 %v969, %v968
  %v1001 = vpack.c.b16 %v971, %v970
  %v1002 = vpack.c.b16 %v973, %v972
  %v1003 = vpack.c.b16 %v975, %v974
  %v1004 = vpack.c.b16 %v977, %v976
  %v1005 = vpack.c.b16 %v979, %v978
  %v1006 = vpack.c.b16 %v981, %v980
  %v1007 = vpack.c.b16 %v983, %v982
  %v1008 = vpack.c.b16 %v985, %v984
  %v1009 = vpack.c.b16 %v987, %v986
  %v1010 = vpack.c.b16 %v989, %v988
  %v1011 = vpack.c.b16 %v991, %v990
  %v1012 = vpack.c.b16 %v993, %v992
  %v1013 = vpack.c.b16 %v995, %v994
  %v1014 = vpack.c.b16 %v997, %v996
  %v1015 = vpack.c.b16 %v999, %v998
  %1032 = vmatprep.subr.bf16.mxu0 0
  %1033 = vmatpush1.bf16.msra.mxu0 %v1000
  %1034 = vmatprep.subr.bf16.mxu0 0
  %1035 = vmatpush1.bf16.msra.mxu0 %v1001
  %1036 = vmatprep.subr.bf16.mxu0 0
  %1037 = vmatpush1.bf16.msra.mxu0 %v1002
  %1038 = vmatprep.subr.bf16.mxu0 0
  %1039 = vmatpush1.bf16.msra.mxu0 %v1003
  %1040 = vmatprep.subr.bf16.mxu0 0
  %1041 = vmatpush1.bf16.msra.mxu0 %v1004
  %1042 = vmatprep.subr.bf16.mxu0 0
  %1043 = vmatpush1.bf16.msra.mxu0 %v1005
  %1044 = vmatprep.subr.bf16.mxu0 0
  %1045 = vmatpush1.bf16.msra.mxu0 %v1006
  %1046 = vmatprep.subr.bf16.mxu0 0
  %1047 = vmatpush1.bf16.msra.mxu0 %v1007
  %1048 = vmatprep.subr.bf16.mxu0 0
  %1049 = vmatpush1.bf16.msra.mxu0 %v1008
  %1050 = vmatprep.subr.bf16.mxu0 0
  %1051 = vmatpush1.bf16.msra.mxu0 %v1009
  %1052 = vmatprep.subr.bf16.mxu0 0
  %1053 = vmatpush1.bf16.msra.mxu0 %v1010
  %1054 = vmatprep.subr.bf16.mxu0 0
  %1055 = vmatpush1.bf16.msra.mxu0 %v1011
  %1056 = vmatprep.subr.bf16.mxu0 0
  %1057 = vmatpush1.bf16.msra.mxu0 %v1012
  %1058 = vmatprep.subr.bf16.mxu0 0
  %1059 = vmatpush1.bf16.msra.mxu0 %v1013
  %1060 = vmatprep.subr.bf16.mxu0 0
  %1061 = vmatpush1.bf16.msra.mxu0 %v1014
  %1062 = vmatprep.subr.bf16.mxu0 0
  %1063 = vmatpush1.bf16.msra.mxu0 %v1015
  %1064 = vmatprep.mubr.bf16.mxu0 %v649
  %1065 = vmatmul.mubr.bf16.gmra.mrb[0].mxu0 %v648
  %v1066 = vpop.f32.mrb[0].mxu0
  %v1067 = vadd.f32 %v214, %v1066
  %v1068 = vpop.f32.mrb[0].mxu0
  %v1069 = vpop.f32.mrb[0].mxu0
  %v1070 = vadd.f32 %v214, %v1069
  %v1071 = vpop.f32.mrb[0].mxu0
  %1072 = vmatprep.mubr.bf16.mxu0 %v651
  %1073 = vmatmul.mubr.bf16.gmra.mrb[0].mxu0 %v650
  %v1074 = vpop.f32.mrb[0].mxu0
  %v1075 = vadd.f32 %v214, %v1074
  %v1076 = vpop.f32.mrb[0].mxu0
  %v1077 = vpop.f32.mrb[0].mxu0
  %v1078 = vadd.f32 %v214, %v1077
  %v1079 = vpop.f32.mrb[0].mxu0
  %1080 = vmatprep.mubr.bf16.mxu0 %v653
  %1081 = vmatmul.mubr.bf16.gmra.mrb[0].mxu0 %v652
  %v1082 = vpop.f32.mrb[0].mxu0
  %v1083 = vadd.f32 %v214, %v1082
  %v1084 = vpop.f32.mrb[0].mxu0
  %v1085 = vpop.f32.mrb[0].mxu0
  %v1086 = vadd.f32 %v214, %v1085
  %v1087 = vpop.f32.mrb[0].mxu0
  %1088 = vmatprep.mubr.bf16.mxu0 %v655
  %1089 = vmatmul.mubr.bf16.gmra.mrb[0].mxu0 %v654
  %v1090 = vpop.f32.mrb[0].mxu0
  %v1091 = vadd.f32 %v214, %v1090
  %v1092 = vpop.f32.mrb[0].mxu0
  %v1093 = vpop.f32.mrb[0].mxu0
  %v1094 = vadd.f32 %v214, %v1093
  %v1095 = vpop.f32.mrb[0].mxu0
  %1096 = vmatprep.mubr.bf16.mxu0 %v657
  %1097 = vmatmul.mubr.bf16.gmra.mrb[0].mxu0 %v656
  %v1098 = vpop.f32.mrb[0].mxu0
  %v1099 = vadd.f32 %v214, %v1098
  %v1100 = vpop.f32.mrb[0].mxu0
  %v1101 = vpop.f32.mrb[0].mxu0
  %v1102 = vadd.f32 %v214, %v1101
  %v1103 = vpop.f32.mrb[0].mxu0
  %1104 = vmatprep.mubr.bf16.mxu0 %v659
  %1105 = vmatmul.mubr.bf16.gmra.mrb[0].mxu0 %v658
  %v1106 = vpop.f32.mrb[0].mxu0
  %v1107 = vadd.f32 %v214, %v1106
  %v1108 = vpop.f32.mrb[0].mxu0
  %v1109 = vpop.f32.mrb[0].mxu0
  %v1110 = vadd.f32 %v214, %v1109
  %v1111 = vpop.f32.mrb[0].mxu0
  %1112 = vmatprep.mubr.bf16.mxu0 %v661
  %1113 = vmatmul.mubr.bf16.gmra.mrb[0].mxu0 %v660
  %v1114 = vpop.f32.mrb[0].mxu0
  %v1115 = vadd.f32 %v214, %v1114
  %v1116 = vpop.f32.mrb[0].mxu0
  %v1117 = vpop.f32.mrb[0].mxu0
  %v1118 = vadd.f32 %v214, %v1117
  %v1119 = vpop.f32.mrb[0].mxu0
  %1120 = vmatprep.mubr.bf16.mxu0 %v663
  %1121 = vmatmul.mubr.bf16.gmra.mrb[0].mxu0 %v662
  %v1122 = vpop.f32.mrb[0].mxu0
  %v1123 = vadd.f32 %v214, %v1122
  %v1124 = vpop.f32.mrb[0].mxu0
  %v1125 = vpop.f32.mrb[0].mxu0
  %v1126 = vadd.f32 %v214, %v1125
  %v1127 = vpop.f32.mrb[0].mxu0
  %1128 = vmatprep.mubr.bf16.mxu0 %v665
  %1129 = vmatmul.mubr.bf16.gmra.mrb[0].mxu0 %v664
  %v1130 = vpop.f32.mrb[0].mxu0
  %v1131 = vadd.f32 %v214, %v1130
  %v1132 = vpop.f32.mrb[0].mxu0
  %v1133 = vpop.f32.mrb[0].mxu0
  %v1134 = vadd.f32 %v214, %v1133
  %v1135 = vpop.f32.mrb[0].mxu0
  %1136 = vmatprep.mubr.bf16.mxu0 %v667
  %1137 = vmatmul.mubr.bf16.gmra.mrb[0].mxu0 %v666
  %v1138 = vpop.f32.mrb[0].mxu0
  %v1139 = vadd.f32 %v214, %v1138
  %v1140 = vpop.f32.mrb[0].mxu0
  %v1141 = vpop.f32.mrb[0].mxu0
  %v1142 = vadd.f32 %v214, %v1141
  %v1143 = vpop.f32.mrb[0].mxu0
  %1144 = vmatprep.mubr.bf16.mxu0 %v669
  %1145 = vmatmul.mubr.bf16.gmra.mrb[0].mxu0 %v668
  %v1146 = vpop.f32.mrb[0].mxu0
  %v1147 = vadd.f32 %v214, %v1146
  %v1148 = vpop.f32.mrb[0].mxu0
  %v1149 = vpop.f32.mrb[0].mxu0
  %v1150 = vadd.f32 %v214, %v1149
  %v1151 = vpop.f32.mrb[0].mxu0
  %1152 = vmatprep.mubr.bf16.mxu0 %v671
  %1153 = vmatmul.mubr.bf16.gmra.mrb[0].mxu0 %v670
  %v1154 = vpop.f32.mrb[0].mxu0
  %v1155 = vadd.f32 %v214, %v1154
  %v1156 = vpop.f32.mrb[0].mxu0
  %v1157 = vpop.f32.mrb[0].mxu0
  %v1158 = vadd.f32 %v214, %v1157
  %v1159 = vpop.f32.mrb[0].mxu0
  %1160 = vmatprep.mubr.bf16.mxu0 %v673
  %1161 = vmatmul.mubr.bf16.gmra.mrb[0].mxu0 %v672
  %v1162 = vpop.f32.mrb[0].mxu0
  %v1163 = vadd.f32 %v214, %v1162
  %v1164 = vpop.f32.mrb[0].mxu0
  %v1165 = vpop.f32.mrb[0].mxu0
  %v1166 = vadd.f32 %v214, %v1165
  %v1167 = vpop.f32.mrb[0].mxu0
  %1168 = vmatprep.mubr.bf16.mxu0 %v675
  %1169 = vmatmul.mubr.bf16.gmra.mrb[0].mxu0 %v674
  %v1170 = vpop.f32.mrb[0].mxu0
  %v1171 = vadd.f32 %v214, %v1170
  %v1172 = vpop.f32.mrb[0].mxu0
  %v1173 = vpop.f32.mrb[0].mxu0
  %v1174 = vadd.f32 %v214, %v1173
  %v1175 = vpop.f32.mrb[0].mxu0
  %1176 = vmatprep.mubr.bf16.mxu0 %v677
  %1177 = vmatmul.mubr.bf16.gmra.mrb[0].mxu0 %v676
  %v1178 = vpop.f32.mrb[0].mxu0
  %v1179 = vadd.f32 %v214, %v1178
  %v1180 = vpop.f32.mrb[0].mxu0
  %v1181 = vpop.f32.mrb[0].mxu0
  %v1182 = vadd.f32 %v214, %v1181
  %v1183 = vpop.f32.mrb[0].mxu0
  %1184 = vmatprep.mubr.bf16.mxu0 %v679
  %1185 = vmatmul.mubr.bf16.gmra.mrb[0].mxu0 %v678
  %v1186 = vpop.f32.mrb[0].mxu0
  %v1187 = vadd.f32 %v214, %v1186
  %v1188 = vpop.f32.mrb[0].mxu0
  %v1189 = vpop.f32.mrb[0].mxu0
  %v1190 = vadd.f32 %v214, %v1189
  %v1191 = vpop.f32.mrb[0].mxu0
  %1192 = vmatprep.mubr.bf16.mxu0 %v681
  %1193 = vmatmul.mubr.bf16.gmra.mrb[0].mxu0 %v680
  %v1194 = vpop.f32.mrb[0].mxu0
  %v1195 = vadd.f32 %v214, %v1194
  %v1196 = vpop.f32.mrb[0].mxu0
  %v1197 = vpop.f32.mrb[0].mxu0
  %v1198 = vadd.f32 %v214, %v1197
  %v1199 = vpop.f32.mrb[0].mxu0
  %1200 = vmatprep.mubr.bf16.mxu0 %v683
  %1201 = vmatmul.mubr.bf16.gmra.mrb[0].mxu0 %v682
  %v1202 = vpop.f32.mrb[0].mxu0
  %v1203 = vadd.f32 %v214, %v1202
  %v1204 = vpop.f32.mrb[0].mxu0
  %v1205 = vpop.f32.mrb[0].mxu0
  %v1206 = vadd.f32 %v214, %v1205
  %v1207 = vpop.f32.mrb[0].mxu0
  %1208 = vmatprep.mubr.bf16.mxu0 %v685
  %1209 = vmatmul.mubr.bf16.gmra.mrb[0].mxu0 %v684
  %v1210 = vpop.f32.mrb[0].mxu0
  %v1211 = vadd.f32 %v214, %v1210
  %v1212 = vpop.f32.mrb[0].mxu0
  %v1213 = vpop.f32.mrb[0].mxu0
  %v1214 = vadd.f32 %v214, %v1213
  %v1215 = vpop.f32.mrb[0].mxu0
  %1216 = vmatprep.mubr.bf16.mxu0 %v687
  %1217 = vmatmul.mubr.bf16.gmra.mrb[0].mxu0 %v686
  %v1218 = vpop.f32.mrb[0].mxu0
  %v1219 = vadd.f32 %v214, %v1218
  %v1220 = vpop.f32.mrb[0].mxu0
  %v1221 = vpop.f32.mrb[0].mxu0
  %v1222 = vadd.f32 %v214, %v1221
  %v1223 = vpop.f32.mrb[0].mxu0
  %1224 = vmatprep.mubr.bf16.mxu0 %v689
  %1225 = vmatmul.mubr.bf16.gmra.mrb[0].mxu0 %v688
  %v1226 = vpop.f32.mrb[0].mxu0
  %v1227 = vadd.f32 %v214, %v1226
  %v1228 = vpop.f32.mrb[0].mxu0
  %v1229 = vpop.f32.mrb[0].mxu0
  %v1230 = vadd.f32 %v214, %v1229
  %v1231 = vpop.f32.mrb[0].mxu0
  %1232 = vmatprep.mubr.bf16.mxu0 %v691
  %1233 = vmatmul.mubr.bf16.gmra.mrb[0].mxu0 %v690
  %v1234 = vpop.f32.mrb[0].mxu0
  %v1235 = vadd.f32 %v214, %v1234
  %v1236 = vpop.f32.mrb[0].mxu0
  %v1237 = vpop.f32.mrb[0].mxu0
  %v1238 = vadd.f32 %v214, %v1237
  %v1239 = vpop.f32.mrb[0].mxu0
  %1240 = vmatprep.mubr.bf16.mxu0 %v693
  %1241 = vmatmul.mubr.bf16.gmra.mrb[0].mxu0 %v692
  %v1242 = vpop.f32.mrb[0].mxu0
  %v1243 = vadd.f32 %v214, %v1242
  %v1244 = vpop.f32.mrb[0].mxu0
  %v1245 = vpop.f32.mrb[0].mxu0
  %v1246 = vadd.f32 %v214, %v1245
  %v1247 = vpop.f32.mrb[0].mxu0
  %1248 = vmatprep.mubr.bf16.mxu0 %v695
  %1249 = vmatmul.mubr.bf16.gmra.mrb[0].mxu0 %v694
  %v1250 = vpop.f32.mrb[0].mxu0
  %v1251 = vadd.f32 %v214, %v1250
  %v1252 = vpop.f32.mrb[0].mxu0
  %v1253 = vpop.f32.mrb[0].mxu0
  %v1254 = vadd.f32 %v214, %v1253
  %v1255 = vpop.f32.mrb[0].mxu0
  %1256 = vmatprep.mubr.bf16.mxu0 %v697
  %1257 = vmatmul.mubr.bf16.gmra.mrb[0].mxu0 %v696
  %v1258 = vpop.f32.mrb[0].mxu0
  %v1259 = vadd.f32 %v214, %v1258
  %v1260 = vpop.f32.mrb[0].mxu0
  %v1261 = vpop.f32.mrb[0].mxu0
  %v1262 = vadd.f32 %v214, %v1261
  %v1263 = vpop.f32.mrb[0].mxu0
  %1264 = vmatprep.mubr.bf16.mxu0 %v699
  %1265 = vmatmul.mubr.bf16.gmra.mrb[0].mxu0 %v698
  %v1266 = vpop.f32.mrb[0].mxu0
  %v1267 = vadd.f32 %v214, %v1266
  %v1268 = vpop.f32.mrb[0].mxu0
  %v1269 = vpop.f32.mrb[0].mxu0
  %v1270 = vadd.f32 %v214, %v1269
  %v1271 = vpop.f32.mrb[0].mxu0
  %1272 = vmatprep.mubr.bf16.mxu0 %v701
  %1273 = vmatmul.mubr.bf16.gmra.mrb[0].mxu0 %v700
  %v1274 = vpop.f32.mrb[0].mxu0
  %v1275 = vadd.f32 %v214, %v1274
  %v1276 = vpop.f32.mrb[0].mxu0
  %v1277 = vpop.f32.mrb[0].mxu0
  %v1278 = vadd.f32 %v214, %v1277
  %v1279 = vpop.f32.mrb[0].mxu0
  %1280 = vmatprep.mubr.bf16.mxu0 %v703
  %1281 = vmatmul.mubr.bf16.gmra.mrb[0].mxu0 %v702
  %v1282 = vpop.f32.mrb[0].mxu0
  %v1283 = vadd.f32 %v214, %v1282
  %v1284 = vpop.f32.mrb[0].mxu0
  %v1285 = vpop.f32.mrb[0].mxu0
  %v1286 = vadd.f32 %v214, %v1285
  %v1287 = vpop.f32.mrb[0].mxu0
  %1288 = vmatprep.mubr.bf16.mxu0 %v705
  %1289 = vmatmul.mubr.bf16.gmra.mrb[0].mxu0 %v704
  %v1290 = vpop.f32.mrb[0].mxu0
  %v1291 = vadd.f32 %v214, %v1290
  %v1292 = vpop.f32.mrb[0].mxu0
  %v1293 = vpop.f32.mrb[0].mxu0
  %v1294 = vadd.f32 %v214, %v1293
  %v1295 = vpop.f32.mrb[0].mxu0
  %1296 = vmatprep.mubr.bf16.mxu0 %v707
  %1297 = vmatmul.mubr.bf16.gmra.mrb[0].mxu0 %v706
  %v1298 = vpop.f32.mrb[0].mxu0
  %v1299 = vadd.f32 %v214, %v1298
  %v1300 = vpop.f32.mrb[0].mxu0
  %v1301 = vpop.f32.mrb[0].mxu0
  %v1302 = vadd.f32 %v214, %v1301
  %v1303 = vpop.f32.mrb[0].mxu0
  %1304 = vmatprep.mubr.bf16.mxu0 %v709
  %1305 = vmatmul.mubr.bf16.gmra.mrb[0].mxu0 %v708
  %v1306 = vpop.f32.mrb[0].mxu0
  %v1307 = vadd.f32 %v214, %v1306
  %v1308 = vpop.f32.mrb[0].mxu0
  %v1309 = vpop.f32.mrb[0].mxu0
  %v1310 = vadd.f32 %v214, %v1309
  %v1311 = vpop.f32.mrb[0].mxu0
  %1312 = vmatprep.mubr.bf16.mxu0 %v711
  %1313 = vmatmul.mubr.bf16.gmra.mrb[0].mxu0 %v710
  %v1314 = vpop.f32.mrb[0].mxu0
  %v1315 = vadd.f32 %v214, %v1314
  %v1316 = vpop.f32.mrb[0].mxu0
  %v1317 = vpop.f32.mrb[0].mxu0
  %v1318 = vadd.f32 %v214, %v1317
  %v1319 = vpop.f32.mrb[0].mxu0
  %1320 = vmatprep.mubr.bf16.mxu0 %v713
  %1321 = vmatmul.mubr.bf16.gmra.mrb[0].mxu0 %v712
  %v1322 = vpop.f32.mrb[0].mxu0
  %v1323 = vadd.f32 %v214, %v1322
  %v1324 = vpop.f32.mrb[0].mxu0
  %v1325 = vpop.f32.mrb[0].mxu0
  %v1326 = vadd.f32 %v214, %v1325
  %v1327 = vpop.f32.mrb[0].mxu0
  %1328 = vmatprep.mubr.bf16.mxu0 %v715
  %1329 = vmatmul.mubr.bf16.gmra.mrb[0].mxu0 %v714
  %v1330 = vpop.f32.mrb[0].mxu0
  %v1331 = vadd.f32 %v214, %v1330
  %v1332 = vpop.f32.mrb[0].mxu0
  %v1333 = vpop.f32.mrb[0].mxu0
  %v1334 = vadd.f32 %v214, %v1333
  %v1335 = vpop.f32.mrb[0].mxu0
  %1336 = vmatprep.mubr.bf16.mxu0 %v717
  %1337 = vmatmul.mubr.bf16.gmra.mrb[0].mxu0 %v716
  %v1338 = vpop.f32.mrb[0].mxu0
  %v1339 = vadd.f32 %v214, %v1338
  %v1340 = vpop.f32.mrb[0].mxu0
  %v1341 = vpop.f32.mrb[0].mxu0
  %v1342 = vadd.f32 %v214, %v1341
  %v1343 = vpop.f32.mrb[0].mxu0
  %1344 = vmatprep.mubr.bf16.mxu0 %v719
  %1345 = vmatmul.mubr.bf16.gmra.mrb[0].mxu0 %v718
  %v1346 = vpop.f32.mrb[0].mxu0
  %v1347 = vadd.f32 %v214, %v1346
  %v1348 = vpop.f32.mrb[0].mxu0
  %v1349 = vpop.f32.mrb[0].mxu0
  %v1350 = vadd.f32 %v214, %v1349
  %v1351 = vpop.f32.mrb[0].mxu0
  %1352 = vmatprep.mubr.bf16.mxu0 %v721
  %1353 = vmatmul.mubr.bf16.gmra.mrb[0].mxu0 %v720
  %v1354 = vpop.f32.mrb[0].mxu0
  %v1355 = vadd.f32 %v214, %v1354
  %v1356 = vpop.f32.mrb[0].mxu0
  %v1357 = vpop.f32.mrb[0].mxu0
  %v1358 = vadd.f32 %v214, %v1357
  %v1359 = vpop.f32.mrb[0].mxu0
  %1360 = vmatprep.mubr.bf16.mxu0 %v723
  %1361 = vmatmul.mubr.bf16.gmra.mrb[0].mxu0 %v722
  %v1362 = vpop.f32.mrb[0].mxu0
  %v1363 = vadd.f32 %v214, %v1362
  %v1364 = vpop.f32.mrb[0].mxu0
  %v1365 = vpop.f32.mrb[0].mxu0
  %v1366 = vadd.f32 %v214, %v1365
  %v1367 = vpop.f32.mrb[0].mxu0
  %1368 = vmatprep.mubr.bf16.mxu0 %v725
  %1369 = vmatmul.mubr.bf16.gmra.mrb[0].mxu0 %v724
  %v1370 = vpop.f32.mrb[0].mxu0
  %v1371 = vadd.f32 %v214, %v1370
  %v1372 = vpop.f32.mrb[0].mxu0
  %v1373 = vpop.f32.mrb[0].mxu0
  %v1374 = vadd.f32 %v214, %v1373
  %v1375 = vpop.f32.mrb[0].mxu0
  %1376 = vmatprep.mubr.bf16.mxu0 %v727
  %1377 = vmatmul.mubr.bf16.gmra.mrb[0].mxu0 %v726
  %v1378 = vpop.f32.mrb[0].mxu0
  %v1379 = vadd.f32 %v214, %v1378
  %v1380 = vpop.f32.mrb[0].mxu0
  %v1381 = vpop.f32.mrb[0].mxu0
  %v1382 = vadd.f32 %v214, %v1381
  %v1383 = vpop.f32.mrb[0].mxu0
  %1384 = vmatprep.mubr.bf16.mxu0 %v729
  %1385 = vmatmul.mubr.bf16.gmra.mrb[0].mxu0 %v728
  %v1386 = vpop.f32.mrb[0].mxu0
  %v1387 = vadd.f32 %v214, %v1386
  %v1388 = vpop.f32.mrb[0].mxu0
  %v1389 = vpop.f32.mrb[0].mxu0
  %v1390 = vadd.f32 %v214, %v1389
  %v1391 = vpop.f32.mrb[0].mxu0
  %1392 = vmatprep.mubr.bf16.mxu0 %v731
  %1393 = vmatmul.mubr.bf16.gmra.mrb[0].mxu0 %v730
  %v1394 = vpop.f32.mrb[0].mxu0
  %v1395 = vadd.f32 %v214, %v1394
  %v1396 = vpop.f32.mrb[0].mxu0
  %v1397 = vpop.f32.mrb[0].mxu0
  %v1398 = vadd.f32 %v214, %v1397
  %v1399 = vpop.f32.mrb[0].mxu0
  %1400 = vmatprep.mubr.bf16.mxu0 %v733
  %1401 = vmatmul.mubr.bf16.gmra.mrb[0].mxu0 %v732
  %v1402 = vpop.f32.mrb[0].mxu0
  %v1403 = vadd.f32 %v214, %v1402
  %v1404 = vpop.f32.mrb[0].mxu0
  %v1405 = vpop.f32.mrb[0].mxu0
  %v1406 = vadd.f32 %v214, %v1405
  %v1407 = vpop.f32.mrb[0].mxu0
  %1408 = vmatprep.mubr.bf16.mxu0 %v735
  %1409 = vmatmul.mubr.bf16.gmra.mrb[0].mxu0 %v734
  %v1410 = vpop.f32.mrb[0].mxu0
  %v1411 = vadd.f32 %v214, %v1410
  %v1412 = vpop.f32.mrb[0].mxu0
  %v1413 = vpop.f32.mrb[0].mxu0
  %v1414 = vadd.f32 %v214, %v1413
  %v1415 = vpop.f32.mrb[0].mxu0
  %1416 = vmatprep.mubr.bf16.mxu0 %v737
  %1417 = vmatmul.mubr.bf16.gmra.mrb[0].mxu0 %v736
  %v1418 = vpop.f32.mrb[0].mxu0
  %v1419 = vadd.f32 %v214, %v1418
  %v1420 = vpop.f32.mrb[0].mxu0
  %v1421 = vpop.f32.mrb[0].mxu0
  %v1422 = vadd.f32 %v214, %v1421
  %v1423 = vpop.f32.mrb[0].mxu0
  %1424 = vmatprep.mubr.bf16.mxu0 %v739
  %1425 = vmatmul.mubr.bf16.gmra.mrb[0].mxu0 %v738
  %v1426 = vpop.f32.mrb[0].mxu0
  %v1427 = vadd.f32 %v214, %v1426
  %v1428 = vpop.f32.mrb[0].mxu0
  %v1429 = vpop.f32.mrb[0].mxu0
  %v1430 = vadd.f32 %v214, %v1429
  %v1431 = vpop.f32.mrb[0].mxu0
  %1432 = vmatprep.mubr.bf16.mxu0 %v741
  %1433 = vmatmul.mubr.bf16.gmra.mrb[0].mxu0 %v740
  %v1434 = vpop.f32.mrb[0].mxu0
  %v1435 = vadd.f32 %v214, %v1434
  %v1436 = vpop.f32.mrb[0].mxu0
  %v1437 = vpop.f32.mrb[0].mxu0
  %v1438 = vadd.f32 %v214, %v1437
  %v1439 = vpop.f32.mrb[0].mxu0
  %1440 = vmatprep.mubr.bf16.mxu0 %v743
  %1441 = vmatmul.mubr.bf16.gmra.mrb[0].mxu0 %v742
  %v1442 = vpop.f32.mrb[0].mxu0
  %v1443 = vadd.f32 %v214, %v1442
  %v1444 = vpop.f32.mrb[0].mxu0
  %v1445 = vpop.f32.mrb[0].mxu0
  %v1446 = vadd.f32 %v214, %v1445
  %v1447 = vpop.f32.mrb[0].mxu0
  %1448 = vmatprep.mubr.bf16.mxu0 %v745
  %1449 = vmatmul.mubr.bf16.gmra.mrb[0].mxu0 %v744
  %v1450 = vpop.f32.mrb[0].mxu0
  %v1451 = vadd.f32 %v214, %v1450
  %v1452 = vpop.f32.mrb[0].mxu0
  %v1453 = vpop.f32.mrb[0].mxu0
  %v1454 = vadd.f32 %v214, %v1453
  %v1455 = vpop.f32.mrb[0].mxu0
  %1456 = vmatprep.mubr.bf16.mxu0 %v747
  %1457 = vmatmul.mubr.bf16.gmra.mrb[0].mxu0 %v746
  %v1458 = vpop.f32.mrb[0].mxu0
  %v1459 = vadd.f32 %v214, %v1458
  %v1460 = vpop.f32.mrb[0].mxu0
  %v1461 = vpop.f32.mrb[0].mxu0
  %v1462 = vadd.f32 %v214, %v1461
  %v1463 = vpop.f32.mrb[0].mxu0
  %1464 = vmatprep.mubr.bf16.mxu0 %v749
  %1465 = vmatmul.mubr.bf16.gmra.mrb[0].mxu0 %v748
  %v1466 = vpop.f32.mrb[0].mxu0
  %v1467 = vadd.f32 %v214, %v1466
  %v1468 = vpop.f32.mrb[0].mxu0
  %v1469 = vpop.f32.mrb[0].mxu0
  %v1470 = vadd.f32 %v214, %v1469
  %v1471 = vpop.f32.mrb[0].mxu0
  %1472 = vmatprep.mubr.bf16.mxu0 %v751
  %1473 = vmatmul.mubr.bf16.gmra.mrb[0].mxu0 %v750
  %v1474 = vpop.f32.mrb[0].mxu0
  %v1475 = vadd.f32 %v214, %v1474
  %v1476 = vpop.f32.mrb[0].mxu0
  %v1477 = vpop.f32.mrb[0].mxu0
  %v1478 = vadd.f32 %v214, %v1477
  %v1479 = vpop.f32.mrb[0].mxu0
  %1480 = vmatprep.mubr.bf16.mxu0 %v753
  %1481 = vmatmul.mubr.bf16.gmra.mrb[0].mxu0 %v752
  %v1482 = vpop.f32.mrb[0].mxu0
  %v1483 = vadd.f32 %v214, %v1482
  %v1484 = vpop.f32.mrb[0].mxu0
  %v1485 = vpop.f32.mrb[0].mxu0
  %v1486 = vadd.f32 %v214, %v1485
  %v1487 = vpop.f32.mrb[0].mxu0
  %1488 = vmatprep.mubr.bf16.mxu0 %v755
  %1489 = vmatmul.mubr.bf16.gmra.mrb[0].mxu0 %v754
  %v1490 = vpop.f32.mrb[0].mxu0
  %v1491 = vadd.f32 %v214, %v1490
  %v1492 = vpop.f32.mrb[0].mxu0
  %v1493 = vpop.f32.mrb[0].mxu0
  %v1494 = vadd.f32 %v214, %v1493
  %v1495 = vpop.f32.mrb[0].mxu0
  %1496 = vmatprep.mubr.bf16.mxu0 %v757
  %1497 = vmatmul.mubr.bf16.gmra.mrb[0].mxu0 %v756
  %v1498 = vpop.f32.mrb[0].mxu0
  %v1499 = vadd.f32 %v214, %v1498
  %v1500 = vpop.f32.mrb[0].mxu0
  %v1501 = vpop.f32.mrb[0].mxu0
  %v1502 = vadd.f32 %v214, %v1501
  %v1503 = vpop.f32.mrb[0].mxu0
  %1504 = vmatprep.mubr.bf16.mxu0 %v759
  %1505 = vmatmul.mubr.bf16.gmra.mrb[0].mxu0 %v758
  %v1506 = vpop.f32.mrb[0].mxu0
  %v1507 = vadd.f32 %v214, %v1506
  %v1508 = vpop.f32.mrb[0].mxu0
  %v1509 = vpop.f32.mrb[0].mxu0
  %v1510 = vadd.f32 %v214, %v1509
  %v1511 = vpop.f32.mrb[0].mxu0
  %1512 = vmatprep.mubr.bf16.mxu0 %v761
  %1513 = vmatmul.mubr.bf16.gmra.mrb[0].mxu0 %v760
  %v1514 = vpop.f32.mrb[0].mxu0
  %v1515 = vadd.f32 %v214, %v1514
  %v1516 = vpop.f32.mrb[0].mxu0
  %v1517 = vpop.f32.mrb[0].mxu0
  %v1518 = vadd.f32 %v214, %v1517
  %v1519 = vpop.f32.mrb[0].mxu0
  %1520 = vmatprep.mubr.bf16.mxu0 %v763
  %1521 = vmatmul.mubr.bf16.gmra.mrb[0].mxu0 %v762
  %v1522 = vpop.f32.mrb[0].mxu0
  %v1523 = vadd.f32 %v214, %v1522
  %v1524 = vpop.f32.mrb[0].mxu0
  %v1525 = vpop.f32.mrb[0].mxu0
  %v1526 = vadd.f32 %v214, %v1525
  %v1527 = vpop.f32.mrb[0].mxu0
  %1528 = vmatprep.mubr.bf16.mxu0 %v765
  %1529 = vmatmul.mubr.bf16.gmra.mrb[0].mxu0 %v764
  %v1530 = vpop.f32.mrb[0].mxu0
  %v1531 = vadd.f32 %v214, %v1530
  %v1532 = vpop.f32.mrb[0].mxu0
  %v1533 = vpop.f32.mrb[0].mxu0
  %v1534 = vadd.f32 %v214, %v1533
  %v1535 = vpop.f32.mrb[0].mxu0
  %1536 = vmatprep.mubr.bf16.mxu0 %v767
  %1537 = vmatmul.mubr.bf16.gmra.mrb[0].mxu0 %v766
  %v1538 = vpop.f32.mrb[0].mxu0
  %v1539 = vadd.f32 %v214, %v1538
  %v1540 = vpop.f32.mrb[0].mxu0
  %v1541 = vpop.f32.mrb[0].mxu0
  %v1542 = vadd.f32 %v214, %v1541
  %v1543 = vpop.f32.mrb[0].mxu0
  %1544 = vmatprep.mubr.bf16.mxu0 %v769
  %1545 = vmatmul.mubr.bf16.gmra.mrb[0].mxu0 %v768
  %v1546 = vpop.f32.mrb[0].mxu0
  %v1547 = vadd.f32 %v214, %v1546
  %v1548 = vpop.f32.mrb[0].mxu0
  %v1549 = vpop.f32.mrb[0].mxu0
  %v1550 = vadd.f32 %v214, %v1549
  %v1551 = vpop.f32.mrb[0].mxu0
  %1552 = vmatprep.mubr.bf16.mxu0 %v771
  %1553 = vmatmul.mubr.bf16.gmra.mrb[0].mxu0 %v770
  %v1554 = vpop.f32.mrb[0].mxu0
  %v1555 = vadd.f32 %v214, %v1554
  %v1556 = vpop.f32.mrb[0].mxu0
  %v1557 = vpop.f32.mrb[0].mxu0
  %v1558 = vadd.f32 %v214, %v1557
  %v1559 = vpop.f32.mrb[0].mxu0
  %1560 = vmatprep.mubr.bf16.mxu0 %v773
  %1561 = vmatmul.mubr.bf16.gmra.mrb[0].mxu0 %v772
  %v1562 = vpop.f32.mrb[0].mxu0
  %v1563 = vadd.f32 %v214, %v1562
  %v1564 = vpop.f32.mrb[0].mxu0
  %v1565 = vpop.f32.mrb[0].mxu0
  %v1566 = vadd.f32 %v214, %v1565
  %v1567 = vpop.f32.mrb[0].mxu0
  %1568 = vmatprep.mubr.bf16.mxu0 %v775
  %1569 = vmatmul.mubr.bf16.gmra.mrb[0].mxu0 %v774
  %v1570 = vpop.f32.mrb[0].mxu0
  %v1571 = vadd.f32 %v214, %v1570
  %v1572 = vpop.f32.mrb[0].mxu0
  %v1573 = vpop.f32.mrb[0].mxu0
  %v1574 = vadd.f32 %v214, %v1573
  %v1575 = vpop.f32.mrb[0].mxu0
  %1576 = vmatprep.mubr.bf16.mxu0 %v777
  %1577 = vmatmul.mubr.bf16.gmra.mrb[0].mxu0 %v776
  %v1578 = vpop.f32.mrb[0].mxu0
  %v1579 = vadd.f32 %v214, %v1578
  %v1580 = vpop.f32.mrb[0].mxu0
  %v1581 = vpop.f32.mrb[0].mxu0
  %v1582 = vadd.f32 %v214, %v1581
  %v1583 = vpop.f32.mrb[0].mxu0
  %1584 = vmatprep.mubr.bf16.mxu0 %v779
  %1585 = vmatmul.mubr.bf16.gmra.mrb[0].mxu0 %v778
  %v1586 = vpop.f32.mrb[0].mxu0
  %v1587 = vadd.f32 %v214, %v1586
  %v1588 = vpop.f32.mrb[0].mxu0
  %v1589 = vpop.f32.mrb[0].mxu0
  %v1590 = vadd.f32 %v214, %v1589
  %v1591 = vpop.f32.mrb[0].mxu0
  %1592 = vmatprep.mubr.bf16.mxu0 %v781
  %1593 = vmatmul.mubr.bf16.gmra.mrb[0].mxu0 %v780
  %v1594 = vpop.f32.mrb[0].mxu0
  %v1595 = vadd.f32 %v214, %v1594
  %v1596 = vpop.f32.mrb[0].mxu0
  %v1597 = vpop.f32.mrb[0].mxu0
  %v1598 = vadd.f32 %v214, %v1597
  %v1599 = vpop.f32.mrb[0].mxu0
  %1600 = vmatprep.mubr.bf16.mxu0 %v783
  %1601 = vmatmul.mubr.bf16.gmra.mrb[0].mxu0 %v782
  %v1602 = vpop.f32.mrb[0].mxu0
  %v1603 = vadd.f32 %v214, %v1602
  %v1604 = vpop.f32.mrb[0].mxu0
  %v1605 = vpop.f32.mrb[0].mxu0
  %v1606 = vadd.f32 %v214, %v1605
  %v1607 = vpop.f32.mrb[0].mxu0
  %1608 = vmatprep.mubr.bf16.mxu0 %v785
  %1609 = vmatmul.mubr.bf16.gmra.mrb[0].mxu0 %v784
  %v1610 = vpop.f32.mrb[0].mxu0
  %v1611 = vadd.f32 %v214, %v1610
  %v1612 = vpop.f32.mrb[0].mxu0
  %v1613 = vpop.f32.mrb[0].mxu0
  %v1614 = vadd.f32 %v214, %v1613
  %v1615 = vpop.f32.mrb[0].mxu0
  %1616 = vmatprep.mubr.bf16.mxu0 %v787
  %1617 = vmatmul.mubr.bf16.gmra.mrb[0].mxu0 %v786
  %v1618 = vpop.f32.mrb[0].mxu0
  %v1619 = vadd.f32 %v214, %v1618
  %v1620 = vpop.f32.mrb[0].mxu0
  %v1621 = vpop.f32.mrb[0].mxu0
  %v1622 = vadd.f32 %v214, %v1621
  %v1623 = vpop.f32.mrb[0].mxu0
  %1624 = vmatprep.mubr.bf16.mxu0 %v789
  %1625 = vmatmul.mubr.bf16.gmra.mrb[0].mxu0 %v788
  %v1626 = vpop.f32.mrb[0].mxu0
  %v1627 = vadd.f32 %v214, %v1626
  %v1628 = vpop.f32.mrb[0].mxu0
  %v1629 = vpop.f32.mrb[0].mxu0
  %v1630 = vadd.f32 %v214, %v1629
  %v1631 = vpop.f32.mrb[0].mxu0
  %1632 = vmatprep.mubr.bf16.mxu0 %v791
  %1633 = vmatmul.mubr.bf16.gmra.mrb[0].mxu0 %v790
  %v1634 = vpop.f32.mrb[0].mxu0
  %v1635 = vadd.f32 %v214, %v1634
  %v1636 = vpop.f32.mrb[0].mxu0
  %v1637 = vpop.f32.mrb[0].mxu0
  %v1638 = vadd.f32 %v214, %v1637
  %v1639 = vpop.f32.mrb[0].mxu0
  %1640 = vdwg.mxu0
  %v1641 = vmax.f32 %v1067, 0.0
  %v1642 = vmax.f32 %v1070, 0.0
  %v1643 = vmax.f32 %v1075, 0.0
  %v1644 = vmax.f32 %v1078, 0.0
  %v1645 = vmax.f32 %v1083, 0.0
  %v1646 = vmax.f32 %v1086, 0.0
  %v1647 = vmax.f32 %v1091, 0.0
  %v1648 = vmax.f32 %v1094, 0.0
  %v1649 = vmax.f32 %v1099, 0.0
  %v1650 = vmax.f32 %v1102, 0.0
  %v1651 = vmax.f32 %v1107, 0.0
  %v1652 = vmax.f32 %v1110, 0.0
  %v1653 = vmax.f32 %v1115, 0.0
  %v1654 = vmax.f32 %v1118, 0.0
  %v1655 = vmax.f32 %v1123, 0.0
  %v1656 = vmax.f32 %v1126, 0.0
  %v1657 = vmax.f32 %v1131, 0.0
  %v1658 = vmax.f32 %v1134, 0.0
  %v1659 = vmax.f32 %v1139, 0.0
  %v1660 = vmax.f32 %v1142, 0.0
  %v1661 = vmax.f32 %v1147, 0.0
  %v1662 = vmax.f32 %v1150, 0.0
  %v1663 = vmax.f32 %v1155, 0.0
  %v1664 = vmax.f32 %v1158, 0.0
  %v1665 = vmax.f32 %v1163, 0.0
  %v1666 = vmax.f32 %v1166, 0.0
  %v1667 = vmax.f32 %v1171, 0.0
  %v1668 = vmax.f32 %v1174, 0.0
  %v1669 = vmax.f32 %v1179, 0.0
  %v1670 = vmax.f32 %v1182, 0.0
  %v1671 = vmax.f32 %v1187, 0.0
  %v1672 = vmax.f32 %v1190, 0.0
  %v1673 = vmax.f32 %v1195, 0.0
  %v1674 = vmax.f32 %v1198, 0.0
  %v1675 = vmax.f32 %v1203, 0.0
  %v1676 = vmax.f32 %v1206, 0.0
  %v1677 = vmax.f32 %v1211, 0.0
  %v1678 = vmax.f32 %v1214, 0.0
  %v1679 = vmax.f32 %v1219, 0.0
  %v1680 = vmax.f32 %v1222, 0.0
  %v1681 = vmax.f32 %v1227, 0.0
  %v1682 = vmax.f32 %v1230, 0.0
  %v1683 = vmax.f32 %v1235, 0.0
  %v1684 = vmax.f32 %v1238, 0.0
  %v1685 = vmax.f32 %v1243, 0.0
  %v1686 = vmax.f32 %v1246, 0.0
  %v1687 = vmax.f32 %v1251, 0.0
  %v1688 = vmax.f32 %v1254, 0.0
  %v1689 = vmax.f32 %v1259, 0.0
  %v1690 = vmax.f32 %v1262, 0.0
  %v1691 = vmax.f32 %v1267, 0.0
  %v1692 = vmax.f32 %v1270, 0.0
  %v1693 = vmax.f32 %v1275, 0.0
  %v1694 = vmax.f32 %v1278, 0.0
  %v1695 = vmax.f32 %v1283, 0.0
  %v1696 = vmax.f32 %v1286, 0.0
  %v1697 = vmax.f32 %v1291, 0.0
  %v1698 = vmax.f32 %v1294, 0.0
  %v1699 = vmax.f32 %v1299, 0.0
  %v1700 = vmax.f32 %v1302, 0.0
  %v1701 = vmax.f32 %v1307, 0.0
  %v1702 = vmax.f32 %v1310, 0.0
  %v1703 = vmax.f32 %v1315, 0.0
  %v1704 = vmax.f32 %v1318, 0.0
  %v1705 = vmax.f32 %v1323, 0.0
  %v1706 = vmax.f32 %v1326, 0.0
  %v1707 = vmax.f32 %v1331, 0.0
  %v1708 = vmax.f32 %v1334, 0.0
  %v1709 = vmax.f32 %v1339, 0.0
  %v1710 = vmax.f32 %v1342, 0.0
  %v1711 = vmax.f32 %v1347, 0.0
  %v1712 = vmax.f32 %v1350, 0.0
  %v1713 = vmax.f32 %v1355, 0.0
  %v1714 = vmax.f32 %v1358, 0.0
  %v1715 = vmax.f32 %v1363, 0.0
  %v1716 = vmax.f32 %v1366, 0.0
  %v1717 = vmax.f32 %v1371, 0.0
  %v1718 = vmax.f32 %v1374, 0.0
  %v1719 = vmax.f32 %v1379, 0.0
  %v1720 = vmax.f32 %v1382, 0.0
  %v1721 = vmax.f32 %v1387, 0.0
  %v1722 = vmax.f32 %v1390, 0.0
  %v1723 = vmax.f32 %v1395, 0.0
  %v1724 = vmax.f32 %v1398, 0.0
  %v1725 = vmax.f32 %v1403, 0.0
  %v1726 = vmax.f32 %v1406, 0.0
  %v1727 = vmax.f32 %v1411, 0.0
  %v1728 = vmax.f32 %v1414, 0.0
  %v1729 = vmax.f32 %v1419, 0.0
  %v1730 = vmax.f32 %v1422, 0.0
  %v1731 = vmax.f32 %v1427, 0.0
  %v1732 = vmax.f32 %v1430, 0.0
  %v1733 = vmax.f32 %v1435, 0.0
  %v1734 = vmax.f32 %v1438, 0.0
  %v1735 = vmax.f32 %v1443, 0.0
  %v1736 = vmax.f32 %v1446, 0.0
  %v1737 = vmax.f32 %v1451, 0.0
  %v1738 = vmax.f32 %v1454, 0.0
  %v1739 = vmax.f32 %v1459, 0.0
  %v1740 = vmax.f32 %v1462, 0.0
  %v1741 = vmax.f32 %v1467, 0.0
  %v1742 = vmax.f32 %v1470, 0.0
  %v1743 = vmax.f32 %v1475, 0.0
  %v1744 = vmax.f32 %v1478, 0.0
  %v1745 = vmax.f32 %v1483, 0.0
  %v1746 = vmax.f32 %v1486, 0.0
  %v1747 = vmax.f32 %v1491, 0.0
  %v1748 = vmax.f32 %v1494, 0.0
  %v1749 = vmax.f32 %v1499, 0.0
  %v1750 = vmax.f32 %v1502, 0.0
  %v1751 = vmax.f32 %v1507, 0.0
  %v1752 = vmax.f32 %v1510, 0.0
  %v1753 = vmax.f32 %v1515, 0.0
  %v1754 = vmax.f32 %v1518, 0.0
  %v1755 = vmax.f32 %v1523, 0.0
  %v1756 = vmax.f32 %v1526, 0.0
  %v1757 = vmax.f32 %v1531, 0.0
  %v1758 = vmax.f32 %v1534, 0.0
  %v1759 = vmax.f32 %v1539, 0.0
  %v1760 = vmax.f32 %v1542, 0.0
  %v1761 = vmax.f32 %v1547, 0.0
  %v1762 = vmax.f32 %v1550, 0.0
  %v1763 = vmax.f32 %v1555, 0.0
  %v1764 = vmax.f32 %v1558, 0.0
  %v1765 = vmax.f32 %v1563, 0.0
  %v1766 = vmax.f32 %v1566, 0.0
  %v1767 = vmax.f32 %v1571, 0.0
  %v1768 = vmax.f32 %v1574, 0.0
  %v1769 = vmax.f32 %v1579, 0.0
  %v1770 = vmax.f32 %v1582, 0.0
  %v1771 = vmax.f32 %v1587, 0.0
  %v1772 = vmax.f32 %v1590, 0.0
  %v1773 = vmax.f32 %v1595, 0.0
  %v1774 = vmax.f32 %v1598, 0.0
  %v1775 = vmax.f32 %v1603, 0.0
  %v1776 = vmax.f32 %v1606, 0.0
  %v1777 = vmax.f32 %v1611, 0.0
  %v1778 = vmax.f32 %v1614, 0.0
  %v1779 = vmax.f32 %v1619, 0.0
  %v1780 = vmax.f32 %v1622, 0.0
  %v1781 = vmax.f32 %v1627, 0.0
  %v1782 = vmax.f32 %v1630, 0.0
  %v1783 = vmax.f32 %v1635, 0.0
  %v1784 = vmax.f32 %v1638, 0.0
  %v1785 = vpack.c.bf16 %v1642, %v1641
  %v1786 = vpack.c.bf16 %v1644, %v1643
  %v1787 = vpack.c.bf16 %v1646, %v1645
  %v1788 = vpack.c.bf16 %v1648, %v1647
  %v1789 = vpack.c.bf16 %v1649, %v1649
  %v1790 = vld [vmem:[%s3] sm:$0xf]
  %v1791 = vld [vmem:[%s3 + $0x4] sm:$0xf]
  %v1792 = vld [vmem:[%s3 + $0x8] sm:$0xf]
  %v1793 = vld [vmem:[%s3 + $0xc] sm:$0xf]
  %v1794 = vld [vmem:[%s3 + $0x10] sm:$0xf]
  %v1795 = vld [vmem:[%s3 + $0x14] sm:$0xf]
  %v1796 = vld [vmem:[%s3 + $0x18] sm:$0xf]
  %v1797 = vld [vmem:[%s3 + $0x1c] sm:$0xf]
  %v1798 = vld [vmem:[%s3 + $0x20] sm:$0xf]
  %v1799 = vld [vmem:[%s3 + $0x24] sm:$0xf]
  %v1800 = vld [vmem:[%s3 + $0x28] sm:$0xf]
  %v1801 = vld [vmem:[%s3 + $0x2c] sm:$0xf]
  %v1802 = vld [vmem:[%s3 + $0x30] sm:$0xf]
  %v1803 = vld [vmem:[%s3 + $0x34] sm:$0xf]
  %v1804 = vld [vmem:[%s3 + $0x38] sm:$0xf]
  %v1805 = vld [vmem:[%s3 + $0x3c] sm:$0xf]
  %v1806 = vpack.c.bf16 %v1651, %v1650
  %v1807 = vpack.c.bf16 %v1653, %v1652
  %v1808 = vpack.c.bf16 %v1655, %v1654
  %v1809 = vpack.c.bf16 %v1657, %v1656
  %v1810 = vpack.c.bf16 %v1658, %v1658
  %s1811 = scalar_lea.vmem %s3, 64
  %v1812 = vld [vmem:[%s1811] sm:$0xf]
  %v1813 = vld [vmem:[%s1811 + $0x4] sm:$0xf]
  %v1814 = vld [vmem:[%s1811 + $0x8] sm:$0xf]
  %v1815 = vld [vmem:[%s1811 + $0xc] sm:$0xf]
  %v1816 = vld [vmem:[%s1811 + $0x10] sm:$0xf]
  %v1817 = vld [vmem:[%s1811 + $0x14] sm:$0xf]
  %v1818 = vld [vmem:[%s1811 + $0x18] sm:$0xf]
  %v1819 = vld [vmem:[%s1811 + $0x1c] sm:$0xf]
  %v1820 = vld [vmem:[%s1811 + $0x20] sm:$0xf]
  %v1821 = vld [vmem:[%s1811 + $0x24] sm:$0xf]
  %v1822 = vld [vmem:[%s1811 + $0x28] sm:$0xf]
  %v1823 = vld [vmem:[%s1811 + $0x2c] sm:$0xf]
  %v1824 = vld [vmem:[%s1811 + $0x30] sm:$0xf]
  %v1825 = vld [vmem:[%s1811 + $0x34] sm:$0xf]
  %v1826 = vld [vmem:[%s1811 + $0x38] sm:$0xf]
  %v1827 = vld [vmem:[%s1811 + $0x3c] sm:$0xf]
  %v1844 = vunpack.c.l.b16 %v1812
  %v1845 = vunpack.c.l.b16 %v1813
  %v1846 = vunpack.c.l.b16 %v1814
  %v1847 = vunpack.c.l.b16 %v1815
  %v1848 = vunpack.c.l.b16 %v1816
  %v1849 = vunpack.c.l.b16 %v1817
  %v1850 = vunpack.c.l.b16 %v1818
  %v1851 = vunpack.c.l.b16 %v1819
  %v1852 = vunpack.c.l.b16 %v1820
  %v1853 = vunpack.c.l.b16 %v1821
  %v1854 = vunpack.c.l.b16 %v1822
  %v1855 = vunpack.c.l.b16 %v1823
  %v1856 = vunpack.c.l.b16 %v1824
  %v1857 = vunpack.c.l.b16 %v1825
  %v1858 = vunpack.c.l.b16 %v1826
  %v1859 = vunpack.c.l.b16 %v1827
  %v1860 = vpack.c.b16 %v1845, %v1844
  %v1861 = vpack.c.b16 %v1847, %v1846
  %v1862 = vpack.c.b16 %v1849, %v1848
  %v1863 = vpack.c.b16 %v1851, %v1850
  %v1864 = vpack.c.b16 %v1853, %v1852
  %v1865 = vpack.c.b16 %v1855, %v1854
  %v1866 = vpack.c.b16 %v1857, %v1856
  %v1867 = vpack.c.b16 %v1859, %v1858
  %1876 = vmatprep.subr.bf16.mxu0 0
  %1877 = vmatpush1.bf16.msra.mxu0 %v1860
  %1878 = vmatprep.subr.bf16.mxu0 0
  %1879 = vmatpush1.bf16.msra.mxu0 %v1861
  %1880 = vmatprep.subr.bf16.mxu0 0
  %1881 = vmatpush1.bf16.msra.mxu0 %v1862
  %1882 = vmatprep.subr.bf16.mxu0 0
  %1883 = vmatpush1.bf16.msra.mxu0 %v1863
  %1884 = vmatprep.subr.bf16.mxu0 0
  %1885 = vmatpush1.bf16.msra.mxu0 %v1864
  %1886 = vmatprep.subr.bf16.mxu0 0
  %1887 = vmatpush1.bf16.msra.mxu0 %v1865
  %1888 = vmatprep.subr.bf16.mxu0 0
  %1889 = vmatpush1.bf16.msra.mxu0 %v1866
  %1890 = vmatprep.subr.bf16.mxu0 0
  %1891 = vmatpush1.bf16.msra.mxu0 %v1867
  %1892 = vmatprep.subr.bf16.mxu0 0
  %1893 = vmatpush1.bf16.msra.mxu0 0
  %1894 = vmatprep.subr.bf16.mxu0 0
  %1895 = vmatpush1.bf16.msra.mxu0 0
  %1896 = vmatprep.subr.bf16.mxu0 0
  %1897 = vmatpush1.bf16.msra.mxu0 0
  %1898 = vmatprep.subr.bf16.mxu0 0
  %1899 = vmatpush1.bf16.msra.mxu0 0
  %1900 = vmatprep.subr.bf16.mxu0 0
  %1901 = vmatpush1.bf16.msra.mxu0 0
  %1902 = vmatprep.subr.bf16.mxu0 0
  %1903 = vmatpush1.bf16.msra.mxu0 0
  %1904 = vmatprep.subr.bf16.mxu0 0
  %1905 = vmatpush1.bf16.msra.mxu0 0
  %1906 = vmatprep.subr.bf16.mxu0 0
  %1907 = vmatpush1.bf16.msra.mxu0 0
  %1908 = vmatprep.mubr.bf16.mxu0 0
  %1909 = vmatmul.mubr.bf16.gmra.mrb[0].mxu0 %v1806
  %v1910 = vpop.f32.mrb[0].mxu0
  %v1911 = vadd.f32 0.0, %v1910
  %v1912 = vpop.f32.mrb[0].mxu0
  %v1913 = vpop.f32.mrb[0].mxu0
  %v1914 = vadd.f32 0.0, %v1913
  %v1915 = vpop.f32.mrb[0].mxu0
  %1916 = vmatprep.mubr.bf16.mxu0 0
  %1917 = vmatmul.mubr.bf16.gmra.mrb[0].mxu0 %v1807
  %v1918 = vpop.f32.mrb[0].mxu0
  %v1919 = vadd.f32 0.0, %v1918
  %v1920 = vpop.f32.mrb[0].mxu0
  %v1921 = vpop.f32.mrb[0].mxu0
  %v1922 = vadd.f32 0.0, %v1921
  %v1923 = vpop.f32.mrb[0].mxu0
  %1924 = vmatprep.mubr.bf16.mxu0 0
  %1925 = vmatmul.mubr.bf16.gmra.mrb[0].mxu0 %v1808
  %v1926 = vpop.f32.mrb[0].mxu0
  %v1927 = vadd.f32 0.0, %v1926
  %v1928 = vpop.f32.mrb[0].mxu0
  %v1929 = vpop.f32.mrb[0].mxu0
  %v1930 = vadd.f32 0.0, %v1929
  %v1931 = vpop.f32.mrb[0].mxu0
  %1932 = vmatprep.mubr.bf16.mxu0 0
  %1933 = vmatmul.mubr.bf16.gmra.mrb[0].mxu0 %v1809
  %v1934 = vpop.f32.mrb[0].mxu0
  %v1935 = vadd.f32 0.0, %v1934
  %v1936 = vpop.f32.mrb[0].mxu0
  %v1937 = vpop.f32.mrb[0].mxu0
  %v1938 = vadd.f32 0.0, %v1937
  %v1939 = vpop.f32.mrb[0].mxu0
  %1940 = vmatprep.mubr.bf16.mxu0 0
  %1941 = vmatmul.mubr.bf16.gmra.mrb[0].mxu0 %v1810
  %v1942 = vpop.f32.mrb[0].mxu0
  %v1943 = vadd.f32 0.0, %v1942
  %v1944 = vpop.f32.mrb[0].mxu0
  %v1945 = vpop.f32.mrb[0].mxu0
  %v1946 = vpop.f32.mrb[0].mxu0
  %1947 = vdwg.mxu0
  %v1964 = vunpack.c.l.b16 %v1790
  %v1965 = vunpack.c.l.b16 %v1791
  %v1966 = vunpack.c.l.b16 %v1792
  %v1967 = vunpack.c.l.b16 %v1793
  %v1968 = vunpack.c.l.b16 %v1794
  %v1969 = vunpack.c.l.b16 %v1795
  %v1970 = vunpack.c.l.b16 %v1796
  %v1971 = vunpack.c.l.b16 %v1797
  %v1972 = vunpack.c.l.b16 %v1798
  %v1973 = vunpack.c.l.b16 %v1799
  %v1974 = vunpack.c.l.b16 %v1800
  %v1975 = vunpack.c.l.b16 %v1801
  %v1976 = vunpack.c.l.b16 %v1802
  %v1977 = vunpack.c.l.b16 %v1803
  %v1978 = vunpack.c.l.b16 %v1804
  %v1979 = vunpack.c.l.b16 %v1805
  %v1980 = vpack.c.b16 %v1965, %v1964
  %v1981 = vpack.c.b16 %v1967, %v1966
  %v1982 = vpack.c.b16 %v1969, %v1968
  %v1983 = vpack.c.b16 %v1971, %v1970
  %v1984 = vpack.c.b16 %v1973, %v1972
  %v1985 = vpack.c.b16 %v1975, %v1974
  %v1986 = vpack.c.b16 %v1977, %v1976
  %v1987 = vpack.c.b16 %v1979, %v1978
  %1996 = vmatprep.subr.bf16.mxu0 0
  %1997 = vmatpush1.bf16.msra.mxu0 %v1980
  %1998 = vmatprep.subr.bf16.mxu0 0
  %1999 = vmatpush1.bf16.msra.mxu0 %v1981
  %2000 = vmatprep.subr.bf16.mxu0 0
  %2001 = vmatpush1.bf16.msra.mxu0 %v1982
  %2002 = vmatprep.subr.bf16.mxu0 0
  %2003 = vmatpush1.bf16.msra.mxu0 %v1983
  %2004 = vmatprep.subr.bf16.mxu0 0
  %2005 = vmatpush1.bf16.msra.mxu0 %v1984
  %2006 = vmatprep.subr.bf16.mxu0 0
  %2007 = vmatpush1.bf16.msra.mxu0 %v1985
  %2008 = vmatprep.subr.bf16.mxu0 0
  %2009 = vmatpush1.bf16.msra.mxu0 %v1986
  %2010 = vmatprep.subr.bf16.mxu0 0
  %2011 = vmatpush1.bf16.msra.mxu0 %v1987
  %2012 = vmatprep.subr.bf16.mxu0 0
  %2013 = vmatpush1.bf16.msra.mxu0 0
  %2014 = vmatprep.subr.bf16.mxu0 0
  %2015 = vmatpush1.bf16.msra.mxu0 0
  %2016 = vmatprep.subr.bf16.mxu0 0
  %2017 = vmatpush1.bf16.msra.mxu0 0
  %2018 = vmatprep.subr.bf16.mxu0 0
  %2019 = vmatpush1.bf16.msra.mxu0 0
  %2020 = vmatprep.subr.bf16.mxu0 0
  %2021 = vmatpush1.bf16.msra.mxu0 0
  %2022 = vmatprep.subr.bf16.mxu0 0
  %2023 = vmatpush1.bf16.msra.mxu0 0
  %2024 = vmatprep.subr.bf16.mxu0 0
  %2025 = vmatpush1.bf16.msra.mxu0 0
  %2026 = vmatprep.subr.bf16.mxu0 0
  %2027 = vmatpush1.bf16.msra.mxu0 0
  %2028 = vmatprep.mubr.bf16.mxu0 0
  %2029 = vmatmul.mubr.bf16.gmra.mrb[0].mxu0 %v1785
  %v2030 = vpop.f32.mrb[0].mxu0
  %v2031 = vadd.f32 %v1911, %v2030
  %v2032 = vpop.f32.mrb[0].mxu0
  %v2033 = vpop.f32.mrb[0].mxu0
  %v2034 = vadd.f32 %v1914, %v2033
  %v2035 = vpop.f32.mrb[0].mxu0
  %2036 = vmatprep.mubr.bf16.mxu0 0
  %2037 = vmatmul.mubr.bf16.gmra.mrb[0].mxu0 %v1786
  %v2038 = vpop.f32.mrb[0].mxu0
  %v2039 = vadd.f32 %v1919, %v2038
  %v2040 = vpop.f32.mrb[0].mxu0
  %v2041 = vpop.f32.mrb[0].mxu0
  %v2042 = vadd.f32 %v1922, %v2041
  %v2043 = vpop.f32.mrb[0].mxu0
  %2044 = vmatprep.mubr.bf16.mxu0 0
  %2045 = vmatmul.mubr.bf16.gmra.mrb[0].mxu0 %v1787
  %v2046 = vpop.f32.mrb[0].mxu0
  %v2047 = vadd.f32 %v1927, %v2046
  %v2048 = vpop.f32.mrb[0].mxu0
  %v2049 = vpop.f32.mrb[0].mxu0
  %v2050 = vadd.f32 %v1930, %v2049
  %v2051 = vpop.f32.mrb[0].mxu0
  %2052 = vmatprep.mubr.bf16.mxu0 0
  %2053 = vmatmul.mubr.bf16.gmra.mrb[0].mxu0 %v1788
  %v2054 = vpop.f32.mrb[0].mxu0
  %v2055 = vadd.f32 %v1935, %v2054
  %v2056 = vpop.f32.mrb[0].mxu0
  %v2057 = vpop.f32.mrb[0].mxu0
  %v2058 = vadd.f32 %v1938, %v2057
  %v2059 = vpop.f32.mrb[0].mxu0
  %2060 = vmatprep.mubr.bf16.mxu0 0
  %2061 = vmatmul.mubr.bf16.gmra.mrb[0].mxu0 %v1789
  %v2062 = vpop.f32.mrb[0].mxu0
  %v2063 = vadd.f32 %v1943, %v2062
  %v2064 = vpop.f32.mrb[0].mxu0
  %v2065 = vpop.f32.mrb[0].mxu0
  %v2066 = vpop.f32.mrb[0].mxu0
  %2067 = vdwg.mxu0
  %v2068 = vpack.c.bf16 %v1660, %v1659
  %v2069 = vpack.c.bf16 %v1662, %v1661
  %v2070 = vpack.c.bf16 %v1664, %v1663
  %v2071 = vpack.c.bf16 %v1666, %v1665
  %v2072 = vpack.c.bf16 %v1667, %v1667
  %s2073 = scalar_lea.vmem %s3, 128
  %v2074 = vld [vmem:[%s2073] sm:$0xf]
  %v2075 = vld [vmem:[%s2073 + $0x4] sm:$0xf]
  %v2076 = vld [vmem:[%s2073 + $0x8] sm:$0xf]
  %v2077 = vld [vmem:[%s2073 + $0xc] sm:$0xf]
  %v2078 = vld [vmem:[%s2073 + $0x10] sm:$0xf]
  %v2079 = vld [vmem:[%s2073 + $0x14] sm:$0xf]
  %v2080 = vld [vmem:[%s2073 + $0x18] sm:$0xf]
  %v2081 = vld [vmem:[%s2073 + $0x1c] sm:$0xf]
  %v2082 = vld [vmem:[%s2073 + $0x20] sm:$0xf]
  %v2083 = vld [vmem:[%s2073 + $0x24] sm:$0xf]
  %v2084 = vld [vmem:[%s2073 + $0x28] sm:$0xf]
  %v2085 = vld [vmem:[%s2073 + $0x2c] sm:$0xf]
  %v2086 = vld [vmem:[%s2073 + $0x30] sm:$0xf]
  %v2087 = vld [vmem:[%s2073 + $0x34] sm:$0xf]
  %v2088 = vld [vmem:[%s2073 + $0x38] sm:$0xf]
  %v2089 = vld [vmem:[%s2073 + $0x3c] sm:$0xf]
  %v2106 = vunpack.c.l.b16 %v2074
  %v2107 = vunpack.c.l.b16 %v2075
  %v2108 = vunpack.c.l.b16 %v2076
  %v2109 = vunpack.c.l.b16 %v2077
  %v2110 = vunpack.c.l.b16 %v2078
  %v2111 = vunpack.c.l.b16 %v2079
  %v2112 = vunpack.c.l.b16 %v2080
  %v2113 = vunpack.c.l.b16 %v2081
  %v2114 = vunpack.c.l.b16 %v2082
  %v2115 = vunpack.c.l.b16 %v2083
  %v2116 = vunpack.c.l.b16 %v2084
  %v2117 = vunpack.c.l.b16 %v2085
  %v2118 = vunpack.c.l.b16 %v2086
  %v2119 = vunpack.c.l.b16 %v2087
  %v2120 = vunpack.c.l.b16 %v2088
  %v2121 = vunpack.c.l.b16 %v2089
  %v2122 = vpack.c.b16 %v2107, %v2106
  %v2123 = vpack.c.b16 %v2109, %v2108
  %v2124 = vpack.c.b16 %v2111, %v2110
  %v2125 = vpack.c.b16 %v2113, %v2112
  %v2126 = vpack.c.b16 %v2115, %v2114
  %v2127 = vpack.c.b16 %v2117, %v2116
  %v2128 = vpack.c.b16 %v2119, %v2118
  %v2129 = vpack.c.b16 %v2121, %v2120
  %2138 = vmatprep.subr.bf16.mxu0 0
  %2139 = vmatpush1.bf16.msra.mxu0 %v2122
  %2140 = vmatprep.subr.bf16.mxu0 0
  %2141 = vmatpush1.bf16.msra.mxu0 %v2123
  %2142 = vmatprep.subr.bf16.mxu0 0
  %2143 = vmatpush1.bf16.msra.mxu0 %v2124
  %2144 = vmatprep.subr.bf16.mxu0 0
  %2145 = vmatpush1.bf16.msra.mxu0 %v2125
  %2146 = vmatprep.subr.bf16.mxu0 0
  %2147 = vmatpush1.bf16.msra.mxu0 %v2126
  %2148 = vmatprep.subr.bf16.mxu0 0
  %2149 = vmatpush1.bf16.msra.mxu0 %v2127
  %2150 = vmatprep.subr.bf16.mxu0 0
  %2151 = vmatpush1.bf16.msra.mxu0 %v2128
  %2152 = vmatprep.subr.bf16.mxu0 0
  %2153 = vmatpush1.bf16.msra.mxu0 %v2129
  %2154 = vmatprep.subr.bf16.mxu0 0
  %2155 = vmatpush1.bf16.msra.mxu0 0
  %2156 = vmatprep.subr.bf16.mxu0 0
  %2157 = vmatpush1.bf16.msra.mxu0 0
  %2158 = vmatprep.subr.bf16.mxu0 0
  %2159 = vmatpush1.bf16.msra.mxu0 0
  %2160 = vmatprep.subr.bf16.mxu0 0
  %2161 = vmatpush1.bf16.msra.mxu0 0
  %2162 = vmatprep.subr.bf16.mxu0 0
  %2163 = vmatpush1.bf16.msra.mxu0 0
  %2164 = vmatprep.subr.bf16.mxu0 0
  %2165 = vmatpush1.bf16.msra.mxu0 0
  %2166 = vmatprep.subr.bf16.mxu0 0
  %2167 = vmatpush1.bf16.msra.mxu0 0
  %2168 = vmatprep.subr.bf16.mxu0 0
  %2169 = vmatpush1.bf16.msra.mxu0 0
  %2170 = vmatprep.mubr.bf16.mxu0 0
  %2171 = vmatmul.mubr.bf16.gmra.mrb[0].mxu0 %v2068
  %v2172 = vpop.f32.mrb[0].mxu0
  %v2173 = vadd.f32 0.0, %v2172
  %v2174 = vpop.f32.mrb[0].mxu0
  %v2175 = vpop.f32.mrb[0].mxu0
  %v2176 = vadd.f32 0.0, %v2175
  %v2177 = vpop.f32.mrb[0].mxu0
  %2178 = vmatprep.mubr.bf16.mxu0 0
  %2179 = vmatmul.mubr.bf16.gmra.mrb[0].mxu0 %v2069
  %v2180 = vpop.f32.mrb[0].mxu0
  %v2181 = vadd.f32 0.0, %v2180
  %v2182 = vpop.f32.mrb[0].mxu0
  %v2183 = vpop.f32.mrb[0].mxu0
  %v2184 = vadd.f32 0.0, %v2183
  %v2185 = vpop.f32.mrb[0].mxu0
  %2186 = vmatprep.mubr.bf16.mxu0 0
  %2187 = vmatmul.mubr.bf16.gmra.mrb[0].mxu0 %v2070
  %v2188 = vpop.f32.mrb[0].mxu0
  %v2189 = vadd.f32 0.0, %v2188
  %v2190 = vpop.f32.mrb[0].mxu0
  %v2191 = vpop.f32.mrb[0].mxu0
  %v2192 = vadd.f32 0.0, %v2191
  %v2193 = vpop.f32.mrb[0].mxu0
  %2194 = vmatprep.mubr.bf16.mxu0 0
  %2195 = vmatmul.mubr.bf16.gmra.mrb[0].mxu0 %v2071
  %v2196 = vpop.f32.mrb[0].mxu0
  %v2197 = vadd.f32 0.0, %v2196
  %v2198 = vpop.f32.mrb[0].mxu0
  %v2199 = vpop.f32.mrb[0].mxu0
  %v2200 = vadd.f32 0.0, %v2199
  %v2201 = vpop.f32.mrb[0].mxu0
  %2202 = vmatprep.mubr.bf16.mxu0 0
  %2203 = vmatmul.mubr.bf16.gmra.mrb[0].mxu0 %v2072
  %v2204 = vpop.f32.mrb[0].mxu0
  %v2205 = vadd.f32 0.0, %v2204
  %v2206 = vpop.f32.mrb[0].mxu0
  %v2207 = vpop.f32.mrb[0].mxu0
  %v2208 = vpop.f32.mrb[0].mxu0
  %2209 = vdwg.mxu0
  %v2210 = vadd.f32 %v2031, %v2173
  %v2211 = vadd.f32 %v2034, %v2176
  %v2212 = vadd.f32 %v2039, %v2181
  %v2213 = vadd.f32 %v2042, %v2184
  %v2214 = vadd.f32 %v2047, %v2189
  %v2215 = vadd.f32 %v2050, %v2192
  %v2216 = vadd.f32 %v2055, %v2197
  %v2217 = vadd.f32 %v2058, %v2200
  %v2218 = vadd.f32 %v2063, %v2205
  %v2219 = vpack.c.bf16 %v1669, %v1668
  %v2220 = vpack.c.bf16 %v1671, %v1670
  %v2221 = vpack.c.bf16 %v1673, %v1672
  %v2222 = vpack.c.bf16 %v1675, %v1674
  %v2223 = vpack.c.bf16 %v1676, %v1676
  %s2224 = scalar_lea.vmem %s3, 192
  %v2225 = vld [vmem:[%s2224] sm:$0xf]
  %v2226 = vld [vmem:[%s2224 + $0x4] sm:$0xf]
  %v2227 = vld [vmem:[%s2224 + $0x8] sm:$0xf]
  %v2228 = vld [vmem:[%s2224 + $0xc] sm:$0xf]
  %v2229 = vld [vmem:[%s2224 + $0x10] sm:$0xf]
  %v2230 = vld [vmem:[%s2224 + $0x14] sm:$0xf]
  %v2231 = vld [vmem:[%s2224 + $0x18] sm:$0xf]
  %v2232 = vld [vmem:[%s2224 + $0x1c] sm:$0xf]
  %v2233 = vld [vmem:[%s2224 + $0x20] sm:$0xf]
  %v2234 = vld [vmem:[%s2224 + $0x24] sm:$0xf]
  %v2235 = vld [vmem:[%s2224 + $0x28] sm:$0xf]
  %v2236 = vld [vmem:[%s2224 + $0x2c] sm:$0xf]
  %v2237 = vld [vmem:[%s2224 + $0x30] sm:$0xf]
  %v2238 = vld [vmem:[%s2224 + $0x34] sm:$0xf]
  %v2239 = vld [vmem:[%s2224 + $0x38] sm:$0xf]
  %v2240 = vld [vmem:[%s2224 + $0x3c] sm:$0xf]
  %v2257 = vunpack.c.l.b16 %v2225
  %v2258 = vunpack.c.l.b16 %v2226
  %v2259 = vunpack.c.l.b16 %v2227
  %v2260 = vunpack.c.l.b16 %v2228
  %v2261 = vunpack.c.l.b16 %v2229
  %v2262 = vunpack.c.l.b16 %v2230
  %v2263 = vunpack.c.l.b16 %v2231
  %v2264 = vunpack.c.l.b16 %v2232
  %v2265 = vunpack.c.l.b16 %v2233
  %v2266 = vunpack.c.l.b16 %v2234
  %v2267 = vunpack.c.l.b16 %v2235
  %v2268 = vunpack.c.l.b16 %v2236
  %v2269 = vunpack.c.l.b16 %v2237
  %v2270 = vunpack.c.l.b16 %v2238
  %v2271 = vunpack.c.l.b16 %v2239
  %v2272 = vunpack.c.l.b16 %v2240
  %v2273 = vpack.c.b16 %v2258, %v2257
  %v2274 = vpack.c.b16 %v2260, %v2259
  %v2275 = vpack.c.b16 %v2262, %v2261
  %v2276 = vpack.c.b16 %v2264, %v2263
  %v2277 = vpack.c.b16 %v2266, %v2265
  %v2278 = vpack.c.b16 %v2268, %v2267
  %v2279 = vpack.c.b16 %v2270, %v2269
  %v2280 = vpack.c.b16 %v2272, %v2271
  %2289 = vmatprep.subr.bf16.mxu0 0
  %2290 = vmatpush1.bf16.msra.mxu0 %v2273
  %2291 = vmatprep.subr.bf16.mxu0 0
  %2292 = vmatpush1.bf16.msra.mxu0 %v2274
  %2293 = vmatprep.subr.bf16.mxu0 0
  %2294 = vmatpush1.bf16.msra.mxu0 %v2275
  %2295 = vmatprep.subr.bf16.mxu0 0
  %2296 = vmatpush1.bf16.msra.mxu0 %v2276
  %2297 = vmatprep.subr.bf16.mxu0 0
  %2298 = vmatpush1.bf16.msra.mxu0 %v2277
  %2299 = vmatprep.subr.bf16.mxu0 0
  %2300 = vmatpush1.bf16.msra.mxu0 %v2278
  %2301 = vmatprep.subr.bf16.mxu0 0
  %2302 = vmatpush1.bf16.msra.mxu0 %v2279
  %2303 = vmatprep.subr.bf16.mxu0 0
  %2304 = vmatpush1.bf16.msra.mxu0 %v2280
  %2305 = vmatprep.subr.bf16.mxu0 0
  %2306 = vmatpush1.bf16.msra.mxu0 0
  %2307 = vmatprep.subr.bf16.mxu0 0
  %2308 = vmatpush1.bf16.msra.mxu0 0
  %2309 = vmatprep.subr.bf16.mxu0 0
  %2310 = vmatpush1.bf16.msra.mxu0 0
  %2311 = vmatprep.subr.bf16.mxu0 0
  %2312 = vmatpush1.bf16.msra.mxu0 0
  %2313 = vmatprep.subr.bf16.mxu0 0
  %2314 = vmatpush1.bf16.msra.mxu0 0
  %2315 = vmatprep.subr.bf16.mxu0 0
  %2316 = vmatpush1.bf16.msra.mxu0 0
  %2317 = vmatprep.subr.bf16.mxu0 0
  %2318 = vmatpush1.bf16.msra.mxu0 0
  %2319 = vmatprep.subr.bf16.mxu0 0
  %2320 = vmatpush1.bf16.msra.mxu0 0
  %2321 = vmatprep.mubr.bf16.mxu0 0
  %2322 = vmatmul.mubr.bf16.gmra.mrb[0].mxu0 %v2219
  %v2323 = vpop.f32.mrb[0].mxu0
  %v2324 = vadd.f32 0.0, %v2323
  %v2325 = vpop.f32.mrb[0].mxu0
  %v2326 = vpop.f32.mrb[0].mxu0
  %v2327 = vadd.f32 0.0, %v2326
  %v2328 = vpop.f32.mrb[0].mxu0
  %2329 = vmatprep.mubr.bf16.mxu0 0
  %2330 = vmatmul.mubr.bf16.gmra.mrb[0].mxu0 %v2220
  %v2331 = vpop.f32.mrb[0].mxu0
  %v2332 = vadd.f32 0.0, %v2331
  %v2333 = vpop.f32.mrb[0].mxu0
  %v2334 = vpop.f32.mrb[0].mxu0
  %v2335 = vadd.f32 0.0, %v2334
  %v2336 = vpop.f32.mrb[0].mxu0
  %2337 = vmatprep.mubr.bf16.mxu0 0
  %2338 = vmatmul.mubr.bf16.gmra.mrb[0].mxu0 %v2221
  %v2339 = vpop.f32.mrb[0].mxu0
  %v2340 = vadd.f32 0.0, %v2339
  %v2341 = vpop.f32.mrb[0].mxu0
  %v2342 = vpop.f32.mrb[0].mxu0
  %v2343 = vadd.f32 0.0, %v2342
  %v2344 = vpop.f32.mrb[0].mxu0
  %2345 = vmatprep.mubr.bf16.mxu0 0
  %2346 = vmatmul.mubr.bf16.gmra.mrb[0].mxu0 %v2222
  %v2347 = vpop.f32.mrb[0].mxu0
  %v2348 = vadd.f32 0.0, %v2347
  %v2349 = vpop.f32.mrb[0].mxu0
  %v2350 = vpop.f32.mrb[0].mxu0
  %v2351 = vadd.f32 0.0, %v2350
  %v2352 = vpop.f32.mrb[0].mxu0
  %2353 = vmatprep.mubr.bf16.mxu0 0
  %2354 = vmatmul.mubr.bf16.gmra.mrb[0].mxu0 %v2223
  %v2355 = vpop.f32.mrb[0].mxu0
  %v2356 = vadd.f32 0.0, %v2355
  %v2357 = vpop.f32.mrb[0].mxu0
  %v2358 = vpop.f32.mrb[0].mxu0
  %v2359 = vpop.f32.mrb[0].mxu0
  %2360 = vdwg.mxu0
  %v2361 = vadd.f32 %v2210, %v2324
  %v2362 = vadd.f32 %v2211, %v2327
  %v2363 = vadd.f32 %v2212, %v2332
  %v2364 = vadd.f32 %v2213, %v2335
  %v2365 = vadd.f32 %v2214, %v2340
  %v2366 = vadd.f32 %v2215, %v2343
  %v2367 = vadd.f32 %v2216, %v2348
  %v2368 = vadd.f32 %v2217, %v2351
  %v2369 = vadd.f32 %v2218, %v2356
  %v2370 = vpack.c.bf16 %v1678, %v1677
  %v2371 = vpack.c.bf16 %v1680, %v1679
  %v2372 = vpack.c.bf16 %v1682, %v1681
  %v2373 = vpack.c.bf16 %v1684, %v1683
  %v2374 = vpack.c.bf16 %v1685, %v1685
  %s2375 = scalar_lea.vmem %s3, 256
  %v2376 = vld [vmem:[%s2375] sm:$0xf]
  %v2377 = vld [vmem:[%s2375 + $0x4] sm:$0xf]
  %v2378 = vld [vmem:[%s2375 + $0x8] sm:$0xf]
  %v2379 = vld [vmem:[%s2375 + $0xc] sm:$0xf]
  %v2380 = vld [vmem:[%s2375 + $0x10] sm:$0xf]
  %v2381 = vld [vmem:[%s2375 + $0x14] sm:$0xf]
  %v2382 = vld [vmem:[%s2375 + $0x18] sm:$0xf]
  %v2383 = vld [vmem:[%s2375 + $0x1c] sm:$0xf]
  %v2384 = vld [vmem:[%s2375 + $0x20] sm:$0xf]
  %v2385 = vld [vmem:[%s2375 + $0x24] sm:$0xf]
  %v2386 = vld [vmem:[%s2375 + $0x28] sm:$0xf]
  %v2387 = vld [vmem:[%s2375 + $0x2c] sm:$0xf]
  %v2388 = vld [vmem:[%s2375 + $0x30] sm:$0xf]
  %v2389 = vld [vmem:[%s2375 + $0x34] sm:$0xf]
  %v2390 = vld [vmem:[%s2375 + $0x38] sm:$0xf]
  %v2391 = vld [vmem:[%s2375 + $0x3c] sm:$0xf]
  %v2408 = vunpack.c.l.b16 %v2376
  %v2409 = vunpack.c.l.b16 %v2377
  %v2410 = vunpack.c.l.b16 %v2378
  %v2411 = vunpack.c.l.b16 %v2379
  %v2412 = vunpack.c.l.b16 %v2380
  %v2413 = vunpack.c.l.b16 %v2381
  %v2414 = vunpack.c.l.b16 %v2382
  %v2415 = vunpack.c.l.b16 %v2383
  %v2416 = vunpack.c.l.b16 %v2384
  %v2417 = vunpack.c.l.b16 %v2385
  %v2418 = vunpack.c.l.b16 %v2386
  %v2419 = vunpack.c.l.b16 %v2387
  %v2420 = vunpack.c.l.b16 %v2388
  %v2421 = vunpack.c.l.b16 %v2389
  %v2422 = vunpack.c.l.b16 %v2390
  %v2423 = vunpack.c.l.b16 %v2391
  %v2424 = vpack.c.b16 %v2409, %v2408
  %v2425 = vpack.c.b16 %v2411, %v2410
  %v2426 = vpack.c.b16 %v2413, %v2412
  %v2427 = vpack.c.b16 %v2415, %v2414
  %v2428 = vpack.c.b16 %v2417, %v2416
  %v2429 = vpack.c.b16 %v2419, %v2418
  %v2430 = vpack.c.b16 %v2421, %v2420
  %v2431 = vpack.c.b16 %v2423, %v2422
  %2440 = vmatprep.subr.bf16.mxu0 0
  %2441 = vmatpush1.bf16.msra.mxu0 %v2424
  %2442 = vmatprep.subr.bf16.mxu0 0
  %2443 = vmatpush1.bf16.msra.mxu0 %v2425
  %2444 = vmatprep.subr.bf16.mxu0 0
  %2445 = vmatpush1.bf16.msra.mxu0 %v2426
  %2446 = vmatprep.subr.bf16.mxu0 0
  %2447 = vmatpush1.bf16.msra.mxu0 %v2427
  %2448 = vmatprep.subr.bf16.mxu0 0
  %2449 = vmatpush1.bf16.msra.mxu0 %v2428
  %2450 = vmatprep.subr.bf16.mxu0 0
  %2451 = vmatpush1.bf16.msra.mxu0 %v2429
  %2452 = vmatprep.subr.bf16.mxu0 0
  %2453 = vmatpush1.bf16.msra.mxu0 %v2430
  %2454 = vmatprep.subr.bf16.mxu0 0
  %2455 = vmatpush1.bf16.msra.mxu0 %v2431
  %2456 = vmatprep.subr.bf16.mxu0 0
  %2457 = vmatpush1.bf16.msra.mxu0 0
  %2458 = vmatprep.subr.bf16.mxu0 0
  %2459 = vmatpush1.bf16.msra.mxu0 0
  %2460 = vmatprep.subr.bf16.mxu0 0
  %2461 = vmatpush1.bf16.msra.mxu0 0
  %2462 = vmatprep.subr.bf16.mxu0 0
  %2463 = vmatpush1.bf16.msra.mxu0 0
  %2464 = vmatprep.subr.bf16.mxu0 0
  %2465 = vmatpush1.bf16.msra.mxu0 0
  %2466 = vmatprep.subr.bf16.mxu0 0
  %2467 = vmatpush1.bf16.msra.mxu0 0
  %2468 = vmatprep.subr.bf16.mxu0 0
  %2469 = vmatpush1.bf16.msra.mxu0 0
  %2470 = vmatprep.subr.bf16.mxu0 0
  %2471 = vmatpush1.bf16.msra.mxu0 0
  %2472 = vmatprep.mubr.bf16.mxu0 0
  %2473 = vmatmul.mubr.bf16.gmra.mrb[0].mxu0 %v2370
  %v2474 = vpop.f32.mrb[0].mxu0
  %v2475 = vadd.f32 0.0, %v2474
  %v2476 = vpop.f32.mrb[0].mxu0
  %v2477 = vpop.f32.mrb[0].mxu0
  %v2478 = vadd.f32 0.0, %v2477
  %v2479 = vpop.f32.mrb[0].mxu0
  %2480 = vmatprep.mubr.bf16.mxu0 0
  %2481 = vmatmul.mubr.bf16.gmra.mrb[0].mxu0 %v2371
  %v2482 = vpop.f32.mrb[0].mxu0
  %v2483 = vadd.f32 0.0, %v2482
  %v2484 = vpop.f32.mrb[0].mxu0
  %v2485 = vpop.f32.mrb[0].mxu0
  %v2486 = vadd.f32 0.0, %v2485
  %v2487 = vpop.f32.mrb[0].mxu0
  %2488 = vmatprep.mubr.bf16.mxu0 0
  %2489 = vmatmul.mubr.bf16.gmra.mrb[0].mxu0 %v2372
  %v2490 = vpop.f32.mrb[0].mxu0
  %v2491 = vadd.f32 0.0, %v2490
  %v2492 = vpop.f32.mrb[0].mxu0
  %v2493 = vpop.f32.mrb[0].mxu0
  %v2494 = vadd.f32 0.0, %v2493
  %v2495 = vpop.f32.mrb[0].mxu0
  %2496 = vmatprep.mubr.bf16.mxu0 0
  %2497 = vmatmul.mubr.bf16.gmra.mrb[0].mxu0 %v2373
  %v2498 = vpop.f32.mrb[0].mxu0
  %v2499 = vadd.f32 0.0, %v2498
  %v2500 = vpop.f32.mrb[0].mxu0
  %v2501 = vpop.f32.mrb[0].mxu0
  %v2502 = vadd.f32 0.0, %v2501
  %v2503 = vpop.f32.mrb[0].mxu0
  %2504 = vmatprep.mubr.bf16.mxu0 0
  %2505 = vmatmul.mubr.bf16.gmra.mrb[0].mxu0 %v2374
  %v2506 = vpop.f32.mrb[0].mxu0
  %v2507 = vadd.f32 0.0, %v2506
  %v2508 = vpop.f32.mrb[0].mxu0
  %v2509 = vpop.f32.mrb[0].mxu0
  %v2510 = vpop.f32.mrb[0].mxu0
  %2511 = vdwg.mxu0
  %v2512 = vadd.f32 %v2361, %v2475
  %v2513 = vadd.f32 %v2362, %v2478
  %v2514 = vadd.f32 %v2363, %v2483
  %v2515 = vadd.f32 %v2364, %v2486
  %v2516 = vadd.f32 %v2365, %v2491
  %v2517 = vadd.f32 %v2366, %v2494
  %v2518 = vadd.f32 %v2367, %v2499
  %v2519 = vadd.f32 %v2368, %v2502
  %v2520 = vadd.f32 %v2369, %v2507
  %v2521 = vpack.c.bf16 %v1687, %v1686
  %v2522 = vpack.c.bf16 %v1689, %v1688
  %v2523 = vpack.c.bf16 %v1691, %v1690
  %v2524 = vpack.c.bf16 %v1693, %v1692
  %v2525 = vpack.c.bf16 %v1694, %v1694
  %s2526 = scalar_lea.vmem %s3, 320
  %v2527 = vld [vmem:[%s2526] sm:$0xf]
  %v2528 = vld [vmem:[%s2526 + $0x4] sm:$0xf]
  %v2529 = vld [vmem:[%s2526 + $0x8] sm:$0xf]
  %v2530 = vld [vmem:[%s2526 + $0xc] sm:$0xf]
  %v2531 = vld [vmem:[%s2526 + $0x10] sm:$0xf]
  %v2532 = vld [vmem:[%s2526 + $0x14] sm:$0xf]
  %v2533 = vld [vmem:[%s2526 + $0x18] sm:$0xf]
  %v2534 = vld [vmem:[%s2526 + $0x1c] sm:$0xf]
  %v2535 = vld [vmem:[%s2526 + $0x20] sm:$0xf]
  %v2536 = vld [vmem:[%s2526 + $0x24] sm:$0xf]
  %v2537 = vld [vmem:[%s2526 + $0x28] sm:$0xf]
  %v2538 = vld [vmem:[%s2526 + $0x2c] sm:$0xf]
  %v2539 = vld [vmem:[%s2526 + $0x30] sm:$0xf]
  %v2540 = vld [vmem:[%s2526 + $0x34] sm:$0xf]
  %v2541 = vld [vmem:[%s2526 + $0x38] sm:$0xf]
  %v2542 = vld [vmem:[%s2526 + $0x3c] sm:$0xf]
  %v2559 = vunpack.c.l.b16 %v2527
  %v2560 = vunpack.c.l.b16 %v2528
  %v2561 = vunpack.c.l.b16 %v2529
  %v2562 = vunpack.c.l.b16 %v2530
  %v2563 = vunpack.c.l.b16 %v2531
  %v2564 = vunpack.c.l.b16 %v2532
  %v2565 = vunpack.c.l.b16 %v2533
  %v2566 = vunpack.c.l.b16 %v2534
  %v2567 = vunpack.c.l.b16 %v2535
  %v2568 = vunpack.c.l.b16 %v2536
  %v2569 = vunpack.c.l.b16 %v2537
  %v2570 = vunpack.c.l.b16 %v2538
  %v2571 = vunpack.c.l.b16 %v2539
  %v2572 = vunpack.c.l.b16 %v2540
  %v2573 = vunpack.c.l.b16 %v2541
  %v2574 = vunpack.c.l.b16 %v2542
  %v2575 = vpack.c.b16 %v2560, %v2559
  %v2576 = vpack.c.b16 %v2562, %v2561
  %v2577 = vpack.c.b16 %v2564, %v2563
  %v2578 = vpack.c.b16 %v2566, %v2565
  %v2579 = vpack.c.b16 %v2568, %v2567
  %v2580 = vpack.c.b16 %v2570, %v2569
  %v2581 = vpack.c.b16 %v2572, %v2571
  %v2582 = vpack.c.b16 %v2574, %v2573
  %2591 = vmatprep.subr.bf16.mxu0 0
  %2592 = vmatpush1.bf16.msra.mxu0 %v2575
  %2593 = vmatprep.subr.bf16.mxu0 0
  %2594 = vmatpush1.bf16.msra.mxu0 %v2576
  %2595 = vmatprep.subr.bf16.mxu0 0
  %2596 = vmatpush1.bf16.msra.mxu0 %v2577
  %2597 = vmatprep.subr.bf16.mxu0 0
  %2598 = vmatpush1.bf16.msra.mxu0 %v2578
  %2599 = vmatprep.subr.bf16.mxu0 0
  %2600 = vmatpush1.bf16.msra.mxu0 %v2579
  %2601 = vmatprep.subr.bf16.mxu0 0
  %2602 = vmatpush1.bf16.msra.mxu0 %v2580
  %2603 = vmatprep.subr.bf16.mxu0 0
  %2604 = vmatpush1.bf16.msra.mxu0 %v2581
  %2605 = vmatprep.subr.bf16.mxu0 0
  %2606 = vmatpush1.bf16.msra.mxu0 %v2582
  %2607 = vmatprep.subr.bf16.mxu0 0
  %2608 = vmatpush1.bf16.msra.mxu0 0
  %2609 = vmatprep.subr.bf16.mxu0 0
  %2610 = vmatpush1.bf16.msra.mxu0 0
  %2611 = vmatprep.subr.bf16.mxu0 0
  %2612 = vmatpush1.bf16.msra.mxu0 0
  %2613 = vmatprep.subr.bf16.mxu0 0
  %2614 = vmatpush1.bf16.msra.mxu0 0
  %2615 = vmatprep.subr.bf16.mxu0 0
  %2616 = vmatpush1.bf16.msra.mxu0 0
  %2617 = vmatprep.subr.bf16.mxu0 0
  %2618 = vmatpush1.bf16.msra.mxu0 0
  %2619 = vmatprep.subr.bf16.mxu0 0
  %2620 = vmatpush1.bf16.msra.mxu0 0
  %2621 = vmatprep.subr.bf16.mxu0 0
  %2622 = vmatpush1.bf16.msra.mxu0 0
  %2623 = vmatprep.mubr.bf16.mxu0 0
  %2624 = vmatmul.mubr.bf16.gmra.mrb[0].mxu0 %v2521
  %v2625 = vpop.f32.mrb[0].mxu0
  %v2626 = vadd.f32 0.0, %v2625
  %v2627 = vpop.f32.mrb[0].mxu0
  %v2628 = vpop.f32.mrb[0].mxu0
  %v2629 = vadd.f32 0.0, %v2628
  %v2630 = vpop.f32.mrb[0].mxu0
  %2631 = vmatprep.mubr.bf16.mxu0 0
  %2632 = vmatmul.mubr.bf16.gmra.mrb[0].mxu0 %v2522
  %v2633 = vpop.f32.mrb[0].mxu0
  %v2634 = vadd.f32 0.0, %v2633
  %v2635 = vpop.f32.mrb[0].mxu0
  %v2636 = vpop.f32.mrb[0].mxu0
  %v2637 = vadd.f32 0.0, %v2636
  %v2638 = vpop.f32.mrb[0].mxu0
  %2639 = vmatprep.mubr.bf16.mxu0 0
  %2640 = vmatmul.mubr.bf16.gmra.mrb[0].mxu0 %v2523
  %v2641 = vpop.f32.mrb[0].mxu0
  %v2642 = vadd.f32 0.0, %v2641
  %v2643 = vpop.f32.mrb[0].mxu0
  %v2644 = vpop.f32.mrb[0].mxu0
  %v2645 = vadd.f32 0.0, %v2644
  %v2646 = vpop.f32.mrb[0].mxu0
  %2647 = vmatprep.mubr.bf16.mxu0 0
  %2648 = vmatmul.mubr.bf16.gmra.mrb[0].mxu0 %v2524
  %v2649 = vpop.f32.mrb[0].mxu0
  %v2650 = vadd.f32 0.0, %v2649
  %v2651 = vpop.f32.mrb[0].mxu0
  %v2652 = vpop.f32.mrb[0].mxu0
  %v2653 = vadd.f32 0.0, %v2652
  %v2654 = vpop.f32.mrb[0].mxu0
  %2655 = vmatprep.mubr.bf16.mxu0 0
  %2656 = vmatmul.mubr.bf16.gmra.mrb[0].mxu0 %v2525
  %v2657 = vpop.f32.mrb[0].mxu0
  %v2658 = vadd.f32 0.0, %v2657
  %v2659 = vpop.f32.mrb[0].mxu0
  %v2660 = vpop.f32.mrb[0].mxu0
  %v2661 = vpop.f32.mrb[0].mxu0
  %2662 = vdwg.mxu0
  %v2663 = vadd.f32 %v2512, %v2626
  %v2664 = vadd.f32 %v2513, %v2629
  %v2665 = vadd.f32 %v2514, %v2634
  %v2666 = vadd.f32 %v2515, %v2637
  %v2667 = vadd.f32 %v2516, %v2642
  %v2668 = vadd.f32 %v2517, %v2645
  %v2669 = vadd.f32 %v2518, %v2650
  %v2670 = vadd.f32 %v2519, %v2653
  %v2671 = vadd.f32 %v2520, %v2658
  %v2672 = vpack.c.bf16 %v1696, %v1695
  %v2673 = vpack.c.bf16 %v1698, %v1697
  %v2674 = vpack.c.bf16 %v1700, %v1699
  %v2675 = vpack.c.bf16 %v1702, %v1701
  %v2676 = vpack.c.bf16 %v1703, %v1703
  %s2677 = scalar_lea.vmem %s3, 384
  %v2678 = vld [vmem:[%s2677] sm:$0xf]
  %v2679 = vld [vmem:[%s2677 + $0x4] sm:$0xf]
  %v2680 = vld [vmem:[%s2677 + $0x8] sm:$0xf]
  %v2681 = vld [vmem:[%s2677 + $0xc] sm:$0xf]
  %v2682 = vld [vmem:[%s2677 + $0x10] sm:$0xf]
  %v2683 = vld [vmem:[%s2677 + $0x14] sm:$0xf]
  %v2684 = vld [vmem:[%s2677 + $0x18] sm:$0xf]
  %v2685 = vld [vmem:[%s2677 + $0x1c] sm:$0xf]
  %v2686 = vld [vmem:[%s2677 + $0x20] sm:$0xf]
  %v2687 = vld [vmem:[%s2677 + $0x24] sm:$0xf]
  %v2688 = vld [vmem:[%s2677 + $0x28] sm:$0xf]
  %v2689 = vld [vmem:[%s2677 + $0x2c] sm:$0xf]
  %v2690 = vld [vmem:[%s2677 + $0x30] sm:$0xf]
  %v2691 = vld [vmem:[%s2677 + $0x34] sm:$0xf]
  %v2692 = vld [vmem:[%s2677 + $0x38] sm:$0xf]
  %v2693 = vld [vmem:[%s2677 + $0x3c] sm:$0xf]
  %v2710 = vunpack.c.l.b16 %v2678
  %v2711 = vunpack.c.l.b16 %v2679
  %v2712 = vunpack.c.l.b16 %v2680
  %v2713 = vunpack.c.l.b16 %v2681
  %v2714 = vunpack.c.l.b16 %v2682
  %v2715 = vunpack.c.l.b16 %v2683
  %v2716 = vunpack.c.l.b16 %v2684
  %v2717 = vunpack.c.l.b16 %v2685
  %v2718 = vunpack.c.l.b16 %v2686
  %v2719 = vunpack.c.l.b16 %v2687
  %v2720 = vunpack.c.l.b16 %v2688
  %v2721 = vunpack.c.l.b16 %v2689
  %v2722 = vunpack.c.l.b16 %v2690
  %v2723 = vunpack.c.l.b16 %v2691
  %v2724 = vunpack.c.l.b16 %v2692
  %v2725 = vunpack.c.l.b16 %v2693
  %v2726 = vpack.c.b16 %v2711, %v2710
  %v2727 = vpack.c.b16 %v2713, %v2712
  %v2728 = vpack.c.b16 %v2715, %v2714
  %v2729 = vpack.c.b16 %v2717, %v2716
  %v2730 = vpack.c.b16 %v2719, %v2718
  %v2731 = vpack.c.b16 %v2721, %v2720
  %v2732 = vpack.c.b16 %v2723, %v2722
  %v2733 = vpack.c.b16 %v2725, %v2724
  %2742 = vmatprep.subr.bf16.mxu0 0
  %2743 = vmatpush1.bf16.msra.mxu0 %v2726
  %2744 = vmatprep.subr.bf16.mxu0 0
  %2745 = vmatpush1.bf16.msra.mxu0 %v2727
  %2746 = vmatprep.subr.bf16.mxu0 0
  %2747 = vmatpush1.bf16.msra.mxu0 %v2728
  %2748 = vmatprep.subr.bf16.mxu0 0
  %2749 = vmatpush1.bf16.msra.mxu0 %v2729
  %2750 = vmatprep.subr.bf16.mxu0 0
  %2751 = vmatpush1.bf16.msra.mxu0 %v2730
  %2752 = vmatprep.subr.bf16.mxu0 0
  %2753 = vmatpush1.bf16.msra.mxu0 %v2731
  %2754 = vmatprep.subr.bf16.mxu0 0
  %2755 = vmatpush1.bf16.msra.mxu0 %v2732
  %2756 = vmatprep.subr.bf16.mxu0 0
  %2757 = vmatpush1.bf16.msra.mxu0 %v2733
  %2758 = vmatprep.subr.bf16.mxu0 0
  %2759 = vmatpush1.bf16.msra.mxu0 0
  %2760 = vmatprep.subr.bf16.mxu0 0
  %2761 = vmatpush1.bf16.msra.mxu0 0
  %2762 = vmatprep.subr.bf16.mxu0 0
  %2763 = vmatpush1.bf16.msra.mxu0 0
  %2764 = vmatprep.subr.bf16.mxu0 0
  %2765 = vmatpush1.bf16.msra.mxu0 0
  %2766 = vmatprep.subr.bf16.mxu0 0
  %2767 = vmatpush1.bf16.msra.mxu0 0
  %2768 = vmatprep.subr.bf16.mxu0 0
  %2769 = vmatpush1.bf16.msra.mxu0 0
  %2770 = vmatprep.subr.bf16.mxu0 0
  %2771 = vmatpush1.bf16.msra.mxu0 0
  %2772 = vmatprep.subr.bf16.mxu0 0
  %2773 = vmatpush1.bf16.msra.mxu0 0
  %2774 = vmatprep.mubr.bf16.mxu0 0
  %2775 = vmatmul.mubr.bf16.gmra.mrb[0].mxu0 %v2672
  %v2776 = vpop.f32.mrb[0].mxu0
  %v2777 = vadd.f32 0.0, %v2776
  %v2778 = vpop.f32.mrb[0].mxu0
  %v2779 = vpop.f32.mrb[0].mxu0
  %v2780 = vadd.f32 0.0, %v2779
  %v2781 = vpop.f32.mrb[0].mxu0
  %2782 = vmatprep.mubr.bf16.mxu0 0
  %2783 = vmatmul.mubr.bf16.gmra.mrb[0].mxu0 %v2673
  %v2784 = vpop.f32.mrb[0].mxu0
  %v2785 = vadd.f32 0.0, %v2784
  %v2786 = vpop.f32.mrb[0].mxu0
  %v2787 = vpop.f32.mrb[0].mxu0
  %v2788 = vadd.f32 0.0, %v2787
  %v2789 = vpop.f32.mrb[0].mxu0
  %2790 = vmatprep.mubr.bf16.mxu0 0
  %2791 = vmatmul.mubr.bf16.gmra.mrb[0].mxu0 %v2674
  %v2792 = vpop.f32.mrb[0].mxu0
  %v2793 = vadd.f32 0.0, %v2792
  %v2794 = vpop.f32.mrb[0].mxu0
  %v2795 = vpop.f32.mrb[0].mxu0
  %v2796 = vadd.f32 0.0, %v2795
  %v2797 = vpop.f32.mrb[0].mxu0
  %2798 = vmatprep.mubr.bf16.mxu0 0
  %2799 = vmatmul.mubr.bf16.gmra.mrb[0].mxu0 %v2675
  %v2800 = vpop.f32.mrb[0].mxu0
  %v2801 = vadd.f32 0.0, %v2800
  %v2802 = vpop.f32.mrb[0].mxu0
  %v2803 = vpop.f32.mrb[0].mxu0
  %v2804 = vadd.f32 0.0, %v2803
  %v2805 = vpop.f32.mrb[0].mxu0
  %2806 = vmatprep.mubr.bf16.mxu0 0
  %2807 = vmatmul.mubr.bf16.gmra.mrb[0].mxu0 %v2676
  %v2808 = vpop.f32.mrb[0].mxu0
  %v2809 = vadd.f32 0.0, %v2808
  %v2810 = vpop.f32.mrb[0].mxu0
  %v2811 = vpop.f32.mrb[0].mxu0
  %v2812 = vpop.f32.mrb[0].mxu0
  %2813 = vdwg.mxu0
  %v2814 = vadd.f32 %v2663, %v2777
  %v2815 = vadd.f32 %v2664, %v2780
  %v2816 = vadd.f32 %v2665, %v2785
  %v2817 = vadd.f32 %v2666, %v2788
  %v2818 = vadd.f32 %v2667, %v2793
  %v2819 = vadd.f32 %v2668, %v2796
  %v2820 = vadd.f32 %v2669, %v2801
  %v2821 = vadd.f32 %v2670, %v2804
  %v2822 = vadd.f32 %v2671, %v2809
  %v2823 = vpack.c.bf16 %v1705, %v1704
  %v2824 = vpack.c.bf16 %v1707, %v1706
  %v2825 = vpack.c.bf16 %v1709, %v1708
  %v2826 = vpack.c.bf16 %v1711, %v1710
  %v2827 = vpack.c.bf16 %v1712, %v1712
  %s2828 = scalar_lea.vmem %s3, 448
  %v2829 = vld [vmem:[%s2828] sm:$0xf]
  %v2830 = vld [vmem:[%s2828 + $0x4] sm:$0xf]
  %v2831 = vld [vmem:[%s2828 + $0x8] sm:$0xf]
  %v2832 = vld [vmem:[%s2828 + $0xc] sm:$0xf]
  %v2833 = vld [vmem:[%s2828 + $0x10] sm:$0xf]
  %v2834 = vld [vmem:[%s2828 + $0x14] sm:$0xf]
  %v2835 = vld [vmem:[%s2828 + $0x18] sm:$0xf]
  %v2836 = vld [vmem:[%s2828 + $0x1c] sm:$0xf]
  %v2837 = vld [vmem:[%s2828 + $0x20] sm:$0xf]
  %v2838 = vld [vmem:[%s2828 + $0x24] sm:$0xf]
  %v2839 = vld [vmem:[%s2828 + $0x28] sm:$0xf]
  %v2840 = vld [vmem:[%s2828 + $0x2c] sm:$0xf]
  %v2841 = vld [vmem:[%s2828 + $0x30] sm:$0xf]
  %v2842 = vld [vmem:[%s2828 + $0x34] sm:$0xf]
  %v2843 = vld [vmem:[%s2828 + $0x38] sm:$0xf]
  %v2844 = vld [vmem:[%s2828 + $0x3c] sm:$0xf]
  %v2861 = vunpack.c.l.b16 %v2829
  %v2862 = vunpack.c.l.b16 %v2830
  %v2863 = vunpack.c.l.b16 %v2831
  %v2864 = vunpack.c.l.b16 %v2832
  %v2865 = vunpack.c.l.b16 %v2833
  %v2866 = vunpack.c.l.b16 %v2834
  %v2867 = vunpack.c.l.b16 %v2835
  %v2868 = vunpack.c.l.b16 %v2836
  %v2869 = vunpack.c.l.b16 %v2837
  %v2870 = vunpack.c.l.b16 %v2838
  %v2871 = vunpack.c.l.b16 %v2839
  %v2872 = vunpack.c.l.b16 %v2840
  %v2873 = vunpack.c.l.b16 %v2841
  %v2874 = vunpack.c.l.b16 %v2842
  %v2875 = vunpack.c.l.b16 %v2843
  %v2876 = vunpack.c.l.b16 %v2844
  %v2877 = vpack.c.b16 %v2862, %v2861
  %v2878 = vpack.c.b16 %v2864, %v2863
  %v2879 = vpack.c.b16 %v2866, %v2865
  %v2880 = vpack.c.b16 %v2868, %v2867
  %v2881 = vpack.c.b16 %v2870, %v2869
  %v2882 = vpack.c.b16 %v2872, %v2871
  %v2883 = vpack.c.b16 %v2874, %v2873
  %v2884 = vpack.c.b16 %v2876, %v2875
  %2893 = vmatprep.subr.bf16.mxu0 0
  %2894 = vmatpush1.bf16.msra.mxu0 %v2877
  %2895 = vmatprep.subr.bf16.mxu0 0
  %2896 = vmatpush1.bf16.msra.mxu0 %v2878
  %2897 = vmatprep.subr.bf16.mxu0 0
  %2898 = vmatpush1.bf16.msra.mxu0 %v2879
  %2899 = vmatprep.subr.bf16.mxu0 0
  %2900 = vmatpush1.bf16.msra.mxu0 %v2880
  %2901 = vmatprep.subr.bf16.mxu0 0
  %2902 = vmatpush1.bf16.msra.mxu0 %v2881
  %2903 = vmatprep.subr.bf16.mxu0 0
  %2904 = vmatpush1.bf16.msra.mxu0 %v2882
  %2905 = vmatprep.subr.bf16.mxu0 0
  %2906 = vmatpush1.bf16.msra.mxu0 %v2883
  %2907 = vmatprep.subr.bf16.mxu0 0
  %2908 = vmatpush1.bf16.msra.mxu0 %v2884
  %2909 = vmatprep.subr.bf16.mxu0 0
  %2910 = vmatpush1.bf16.msra.mxu0 0
  %2911 = vmatprep.subr.bf16.mxu0 0
  %2912 = vmatpush1.bf16.msra.mxu0 0
  %2913 = vmatprep.subr.bf16.mxu0 0
  %2914 = vmatpush1.bf16.msra.mxu0 0
  %2915 = vmatprep.subr.bf16.mxu0 0
  %2916 = vmatpush1.bf16.msra.mxu0 0
  %2917 = vmatprep.subr.bf16.mxu0 0
  %2918 = vmatpush1.bf16.msra.mxu0 0
  %2919 = vmatprep.subr.bf16.mxu0 0
  %2920 = vmatpush1.bf16.msra.mxu0 0
  %2921 = vmatprep.subr.bf16.mxu0 0
  %2922 = vmatpush1.bf16.msra.mxu0 0
  %2923 = vmatprep.subr.bf16.mxu0 0
  %2924 = vmatpush1.bf16.msra.mxu0 0
  %2925 = vmatprep.mubr.bf16.mxu0 0
  %2926 = vmatmul.mubr.bf16.gmra.mrb[0].mxu0 %v2823
  %v2927 = vpop.f32.mrb[0].mxu0
  %v2928 = vadd.f32 0.0, %v2927
  %v2929 = vpop.f32.mrb[0].mxu0
  %v2930 = vpop.f32.mrb[0].mxu0
  %v2931 = vadd.f32 0.0, %v2930
  %v2932 = vpop.f32.mrb[0].mxu0
  %2933 = vmatprep.mubr.bf16.mxu0 0
  %2934 = vmatmul.mubr.bf16.gmra.mrb[0].mxu0 %v2824
  %v2935 = vpop.f32.mrb[0].mxu0
  %v2936 = vadd.f32 0.0, %v2935
  %v2937 = vpop.f32.mrb[0].mxu0
  %v2938 = vpop.f32.mrb[0].mxu0
  %v2939 = vadd.f32 0.0, %v2938
  %v2940 = vpop.f32.mrb[0].mxu0
  %2941 = vmatprep.mubr.bf16.mxu0 0
  %2942 = vmatmul.mubr.bf16.gmra.mrb[0].mxu0 %v2825
  %v2943 = vpop.f32.mrb[0].mxu0
  %v2944 = vadd.f32 0.0, %v2943
  %v2945 = vpop.f32.mrb[0].mxu0
  %v2946 = vpop.f32.mrb[0].mxu0
  %v2947 = vadd.f32 0.0, %v2946
  %v2948 = vpop.f32.mrb[0].mxu0
  %2949 = vmatprep.mubr.bf16.mxu0 0
  %2950 = vmatmul.mubr.bf16.gmra.mrb[0].mxu0 %v2826
  %v2951 = vpop.f32.mrb[0].mxu0
  %v2952 = vadd.f32 0.0, %v2951
  %v2953 = vpop.f32.mrb[0].mxu0
  %v2954 = vpop.f32.mrb[0].mxu0
  %v2955 = vadd.f32 0.0, %v2954
  %v2956 = vpop.f32.mrb[0].mxu0
  %2957 = vmatprep.mubr.bf16.mxu0 0
  %2958 = vmatmul.mubr.bf16.gmra.mrb[0].mxu0 %v2827
  %v2959 = vpop.f32.mrb[0].mxu0
  %v2960 = vadd.f32 0.0, %v2959
  %v2961 = vpop.f32.mrb[0].mxu0
  %v2962 = vpop.f32.mrb[0].mxu0
  %v2963 = vpop.f32.mrb[0].mxu0
  %2964 = vdwg.mxu0
  %v2965 = vadd.f32 %v2814, %v2928
  %v2966 = vadd.f32 %v2815, %v2931
  %v2967 = vadd.f32 %v2816, %v2936
  %v2968 = vadd.f32 %v2817, %v2939
  %v2969 = vadd.f32 %v2818, %v2944
  %v2970 = vadd.f32 %v2819, %v2947
  %v2971 = vadd.f32 %v2820, %v2952
  %v2972 = vadd.f32 %v2821, %v2955
  %v2973 = vadd.f32 %v2822, %v2960
  %v2974 = vpack.c.bf16 %v1714, %v1713
  %v2975 = vpack.c.bf16 %v1716, %v1715
  %v2976 = vpack.c.bf16 %v1718, %v1717
  %v2977 = vpack.c.bf16 %v1720, %v1719
  %v2978 = vpack.c.bf16 %v1721, %v1721
  %s2979 = scalar_lea.vmem %s3, 512
  %v2980 = vld [vmem:[%s2979] sm:$0xf]
  %v2981 = vld [vmem:[%s2979 + $0x4] sm:$0xf]
  %v2982 = vld [vmem:[%s2979 + $0x8] sm:$0xf]
  %v2983 = vld [vmem:[%s2979 + $0xc] sm:$0xf]
  %v2984 = vld [vmem:[%s2979 + $0x10] sm:$0xf]
  %v2985 = vld [vmem:[%s2979 + $0x14] sm:$0xf]
  %v2986 = vld [vmem:[%s2979 + $0x18] sm:$0xf]
  %v2987 = vld [vmem:[%s2979 + $0x1c] sm:$0xf]
  %v2988 = vld [vmem:[%s2979 + $0x20] sm:$0xf]
  %v2989 = vld [vmem:[%s2979 + $0x24] sm:$0xf]
  %v2990 = vld [vmem:[%s2979 + $0x28] sm:$0xf]
  %v2991 = vld [vmem:[%s2979 + $0x2c] sm:$0xf]
  %v2992 = vld [vmem:[%s2979 + $0x30] sm:$0xf]
  %v2993 = vld [vmem:[%s2979 + $0x34] sm:$0xf]
  %v2994 = vld [vmem:[%s2979 + $0x38] sm:$0xf]
  %v2995 = vld [vmem:[%s2979 + $0x3c] sm:$0xf]
  %v3012 = vunpack.c.l.b16 %v2980
  %v3013 = vunpack.c.l.b16 %v2981
  %v3014 = vunpack.c.l.b16 %v2982
  %v3015 = vunpack.c.l.b16 %v2983
  %v3016 = vunpack.c.l.b16 %v2984
  %v3017 = vunpack.c.l.b16 %v2985
  %v3018 = vunpack.c.l.b16 %v2986
  %v3019 = vunpack.c.l.b16 %v2987
  %v3020 = vunpack.c.l.b16 %v2988
  %v3021 = vunpack.c.l.b16 %v2989
  %v3022 = vunpack.c.l.b16 %v2990
  %v3023 = vunpack.c.l.b16 %v2991
  %v3024 = vunpack.c.l.b16 %v2992
  %v3025 = vunpack.c.l.b16 %v2993
  %v3026 = vunpack.c.l.b16 %v2994
  %v3027 = vunpack.c.l.b16 %v2995
  %v3028 = vpack.c.b16 %v3013, %v3012
  %v3029 = vpack.c.b16 %v3015, %v3014
  %v3030 = vpack.c.b16 %v3017, %v3016
  %v3031 = vpack.c.b16 %v3019, %v3018
  %v3032 = vpack.c.b16 %v3021, %v3020
  %v3033 = vpack.c.b16 %v3023, %v3022
  %v3034 = vpack.c.b16 %v3025, %v3024
  %v3035 = vpack.c.b16 %v3027, %v3026
  %3044 = vmatprep.subr.bf16.mxu0 0
  %3045 = vmatpush1.bf16.msra.mxu0 %v3028
  %3046 = vmatprep.subr.bf16.mxu0 0
  %3047 = vmatpush1.bf16.msra.mxu0 %v3029
  %3048 = vmatprep.subr.bf16.mxu0 0
  %3049 = vmatpush1.bf16.msra.mxu0 %v3030
  %3050 = vmatprep.subr.bf16.mxu0 0
  %3051 = vmatpush1.bf16.msra.mxu0 %v3031
  %3052 = vmatprep.subr.bf16.mxu0 0
  %3053 = vmatpush1.bf16.msra.mxu0 %v3032
  %3054 = vmatprep.subr.bf16.mxu0 0
  %3055 = vmatpush1.bf16.msra.mxu0 %v3033
  %3056 = vmatprep.subr.bf16.mxu0 0
  %3057 = vmatpush1.bf16.msra.mxu0 %v3034
  %3058 = vmatprep.subr.bf16.mxu0 0
  %3059 = vmatpush1.bf16.msra.mxu0 %v3035
  %3060 = vmatprep.subr.bf16.mxu0 0
  %3061 = vmatpush1.bf16.msra.mxu0 0
  %3062 = vmatprep.subr.bf16.mxu0 0
  %3063 = vmatpush1.bf16.msra.mxu0 0
  %3064 = vmatprep.subr.bf16.mxu0 0
  %3065 = vmatpush1.bf16.msra.mxu0 0
  %3066 = vmatprep.subr.bf16.mxu0 0
  %3067 = vmatpush1.bf16.msra.mxu0 0
  %3068 = vmatprep.subr.bf16.mxu0 0
  %3069 = vmatpush1.bf16.msra.mxu0 0
  %3070 = vmatprep.subr.bf16.mxu0 0
  %3071 = vmatpush1.bf16.msra.mxu0 0
  %3072 = vmatprep.subr.bf16.mxu0 0
  %3073 = vmatpush1.bf16.msra.mxu0 0
  %3074 = vmatprep.subr.bf16.mxu0 0
  %3075 = vmatpush1.bf16.msra.mxu0 0
  %3076 = vmatprep.mubr.bf16.mxu0 0
  %3077 = vmatmul.mubr.bf16.gmra.mrb[0].mxu0 %v2974
  %v3078 = vpop.f32.mrb[0].mxu0
  %v3079 = vadd.f32 0.0, %v3078
  %v3080 = vpop.f32.mrb[0].mxu0
  %v3081 = vpop.f32.mrb[0].mxu0
  %v3082 = vadd.f32 0.0, %v3081
  %v3083 = vpop.f32.mrb[0].mxu0
  %3084 = vmatprep.mubr.bf16.mxu0 0
  %3085 = vmatmul.mubr.bf16.gmra.mrb[0].mxu0 %v2975
  %v3086 = vpop.f32.mrb[0].mxu0
  %v3087 = vadd.f32 0.0, %v3086
  %v3088 = vpop.f32.mrb[0].mxu0
  %v3089 = vpop.f32.mrb[0].mxu0
  %v3090 = vadd.f32 0.0, %v3089
  %v3091 = vpop.f32.mrb[0].mxu0
  %3092 = vmatprep.mubr.bf16.mxu0 0
  %3093 = vmatmul.mubr.bf16.gmra.mrb[0].mxu0 %v2976
  %v3094 = vpop.f32.mrb[0].mxu0
  %v3095 = vadd.f32 0.0, %v3094
  %v3096 = vpop.f32.mrb[0].mxu0
  %v3097 = vpop.f32.mrb[0].mxu0
  %v3098 = vadd.f32 0.0, %v3097
  %v3099 = vpop.f32.mrb[0].mxu0
  %3100 = vmatprep.mubr.bf16.mxu0 0
  %3101 = vmatmul.mubr.bf16.gmra.mrb[0].mxu0 %v2977
  %v3102 = vpop.f32.mrb[0].mxu0
  %v3103 = vadd.f32 0.0, %v3102
  %v3104 = vpop.f32.mrb[0].mxu0
  %v3105 = vpop.f32.mrb[0].mxu0
  %v3106 = vadd.f32 0.0, %v3105
  %v3107 = vpop.f32.mrb[0].mxu0
  %3108 = vmatprep.mubr.bf16.mxu0 0
  %3109 = vmatmul.mubr.bf16.gmra.mrb[0].mxu0 %v2978
  %v3110 = vpop.f32.mrb[0].mxu0
  %v3111 = vadd.f32 0.0, %v3110
  %v3112 = vpop.f32.mrb[0].mxu0
  %v3113 = vpop.f32.mrb[0].mxu0
  %v3114 = vpop.f32.mrb[0].mxu0
  %3115 = vdwg.mxu0
  %v3116 = vadd.f32 %v2965, %v3079
  %v3117 = vadd.f32 %v2966, %v3082
  %v3118 = vadd.f32 %v2967, %v3087
  %v3119 = vadd.f32 %v2968, %v3090
  %v3120 = vadd.f32 %v2969, %v3095
  %v3121 = vadd.f32 %v2970, %v3098
  %v3122 = vadd.f32 %v2971, %v3103
  %v3123 = vadd.f32 %v2972, %v3106
  %v3124 = vadd.f32 %v2973, %v3111
  %v3125 = vpack.c.bf16 %v1723, %v1722
  %v3126 = vpack.c.bf16 %v1725, %v1724
  %v3127 = vpack.c.bf16 %v1727, %v1726
  %v3128 = vpack.c.bf16 %v1729, %v1728
  %v3129 = vpack.c.bf16 %v1730, %v1730
  %s3130 = scalar_lea.vmem %s3, 576
  %v3131 = vld [vmem:[%s3130] sm:$0xf]
  %v3132 = vld [vmem:[%s3130 + $0x4] sm:$0xf]
  %v3133 = vld [vmem:[%s3130 + $0x8] sm:$0xf]
  %v3134 = vld [vmem:[%s3130 + $0xc] sm:$0xf]
  %v3135 = vld [vmem:[%s3130 + $0x10] sm:$0xf]
  %v3136 = vld [vmem:[%s3130 + $0x14] sm:$0xf]
  %v3137 = vld [vmem:[%s3130 + $0x18] sm:$0xf]
  %v3138 = vld [vmem:[%s3130 + $0x1c] sm:$0xf]
  %v3139 = vld [vmem:[%s3130 + $0x20] sm:$0xf]
  %v3140 = vld [vmem:[%s3130 + $0x24] sm:$0xf]
  %v3141 = vld [vmem:[%s3130 + $0x28] sm:$0xf]
  %v3142 = vld [vmem:[%s3130 + $0x2c] sm:$0xf]
  %v3143 = vld [vmem:[%s3130 + $0x30] sm:$0xf]
  %v3144 = vld [vmem:[%s3130 + $0x34] sm:$0xf]
  %v3145 = vld [vmem:[%s3130 + $0x38] sm:$0xf]
  %v3146 = vld [vmem:[%s3130 + $0x3c] sm:$0xf]
  %v3163 = vunpack.c.l.b16 %v3131
  %v3164 = vunpack.c.l.b16 %v3132
  %v3165 = vunpack.c.l.b16 %v3133
  %v3166 = vunpack.c.l.b16 %v3134
  %v3167 = vunpack.c.l.b16 %v3135
  %v3168 = vunpack.c.l.b16 %v3136
  %v3169 = vunpack.c.l.b16 %v3137
  %v3170 = vunpack.c.l.b16 %v3138
  %v3171 = vunpack.c.l.b16 %v3139
  %v3172 = vunpack.c.l.b16 %v3140
  %v3173 = vunpack.c.l.b16 %v3141
  %v3174 = vunpack.c.l.b16 %v3142
  %v3175 = vunpack.c.l.b16 %v3143
  %v3176 = vunpack.c.l.b16 %v3144
  %v3177 = vunpack.c.l.b16 %v3145
  %v3178 = vunpack.c.l.b16 %v3146
  %v3179 = vpack.c.b16 %v3164, %v3163
  %v3180 = vpack.c.b16 %v3166, %v3165
  %v3181 = vpack.c.b16 %v3168, %v3167
  %v3182 = vpack.c.b16 %v3170, %v3169
  %v3183 = vpack.c.b16 %v3172, %v3171
  %v3184 = vpack.c.b16 %v3174, %v3173
  %v3185 = vpack.c.b16 %v3176, %v3175
  %v3186 = vpack.c.b16 %v3178, %v3177
  %3195 = vmatprep.subr.bf16.mxu0 0
  %3196 = vmatpush1.bf16.msra.mxu0 %v3179
  %3197 = vmatprep.subr.bf16.mxu0 0
  %3198 = vmatpush1.bf16.msra.mxu0 %v3180
  %3199 = vmatprep.subr.bf16.mxu0 0
  %3200 = vmatpush1.bf16.msra.mxu0 %v3181
  %3201 = vmatprep.subr.bf16.mxu0 0
  %3202 = vmatpush1.bf16.msra.mxu0 %v3182
  %3203 = vmatprep.subr.bf16.mxu0 0
  %3204 = vmatpush1.bf16.msra.mxu0 %v3183
  %3205 = vmatprep.subr.bf16.mxu0 0
  %3206 = vmatpush1.bf16.msra.mxu0 %v3184
  %3207 = vmatprep.subr.bf16.mxu0 0
  %3208 = vmatpush1.bf16.msra.mxu0 %v3185
  %3209 = vmatprep.subr.bf16.mxu0 0
  %3210 = vmatpush1.bf16.msra.mxu0 %v3186
  %3211 = vmatprep.subr.bf16.mxu0 0
  %3212 = vmatpush1.bf16.msra.mxu0 0
  %3213 = vmatprep.subr.bf16.mxu0 0
  %3214 = vmatpush1.bf16.msra.mxu0 0
  %3215 = vmatprep.subr.bf16.mxu0 0
  %3216 = vmatpush1.bf16.msra.mxu0 0
  %3217 = vmatprep.subr.bf16.mxu0 0
  %3218 = vmatpush1.bf16.msra.mxu0 0
  %3219 = vmatprep.subr.bf16.mxu0 0
  %3220 = vmatpush1.bf16.msra.mxu0 0
  %3221 = vmatprep.subr.bf16.mxu0 0
  %3222 = vmatpush1.bf16.msra.mxu0 0
  %3223 = vmatprep.subr.bf16.mxu0 0
  %3224 = vmatpush1.bf16.msra.mxu0 0
  %3225 = vmatprep.subr.bf16.mxu0 0
  %3226 = vmatpush1.bf16.msra.mxu0 0
  %3227 = vmatprep.mubr.bf16.mxu0 0
  %3228 = vmatmul.mubr.bf16.gmra.mrb[0].mxu0 %v3125
  %v3229 = vpop.f32.mrb[0].mxu0
  %v3230 = vadd.f32 0.0, %v3229
  %v3231 = vpop.f32.mrb[0].mxu0
  %v3232 = vpop.f32.mrb[0].mxu0
  %v3233 = vadd.f32 0.0, %v3232
  %v3234 = vpop.f32.mrb[0].mxu0
  %3235 = vmatprep.mubr.bf16.mxu0 0
  %3236 = vmatmul.mubr.bf16.gmra.mrb[0].mxu0 %v3126
  %v3237 = vpop.f32.mrb[0].mxu0
  %v3238 = vadd.f32 0.0, %v3237
  %v3239 = vpop.f32.mrb[0].mxu0
  %v3240 = vpop.f32.mrb[0].mxu0
  %v3241 = vadd.f32 0.0, %v3240
  %v3242 = vpop.f32.mrb[0].mxu0
  %3243 = vmatprep.mubr.bf16.mxu0 0
  %3244 = vmatmul.mubr.bf16.gmra.mrb[0].mxu0 %v3127
  %v3245 = vpop.f32.mrb[0].mxu0
  %v3246 = vadd.f32 0.0, %v3245
  %v3247 = vpop.f32.mrb[0].mxu0
  %v3248 = vpop.f32.mrb[0].mxu0
  %v3249 = vadd.f32 0.0, %v3248
  %v3250 = vpop.f32.mrb[0].mxu0
  %3251 = vmatprep.mubr.bf16.mxu0 0
  %3252 = vmatmul.mubr.bf16.gmra.mrb[0].mxu0 %v3128
  %v3253 = vpop.f32.mrb[0].mxu0
  %v3254 = vadd.f32 0.0, %v3253
  %v3255 = vpop.f32.mrb[0].mxu0
  %v3256 = vpop.f32.mrb[0].mxu0
  %v3257 = vadd.f32 0.0, %v3256
  %v3258 = vpop.f32.mrb[0].mxu0
  %3259 = vmatprep.mubr.bf16.mxu0 0
  %3260 = vmatmul.mubr.bf16.gmra.mrb[0].mxu0 %v3129
  %v3261 = vpop.f32.mrb[0].mxu0
  %v3262 = vadd.f32 0.0, %v3261
  %v3263 = vpop.f32.mrb[0].mxu0
  %v3264 = vpop.f32.mrb[0].mxu0
  %v3265 = vpop.f32.mrb[0].mxu0
  %3266 = vdwg.mxu0
  %v3267 = vadd.f32 %v3116, %v3230
  %v3268 = vadd.f32 %v3117, %v3233
  %v3269 = vadd.f32 %v3118, %v3238
  %v3270 = vadd.f32 %v3119, %v3241
  %v3271 = vadd.f32 %v3120, %v3246
  %v3272 = vadd.f32 %v3121, %v3249
  %v3273 = vadd.f32 %v3122, %v3254
  %v3274 = vadd.f32 %v3123, %v3257
  %v3275 = vadd.f32 %v3124, %v3262
  %v3276 = vpack.c.bf16 %v1732, %v1731
  %v3277 = vpack.c.bf16 %v1734, %v1733
  %v3278 = vpack.c.bf16 %v1736, %v1735
  %v3279 = vpack.c.bf16 %v1738, %v1737
  %v3280 = vpack.c.bf16 %v1739, %v1739
  %s3281 = scalar_lea.vmem %s3, 640
  %v3282 = vld [vmem:[%s3281] sm:$0xf]
  %v3283 = vld [vmem:[%s3281 + $0x4] sm:$0xf]
  %v3284 = vld [vmem:[%s3281 + $0x8] sm:$0xf]
  %v3285 = vld [vmem:[%s3281 + $0xc] sm:$0xf]
  %v3286 = vld [vmem:[%s3281 + $0x10] sm:$0xf]
  %v3287 = vld [vmem:[%s3281 + $0x14] sm:$0xf]
  %v3288 = vld [vmem:[%s3281 + $0x18] sm:$0xf]
  %v3289 = vld [vmem:[%s3281 + $0x1c] sm:$0xf]
  %v3290 = vld [vmem:[%s3281 + $0x20] sm:$0xf]
  %v3291 = vld [vmem:[%s3281 + $0x24] sm:$0xf]
  %v3292 = vld [vmem:[%s3281 + $0x28] sm:$0xf]
  %v3293 = vld [vmem:[%s3281 + $0x2c] sm:$0xf]
  %v3294 = vld [vmem:[%s3281 + $0x30] sm:$0xf]
  %v3295 = vld [vmem:[%s3281 + $0x34] sm:$0xf]
  %v3296 = vld [vmem:[%s3281 + $0x38] sm:$0xf]
  %v3297 = vld [vmem:[%s3281 + $0x3c] sm:$0xf]
  %v3314 = vunpack.c.l.b16 %v3282
  %v3315 = vunpack.c.l.b16 %v3283
  %v3316 = vunpack.c.l.b16 %v3284
  %v3317 = vunpack.c.l.b16 %v3285
  %v3318 = vunpack.c.l.b16 %v3286
  %v3319 = vunpack.c.l.b16 %v3287
  %v3320 = vunpack.c.l.b16 %v3288
  %v3321 = vunpack.c.l.b16 %v3289
  %v3322 = vunpack.c.l.b16 %v3290
  %v3323 = vunpack.c.l.b16 %v3291
  %v3324 = vunpack.c.l.b16 %v3292
  %v3325 = vunpack.c.l.b16 %v3293
  %v3326 = vunpack.c.l.b16 %v3294
  %v3327 = vunpack.c.l.b16 %v3295
  %v3328 = vunpack.c.l.b16 %v3296
  %v3329 = vunpack.c.l.b16 %v3297
  %v3330 = vpack.c.b16 %v3315, %v3314
  %v3331 = vpack.c.b16 %v3317, %v3316
  %v3332 = vpack.c.b16 %v3319, %v3318
  %v3333 = vpack.c.b16 %v3321, %v3320
  %v3334 = vpack.c.b16 %v3323, %v3322
  %v3335 = vpack.c.b16 %v3325, %v3324
  %v3336 = vpack.c.b16 %v3327, %v3326
  %v3337 = vpack.c.b16 %v3329, %v3328
  %3346 = vmatprep.subr.bf16.mxu0 0
  %3347 = vmatpush1.bf16.msra.mxu0 %v3330
  %3348 = vmatprep.subr.bf16.mxu0 0
  %3349 = vmatpush1.bf16.msra.mxu0 %v3331
  %3350 = vmatprep.subr.bf16.mxu0 0
  %3351 = vmatpush1.bf16.msra.mxu0 %v3332
  %3352 = vmatprep.subr.bf16.mxu0 0
  %3353 = vmatpush1.bf16.msra.mxu0 %v3333
  %3354 = vmatprep.subr.bf16.mxu0 0
  %3355 = vmatpush1.bf16.msra.mxu0 %v3334
  %3356 = vmatprep.subr.bf16.mxu0 0
  %3357 = vmatpush1.bf16.msra.mxu0 %v3335
  %3358 = vmatprep.subr.bf16.mxu0 0
  %3359 = vmatpush1.bf16.msra.mxu0 %v3336
  %3360 = vmatprep.subr.bf16.mxu0 0
  %3361 = vmatpush1.bf16.msra.mxu0 %v3337
  %3362 = vmatprep.subr.bf16.mxu0 0
  %3363 = vmatpush1.bf16.msra.mxu0 0
  %3364 = vmatprep.subr.bf16.mxu0 0
  %3365 = vmatpush1.bf16.msra.mxu0 0
  %3366 = vmatprep.subr.bf16.mxu0 0
  %3367 = vmatpush1.bf16.msra.mxu0 0
  %3368 = vmatprep.subr.bf16.mxu0 0
  %3369 = vmatpush1.bf16.msra.mxu0 0
  %3370 = vmatprep.subr.bf16.mxu0 0
  %3371 = vmatpush1.bf16.msra.mxu0 0
  %3372 = vmatprep.subr.bf16.mxu0 0
  %3373 = vmatpush1.bf16.msra.mxu0 0
  %3374 = vmatprep.subr.bf16.mxu0 0
  %3375 = vmatpush1.bf16.msra.mxu0 0
  %3376 = vmatprep.subr.bf16.mxu0 0
  %3377 = vmatpush1.bf16.msra.mxu0 0
  %3378 = vmatprep.mubr.bf16.mxu0 0
  %3379 = vmatmul.mubr.bf16.gmra.mrb[0].mxu0 %v3276
  %v3380 = vpop.f32.mrb[0].mxu0
  %v3381 = vadd.f32 0.0, %v3380
  %v3382 = vpop.f32.mrb[0].mxu0
  %v3383 = vpop.f32.mrb[0].mxu0
  %v3384 = vadd.f32 0.0, %v3383
  %v3385 = vpop.f32.mrb[0].mxu0
  %3386 = vmatprep.mubr.bf16.mxu0 0
  %3387 = vmatmul.mubr.bf16.gmra.mrb[0].mxu0 %v3277
  %v3388 = vpop.f32.mrb[0].mxu0
  %v3389 = vadd.f32 0.0, %v3388
  %v3390 = vpop.f32.mrb[0].mxu0
  %v3391 = vpop.f32.mrb[0].mxu0
  %v3392 = vadd.f32 0.0, %v3391
  %v3393 = vpop.f32.mrb[0].mxu0
  %3394 = vmatprep.mubr.bf16.mxu0 0
  %3395 = vmatmul.mubr.bf16.gmra.mrb[0].mxu0 %v3278
  %v3396 = vpop.f32.mrb[0].mxu0
  %v3397 = vadd.f32 0.0, %v3396
  %v3398 = vpop.f32.mrb[0].mxu0
  %v3399 = vpop.f32.mrb[0].mxu0
  %v3400 = vadd.f32 0.0, %v3399
  %v3401 = vpop.f32.mrb[0].mxu0
  %3402 = vmatprep.mubr.bf16.mxu0 0
  %3403 = vmatmul.mubr.bf16.gmra.mrb[0].mxu0 %v3279
  %v3404 = vpop.f32.mrb[0].mxu0
  %v3405 = vadd.f32 0.0, %v3404
  %v3406 = vpop.f32.mrb[0].mxu0
  %v3407 = vpop.f32.mrb[0].mxu0
  %v3408 = vadd.f32 0.0, %v3407
  %v3409 = vpop.f32.mrb[0].mxu0
  %3410 = vmatprep.mubr.bf16.mxu0 0
  %3411 = vmatmul.mubr.bf16.gmra.mrb[0].mxu0 %v3280
  %v3412 = vpop.f32.mrb[0].mxu0
  %v3413 = vadd.f32 0.0, %v3412
  %v3414 = vpop.f32.mrb[0].mxu0
  %v3415 = vpop.f32.mrb[0].mxu0
  %v3416 = vpop.f32.mrb[0].mxu0
  %3417 = vdwg.mxu0
  %v3418 = vadd.f32 %v3267, %v3381
  %v3419 = vadd.f32 %v3268, %v3384
  %v3420 = vadd.f32 %v3269, %v3389
  %v3421 = vadd.f32 %v3270, %v3392
  %v3422 = vadd.f32 %v3271, %v3397
  %v3423 = vadd.f32 %v3272, %v3400
  %v3424 = vadd.f32 %v3273, %v3405
  %v3425 = vadd.f32 %v3274, %v3408
  %v3426 = vadd.f32 %v3275, %v3413
  %v3427 = vpack.c.bf16 %v1741, %v1740
  %v3428 = vpack.c.bf16 %v1743, %v1742
  %v3429 = vpack.c.bf16 %v1745, %v1744
  %v3430 = vpack.c.bf16 %v1747, %v1746
  %v3431 = vpack.c.bf16 %v1748, %v1748
  %s3432 = scalar_lea.vmem %s3, 704
  %v3433 = vld [vmem:[%s3432] sm:$0xf]
  %v3434 = vld [vmem:[%s3432 + $0x4] sm:$0xf]
  %v3435 = vld [vmem:[%s3432 + $0x8] sm:$0xf]
  %v3436 = vld [vmem:[%s3432 + $0xc] sm:$0xf]
  %v3437 = vld [vmem:[%s3432 + $0x10] sm:$0xf]
  %v3438 = vld [vmem:[%s3432 + $0x14] sm:$0xf]
  %v3439 = vld [vmem:[%s3432 + $0x18] sm:$0xf]
  %v3440 = vld [vmem:[%s3432 + $0x1c] sm:$0xf]
  %v3441 = vld [vmem:[%s3432 + $0x20] sm:$0xf]
  %v3442 = vld [vmem:[%s3432 + $0x24] sm:$0xf]
  %v3443 = vld [vmem:[%s3432 + $0x28] sm:$0xf]
  %v3444 = vld [vmem:[%s3432 + $0x2c] sm:$0xf]
  %v3445 = vld [vmem:[%s3432 + $0x30] sm:$0xf]
  %v3446 = vld [vmem:[%s3432 + $0x34] sm:$0xf]
  %v3447 = vld [vmem:[%s3432 + $0x38] sm:$0xf]
  %v3448 = vld [vmem:[%s3432 + $0x3c] sm:$0xf]
  %v3465 = vunpack.c.l.b16 %v3433
  %v3466 = vunpack.c.l.b16 %v3434
  %v3467 = vunpack.c.l.b16 %v3435
  %v3468 = vunpack.c.l.b16 %v3436
  %v3469 = vunpack.c.l.b16 %v3437
  %v3470 = vunpack.c.l.b16 %v3438
  %v3471 = vunpack.c.l.b16 %v3439
  %v3472 = vunpack.c.l.b16 %v3440
  %v3473 = vunpack.c.l.b16 %v3441
  %v3474 = vunpack.c.l.b16 %v3442
  %v3475 = vunpack.c.l.b16 %v3443
  %v3476 = vunpack.c.l.b16 %v3444
  %v3477 = vunpack.c.l.b16 %v3445
  %v3478 = vunpack.c.l.b16 %v3446
  %v3479 = vunpack.c.l.b16 %v3447
  %v3480 = vunpack.c.l.b16 %v3448
  %v3481 = vpack.c.b16 %v3466, %v3465
  %v3482 = vpack.c.b16 %v3468, %v3467
  %v3483 = vpack.c.b16 %v3470, %v3469
  %v3484 = vpack.c.b16 %v3472, %v3471
  %v3485 = vpack.c.b16 %v3474, %v3473
  %v3486 = vpack.c.b16 %v3476, %v3475
  %v3487 = vpack.c.b16 %v3478, %v3477
  %v3488 = vpack.c.b16 %v3480, %v3479
  %3497 = vmatprep.subr.bf16.mxu0 0
  %3498 = vmatpush1.bf16.msra.mxu0 %v3481
  %3499 = vmatprep.subr.bf16.mxu0 0
  %3500 = vmatpush1.bf16.msra.mxu0 %v3482
  %3501 = vmatprep.subr.bf16.mxu0 0
  %3502 = vmatpush1.bf16.msra.mxu0 %v3483
  %3503 = vmatprep.subr.bf16.mxu0 0
  %3504 = vmatpush1.bf16.msra.mxu0 %v3484
  %3505 = vmatprep.subr.bf16.mxu0 0
  %3506 = vmatpush1.bf16.msra.mxu0 %v3485
  %3507 = vmatprep.subr.bf16.mxu0 0
  %3508 = vmatpush1.bf16.msra.mxu0 %v3486
  %3509 = vmatprep.subr.bf16.mxu0 0
  %3510 = vmatpush1.bf16.msra.mxu0 %v3487
  %3511 = vmatprep.subr.bf16.mxu0 0
  %3512 = vmatpush1.bf16.msra.mxu0 %v3488
  %3513 = vmatprep.subr.bf16.mxu0 0
  %3514 = vmatpush1.bf16.msra.mxu0 0
  %3515 = vmatprep.subr.bf16.mxu0 0
  %3516 = vmatpush1.bf16.msra.mxu0 0
  %3517 = vmatprep.subr.bf16.mxu0 0
  %3518 = vmatpush1.bf16.msra.mxu0 0
  %3519 = vmatprep.subr.bf16.mxu0 0
  %3520 = vmatpush1.bf16.msra.mxu0 0
  %3521 = vmatprep.subr.bf16.mxu0 0
  %3522 = vmatpush1.bf16.msra.mxu0 0
  %3523 = vmatprep.subr.bf16.mxu0 0
  %3524 = vmatpush1.bf16.msra.mxu0 0
  %3525 = vmatprep.subr.bf16.mxu0 0
  %3526 = vmatpush1.bf16.msra.mxu0 0
  %3527 = vmatprep.subr.bf16.mxu0 0
  %3528 = vmatpush1.bf16.msra.mxu0 0
  %3529 = vmatprep.mubr.bf16.mxu0 0
  %3530 = vmatmul.mubr.bf16.gmra.mrb[0].mxu0 %v3427
  %v3531 = vpop.f32.mrb[0].mxu0
  %v3532 = vadd.f32 0.0, %v3531
  %v3533 = vpop.f32.mrb[0].mxu0
  %v3534 = vpop.f32.mrb[0].mxu0
  %v3535 = vadd.f32 0.0, %v3534
  %v3536 = vpop.f32.mrb[0].mxu0
  %3537 = vmatprep.mubr.bf16.mxu0 0
  %3538 = vmatmul.mubr.bf16.gmra.mrb[0].mxu0 %v3428
  %v3539 = vpop.f32.mrb[0].mxu0
  %v3540 = vadd.f32 0.0, %v3539
  %v3541 = vpop.f32.mrb[0].mxu0
  %v3542 = vpop.f32.mrb[0].mxu0
  %v3543 = vadd.f32 0.0, %v3542
  %v3544 = vpop.f32.mrb[0].mxu0
  %3545 = vmatprep.mubr.bf16.mxu0 0
  %3546 = vmatmul.mubr.bf16.gmra.mrb[0].mxu0 %v3429
  %v3547 = vpop.f32.mrb[0].mxu0
  %v3548 = vadd.f32 0.0, %v3547
  %v3549 = vpop.f32.mrb[0].mxu0
  %v3550 = vpop.f32.mrb[0].mxu0
  %v3551 = vadd.f32 0.0, %v3550
  %v3552 = vpop.f32.mrb[0].mxu0
  %3553 = vmatprep.mubr.bf16.mxu0 0
  %3554 = vmatmul.mubr.bf16.gmra.mrb[0].mxu0 %v3430
  %v3555 = vpop.f32.mrb[0].mxu0
  %v3556 = vadd.f32 0.0, %v3555
  %v3557 = vpop.f32.mrb[0].mxu0
  %v3558 = vpop.f32.mrb[0].mxu0
  %v3559 = vadd.f32 0.0, %v3558
  %v3560 = vpop.f32.mrb[0].mxu0
  %3561 = vmatprep.mubr.bf16.mxu0 0
  %3562 = vmatmul.mubr.bf16.gmra.mrb[0].mxu0 %v3431
  %v3563 = vpop.f32.mrb[0].mxu0
  %v3564 = vadd.f32 0.0, %v3563
  %v3565 = vpop.f32.mrb[0].mxu0
  %v3566 = vpop.f32.mrb[0].mxu0
  %v3567 = vpop.f32.mrb[0].mxu0
  %3568 = vdwg.mxu0
  %v3569 = vadd.f32 %v3418, %v3532
  %v3570 = vadd.f32 %v3419, %v3535
  %v3571 = vadd.f32 %v3420, %v3540
  %v3572 = vadd.f32 %v3421, %v3543
  %v3573 = vadd.f32 %v3422, %v3548
  %v3574 = vadd.f32 %v3423, %v3551
  %v3575 = vadd.f32 %v3424, %v3556
  %v3576 = vadd.f32 %v3425, %v3559
  %v3577 = vadd.f32 %v3426, %v3564
  %v3578 = vpack.c.bf16 %v1750, %v1749
  %v3579 = vpack.c.bf16 %v1752, %v1751
  %v3580 = vpack.c.bf16 %v1754, %v1753
  %v3581 = vpack.c.bf16 %v1756, %v1755
  %v3582 = vpack.c.bf16 %v1757, %v1757
  %s3583 = scalar_lea.vmem %s3, 768
  %v3584 = vld [vmem:[%s3583] sm:$0xf]
  %v3585 = vld [vmem:[%s3583 + $0x4] sm:$0xf]
  %v3586 = vld [vmem:[%s3583 + $0x8] sm:$0xf]
  %v3587 = vld [vmem:[%s3583 + $0xc] sm:$0xf]
  %v3588 = vld [vmem:[%s3583 + $0x10] sm:$0xf]
  %v3589 = vld [vmem:[%s3583 + $0x14] sm:$0xf]
  %v3590 = vld [vmem:[%s3583 + $0x18] sm:$0xf]
  %v3591 = vld [vmem:[%s3583 + $0x1c] sm:$0xf]
  %v3592 = vld [vmem:[%s3583 + $0x20] sm:$0xf]
  %v3593 = vld [vmem:[%s3583 + $0x24] sm:$0xf]
  %v3594 = vld [vmem:[%s3583 + $0x28] sm:$0xf]
  %v3595 = vld [vmem:[%s3583 + $0x2c] sm:$0xf]
  %v3596 = vld [vmem:[%s3583 + $0x30] sm:$0xf]
  %v3597 = vld [vmem:[%s3583 + $0x34] sm:$0xf]
  %v3598 = vld [vmem:[%s3583 + $0x38] sm:$0xf]
  %v3599 = vld [vmem:[%s3583 + $0x3c] sm:$0xf]
  %v3616 = vunpack.c.l.b16 %v3584
  %v3617 = vunpack.c.l.b16 %v3585
  %v3618 = vunpack.c.l.b16 %v3586
  %v3619 = vunpack.c.l.b16 %v3587
  %v3620 = vunpack.c.l.b16 %v3588
  %v3621 = vunpack.c.l.b16 %v3589
  %v3622 = vunpack.c.l.b16 %v3590
  %v3623 = vunpack.c.l.b16 %v3591
  %v3624 = vunpack.c.l.b16 %v3592
  %v3625 = vunpack.c.l.b16 %v3593
  %v3626 = vunpack.c.l.b16 %v3594
  %v3627 = vunpack.c.l.b16 %v3595
  %v3628 = vunpack.c.l.b16 %v3596
  %v3629 = vunpack.c.l.b16 %v3597
  %v3630 = vunpack.c.l.b16 %v3598
  %v3631 = vunpack.c.l.b16 %v3599
  %v3632 = vpack.c.b16 %v3617, %v3616
  %v3633 = vpack.c.b16 %v3619, %v3618
  %v3634 = vpack.c.b16 %v3621, %v3620
  %v3635 = vpack.c.b16 %v3623, %v3622
  %v3636 = vpack.c.b16 %v3625, %v3624
  %v3637 = vpack.c.b16 %v3627, %v3626
  %v3638 = vpack.c.b16 %v3629, %v3628
  %v3639 = vpack.c.b16 %v3631, %v3630
  %3648 = vmatprep.subr.bf16.mxu0 0
  %3649 = vmatpush1.bf16.msra.mxu0 %v3632
  %3650 = vmatprep.subr.bf16.mxu0 0
  %3651 = vmatpush1.bf16.msra.mxu0 %v3633
  %3652 = vmatprep.subr.bf16.mxu0 0
  %3653 = vmatpush1.bf16.msra.mxu0 %v3634
  %3654 = vmatprep.subr.bf16.mxu0 0
  %3655 = vmatpush1.bf16.msra.mxu0 %v3635
  %3656 = vmatprep.subr.bf16.mxu0 0
  %3657 = vmatpush1.bf16.msra.mxu0 %v3636
  %3658 = vmatprep.subr.bf16.mxu0 0
  %3659 = vmatpush1.bf16.msra.mxu0 %v3637
  %3660 = vmatprep.subr.bf16.mxu0 0
  %3661 = vmatpush1.bf16.msra.mxu0 %v3638
  %3662 = vmatprep.subr.bf16.mxu0 0
  %3663 = vmatpush1.bf16.msra.mxu0 %v3639
  %3664 = vmatprep.subr.bf16.mxu0 0
  %3665 = vmatpush1.bf16.msra.mxu0 0
  %3666 = vmatprep.subr.bf16.mxu0 0
  %3667 = vmatpush1.bf16.msra.mxu0 0
  %3668 = vmatprep.subr.bf16.mxu0 0
  %3669 = vmatpush1.bf16.msra.mxu0 0
  %3670 = vmatprep.subr.bf16.mxu0 0
  %3671 = vmatpush1.bf16.msra.mxu0 0
  %3672 = vmatprep.subr.bf16.mxu0 0
  %3673 = vmatpush1.bf16.msra.mxu0 0
  %3674 = vmatprep.subr.bf16.mxu0 0
  %3675 = vmatpush1.bf16.msra.mxu0 0
  %3676 = vmatprep.subr.bf16.mxu0 0
  %3677 = vmatpush1.bf16.msra.mxu0 0
  %3678 = vmatprep.subr.bf16.mxu0 0
  %3679 = vmatpush1.bf16.msra.mxu0 0
  %3680 = vmatprep.mubr.bf16.mxu0 0
  %3681 = vmatmul.mubr.bf16.gmra.mrb[0].mxu0 %v3578
  %v3682 = vpop.f32.mrb[0].mxu0
  %v3683 = vadd.f32 0.0, %v3682
  %v3684 = vpop.f32.mrb[0].mxu0
  %v3685 = vpop.f32.mrb[0].mxu0
  %v3686 = vadd.f32 0.0, %v3685
  %v3687 = vpop.f32.mrb[0].mxu0
  %3688 = vmatprep.mubr.bf16.mxu0 0
  %3689 = vmatmul.mubr.bf16.gmra.mrb[0].mxu0 %v3579
  %v3690 = vpop.f32.mrb[0].mxu0
  %v3691 = vadd.f32 0.0, %v3690
  %v3692 = vpop.f32.mrb[0].mxu0
  %v3693 = vpop.f32.mrb[0].mxu0
  %v3694 = vadd.f32 0.0, %v3693
  %v3695 = vpop.f32.mrb[0].mxu0
  %3696 = vmatprep.mubr.bf16.mxu0 0
  %3697 = vmatmul.mubr.bf16.gmra.mrb[0].mxu0 %v3580
  %v3698 = vpop.f32.mrb[0].mxu0
  %v3699 = vadd.f32 0.0, %v3698
  %v3700 = vpop.f32.mrb[0].mxu0
  %v3701 = vpop.f32.mrb[0].mxu0
  %v3702 = vadd.f32 0.0, %v3701
  %v3703 = vpop.f32.mrb[0].mxu0
  %3704 = vmatprep.mubr.bf16.mxu0 0
  %3705 = vmatmul.mubr.bf16.gmra.mrb[0].mxu0 %v3581
  %v3706 = vpop.f32.mrb[0].mxu0
  %v3707 = vadd.f32 0.0, %v3706
  %v3708 = vpop.f32.mrb[0].mxu0
  %v3709 = vpop.f32.mrb[0].mxu0
  %v3710 = vadd.f32 0.0, %v3709
  %v3711 = vpop.f32.mrb[0].mxu0
  %3712 = vmatprep.mubr.bf16.mxu0 0
  %3713 = vmatmul.mubr.bf16.gmra.mrb[0].mxu0 %v3582
  %v3714 = vpop.f32.mrb[0].mxu0
  %v3715 = vadd.f32 0.0, %v3714
  %v3716 = vpop.f32.mrb[0].mxu0
  %v3717 = vpop.f32.mrb[0].mxu0
  %v3718 = vpop.f32.mrb[0].mxu0
  %3719 = vdwg.mxu0
  %v3720 = vadd.f32 %v3569, %v3683
  %v3721 = vadd.f32 %v3570, %v3686
  %v3722 = vadd.f32 %v3571, %v3691
  %v3723 = vadd.f32 %v3572, %v3694
  %v3724 = vadd.f32 %v3573, %v3699
  %v3725 = vadd.f32 %v3574, %v3702
  %v3726 = vadd.f32 %v3575, %v3707
  %v3727 = vadd.f32 %v3576, %v3710
  %v3728 = vadd.f32 %v3577, %v3715
  %v3729 = vpack.c.bf16 %v1759, %v1758
  %v3730 = vpack.c.bf16 %v1761, %v1760
  %v3731 = vpack.c.bf16 %v1763, %v1762
  %v3732 = vpack.c.bf16 %v1765, %v1764
  %v3733 = vpack.c.bf16 %v1766, %v1766
  %s3734 = scalar_lea.vmem %s3, 832
  %v3735 = vld [vmem:[%s3734] sm:$0xf]
  %v3736 = vld [vmem:[%s3734 + $0x4] sm:$0xf]
  %v3737 = vld [vmem:[%s3734 + $0x8] sm:$0xf]
  %v3738 = vld [vmem:[%s3734 + $0xc] sm:$0xf]
  %v3739 = vld [vmem:[%s3734 + $0x10] sm:$0xf]
  %v3740 = vld [vmem:[%s3734 + $0x14] sm:$0xf]
  %v3741 = vld [vmem:[%s3734 + $0x18] sm:$0xf]
  %v3742 = vld [vmem:[%s3734 + $0x1c] sm:$0xf]
  %v3743 = vld [vmem:[%s3734 + $0x20] sm:$0xf]
  %v3744 = vld [vmem:[%s3734 + $0x24] sm:$0xf]
  %v3745 = vld [vmem:[%s3734 + $0x28] sm:$0xf]
  %v3746 = vld [vmem:[%s3734 + $0x2c] sm:$0xf]
  %v3747 = vld [vmem:[%s3734 + $0x30] sm:$0xf]
  %v3748 = vld [vmem:[%s3734 + $0x34] sm:$0xf]
  %v3749 = vld [vmem:[%s3734 + $0x38] sm:$0xf]
  %v3750 = vld [vmem:[%s3734 + $0x3c] sm:$0xf]
  %v3767 = vunpack.c.l.b16 %v3735
  %v3768 = vunpack.c.l.b16 %v3736
  %v3769 = vunpack.c.l.b16 %v3737
  %v3770 = vunpack.c.l.b16 %v3738
  %v3771 = vunpack.c.l.b16 %v3739
  %v3772 = vunpack.c.l.b16 %v3740
  %v3773 = vunpack.c.l.b16 %v3741
  %v3774 = vunpack.c.l.b16 %v3742
  %v3775 = vunpack.c.l.b16 %v3743
  %v3776 = vunpack.c.l.b16 %v3744
  %v3777 = vunpack.c.l.b16 %v3745
  %v3778 = vunpack.c.l.b16 %v3746
  %v3779 = vunpack.c.l.b16 %v3747
  %v3780 = vunpack.c.l.b16 %v3748
  %v3781 = vunpack.c.l.b16 %v3749
  %v3782 = vunpack.c.l.b16 %v3750
  %v3783 = vpack.c.b16 %v3768, %v3767
  %v3784 = vpack.c.b16 %v3770, %v3769
  %v3785 = vpack.c.b16 %v3772, %v3771
  %v3786 = vpack.c.b16 %v3774, %v3773
  %v3787 = vpack.c.b16 %v3776, %v3775
  %v3788 = vpack.c.b16 %v3778, %v3777
  %v3789 = vpack.c.b16 %v3780, %v3779
  %v3790 = vpack.c.b16 %v3782, %v3781
  %3799 = vmatprep.subr.bf16.mxu0 0
  %3800 = vmatpush1.bf16.msra.mxu0 %v3783
  %3801 = vmatprep.subr.bf16.mxu0 0
  %3802 = vmatpush1.bf16.msra.mxu0 %v3784
  %3803 = vmatprep.subr.bf16.mxu0 0
  %3804 = vmatpush1.bf16.msra.mxu0 %v3785
  %3805 = vmatprep.subr.bf16.mxu0 0
  %3806 = vmatpush1.bf16.msra.mxu0 %v3786
  %3807 = vmatprep.subr.bf16.mxu0 0
  %3808 = vmatpush1.bf16.msra.mxu0 %v3787
  %3809 = vmatprep.subr.bf16.mxu0 0
  %3810 = vmatpush1.bf16.msra.mxu0 %v3788
  %3811 = vmatprep.subr.bf16.mxu0 0
  %3812 = vmatpush1.bf16.msra.mxu0 %v3789
  %3813 = vmatprep.subr.bf16.mxu0 0
  %3814 = vmatpush1.bf16.msra.mxu0 %v3790
  %3815 = vmatprep.subr.bf16.mxu0 0
  %3816 = vmatpush1.bf16.msra.mxu0 0
  %3817 = vmatprep.subr.bf16.mxu0 0
  %3818 = vmatpush1.bf16.msra.mxu0 0
  %3819 = vmatprep.subr.bf16.mxu0 0
  %3820 = vmatpush1.bf16.msra.mxu0 0
  %3821 = vmatprep.subr.bf16.mxu0 0
  %3822 = vmatpush1.bf16.msra.mxu0 0
  %3823 = vmatprep.subr.bf16.mxu0 0
  %3824 = vmatpush1.bf16.msra.mxu0 0
  %3825 = vmatprep.subr.bf16.mxu0 0
  %3826 = vmatpush1.bf16.msra.mxu0 0
  %3827 = vmatprep.subr.bf16.mxu0 0
  %3828 = vmatpush1.bf16.msra.mxu0 0
  %3829 = vmatprep.subr.bf16.mxu0 0
  %3830 = vmatpush1.bf16.msra.mxu0 0
  %3831 = vmatprep.mubr.bf16.mxu0 0
  %3832 = vmatmul.mubr.bf16.gmra.mrb[0].mxu0 %v3729
  %v3833 = vpop.f32.mrb[0].mxu0
  %v3834 = vadd.f32 0.0, %v3833
  %v3835 = vpop.f32.mrb[0].mxu0
  %v3836 = vpop.f32.mrb[0].mxu0
  %v3837 = vadd.f32 0.0, %v3836
  %v3838 = vpop.f32.mrb[0].mxu0
  %3839 = vmatprep.mubr.bf16.mxu0 0
  %3840 = vmatmul.mubr.bf16.gmra.mrb[0].mxu0 %v3730
  %v3841 = vpop.f32.mrb[0].mxu0
  %v3842 = vadd.f32 0.0, %v3841
  %v3843 = vpop.f32.mrb[0].mxu0
  %v3844 = vpop.f32.mrb[0].mxu0
  %v3845 = vadd.f32 0.0, %v3844
  %v3846 = vpop.f32.mrb[0].mxu0
  %3847 = vmatprep.mubr.bf16.mxu0 0
  %3848 = vmatmul.mubr.bf16.gmra.mrb[0].mxu0 %v3731
  %v3849 = vpop.f32.mrb[0].mxu0
  %v3850 = vadd.f32 0.0, %v3849
  %v3851 = vpop.f32.mrb[0].mxu0
  %v3852 = vpop.f32.mrb[0].mxu0
  %v3853 = vadd.f32 0.0, %v3852
  %v3854 = vpop.f32.mrb[0].mxu0
  %3855 = vmatprep.mubr.bf16.mxu0 0
  %3856 = vmatmul.mubr.bf16.gmra.mrb[0].mxu0 %v3732
  %v3857 = vpop.f32.mrb[0].mxu0
  %v3858 = vadd.f32 0.0, %v3857
  %v3859 = vpop.f32.mrb[0].mxu0
  %v3860 = vpop.f32.mrb[0].mxu0
  %v3861 = vadd.f32 0.0, %v3860
  %v3862 = vpop.f32.mrb[0].mxu0
  %3863 = vmatprep.mubr.bf16.mxu0 0
  %3864 = vmatmul.mubr.bf16.gmra.mrb[0].mxu0 %v3733
  %v3865 = vpop.f32.mrb[0].mxu0
  %v3866 = vadd.f32 0.0, %v3865
  %v3867 = vpop.f32.mrb[0].mxu0
  %v3868 = vpop.f32.mrb[0].mxu0
  %v3869 = vpop.f32.mrb[0].mxu0
  %3870 = vdwg.mxu0
  %v3871 = vadd.f32 %v3720, %v3834
  %v3872 = vadd.f32 %v3721, %v3837
  %v3873 = vadd.f32 %v3722, %v3842
  %v3874 = vadd.f32 %v3723, %v3845
  %v3875 = vadd.f32 %v3724, %v3850
  %v3876 = vadd.f32 %v3725, %v3853
  %v3877 = vadd.f32 %v3726, %v3858
  %v3878 = vadd.f32 %v3727, %v3861
  %v3879 = vadd.f32 %v3728, %v3866
  %v3880 = vpack.c.bf16 %v1768, %v1767
  %v3881 = vpack.c.bf16 %v1770, %v1769
  %v3882 = vpack.c.bf16 %v1772, %v1771
  %v3883 = vpack.c.bf16 %v1774, %v1773
  %v3884 = vpack.c.bf16 %v1775, %v1775
  %s3885 = scalar_lea.vmem %s3, 896
  %v3886 = vld [vmem:[%s3885] sm:$0xf]
  %v3887 = vld [vmem:[%s3885 + $0x4] sm:$0xf]
  %v3888 = vld [vmem:[%s3885 + $0x8] sm:$0xf]
  %v3889 = vld [vmem:[%s3885 + $0xc] sm:$0xf]
  %v3890 = vld [vmem:[%s3885 + $0x10] sm:$0xf]
  %v3891 = vld [vmem:[%s3885 + $0x14] sm:$0xf]
  %v3892 = vld [vmem:[%s3885 + $0x18] sm:$0xf]
  %v3893 = vld [vmem:[%s3885 + $0x1c] sm:$0xf]
  %v3894 = vld [vmem:[%s3885 + $0x20] sm:$0xf]
  %v3895 = vld [vmem:[%s3885 + $0x24] sm:$0xf]
  %v3896 = vld [vmem:[%s3885 + $0x28] sm:$0xf]
  %v3897 = vld [vmem:[%s3885 + $0x2c] sm:$0xf]
  %v3898 = vld [vmem:[%s3885 + $0x30] sm:$0xf]
  %v3899 = vld [vmem:[%s3885 + $0x34] sm:$0xf]
  %v3900 = vld [vmem:[%s3885 + $0x38] sm:$0xf]
  %v3901 = vld [vmem:[%s3885 + $0x3c] sm:$0xf]
  %v3918 = vunpack.c.l.b16 %v3886
  %v3919 = vunpack.c.l.b16 %v3887
  %v3920 = vunpack.c.l.b16 %v3888
  %v3921 = vunpack.c.l.b16 %v3889
  %v3922 = vunpack.c.l.b16 %v3890
  %v3923 = vunpack.c.l.b16 %v3891
  %v3924 = vunpack.c.l.b16 %v3892
  %v3925 = vunpack.c.l.b16 %v3893
  %v3926 = vunpack.c.l.b16 %v3894
  %v3927 = vunpack.c.l.b16 %v3895
  %v3928 = vunpack.c.l.b16 %v3896
  %v3929 = vunpack.c.l.b16 %v3897
  %v3930 = vunpack.c.l.b16 %v3898
  %v3931 = vunpack.c.l.b16 %v3899
  %v3932 = vunpack.c.l.b16 %v3900
  %v3933 = vunpack.c.l.b16 %v3901
  %v3934 = vpack.c.b16 %v3919, %v3918
  %v3935 = vpack.c.b16 %v3921, %v3920
  %v3936 = vpack.c.b16 %v3923, %v3922
  %v3937 = vpack.c.b16 %v3925, %v3924
  %v3938 = vpack.c.b16 %v3927, %v3926
  %v3939 = vpack.c.b16 %v3929, %v3928
  %v3940 = vpack.c.b16 %v3931, %v3930
  %v3941 = vpack.c.b16 %v3933, %v3932
  %3950 = vmatprep.subr.bf16.mxu0 0
  %3951 = vmatpush1.bf16.msra.mxu0 %v3934
  %3952 = vmatprep.subr.bf16.mxu0 0
  %3953 = vmatpush1.bf16.msra.mxu0 %v3935
  %3954 = vmatprep.subr.bf16.mxu0 0
  %3955 = vmatpush1.bf16.msra.mxu0 %v3936
  %3956 = vmatprep.subr.bf16.mxu0 0
  %3957 = vmatpush1.bf16.msra.mxu0 %v3937
  %3958 = vmatprep.subr.bf16.mxu0 0
  %3959 = vmatpush1.bf16.msra.mxu0 %v3938
  %3960 = vmatprep.subr.bf16.mxu0 0
  %3961 = vmatpush1.bf16.msra.mxu0 %v3939
  %3962 = vmatprep.subr.bf16.mxu0 0
  %3963 = vmatpush1.bf16.msra.mxu0 %v3940
  %3964 = vmatprep.subr.bf16.mxu0 0
  %3965 = vmatpush1.bf16.msra.mxu0 %v3941
  %3966 = vmatprep.subr.bf16.mxu0 0
  %3967 = vmatpush1.bf16.msra.mxu0 0
  %3968 = vmatprep.subr.bf16.mxu0 0
  %3969 = vmatpush1.bf16.msra.mxu0 0
  %3970 = vmatprep.subr.bf16.mxu0 0
  %3971 = vmatpush1.bf16.msra.mxu0 0
  %3972 = vmatprep.subr.bf16.mxu0 0
  %3973 = vmatpush1.bf16.msra.mxu0 0
  %3974 = vmatprep.subr.bf16.mxu0 0
  %3975 = vmatpush1.bf16.msra.mxu0 0
  %3976 = vmatprep.subr.bf16.mxu0 0
  %3977 = vmatpush1.bf16.msra.mxu0 0
  %3978 = vmatprep.subr.bf16.mxu0 0
  %3979 = vmatpush1.bf16.msra.mxu0 0
  %3980 = vmatprep.subr.bf16.mxu0 0
  %3981 = vmatpush1.bf16.msra.mxu0 0
  %3982 = vmatprep.mubr.bf16.mxu0 0
  %3983 = vmatmul.mubr.bf16.gmra.mrb[0].mxu0 %v3880
  %v3984 = vpop.f32.mrb[0].mxu0
  %v3985 = vadd.f32 0.0, %v3984
  %v3986 = vpop.f32.mrb[0].mxu0
  %v3987 = vpop.f32.mrb[0].mxu0
  %v3988 = vadd.f32 0.0, %v3987
  %v3989 = vpop.f32.mrb[0].mxu0
  %3990 = vmatprep.mubr.bf16.mxu0 0
  %3991 = vmatmul.mubr.bf16.gmra.mrb[0].mxu0 %v3881
  %v3992 = vpop.f32.mrb[0].mxu0
  %v3993 = vadd.f32 0.0, %v3992
  %v3994 = vpop.f32.mrb[0].mxu0
  %v3995 = vpop.f32.mrb[0].mxu0
  %v3996 = vadd.f32 0.0, %v3995
  %v3997 = vpop.f32.mrb[0].mxu0
  %3998 = vmatprep.mubr.bf16.mxu0 0
  %3999 = vmatmul.mubr.bf16.gmra.mrb[0].mxu0 %v3882
  %v4000 = vpop.f32.mrb[0].mxu0
  %v4001 = vadd.f32 0.0, %v4000
  %v4002 = vpop.f32.mrb[0].mxu0
  %v4003 = vpop.f32.mrb[0].mxu0
  %v4004 = vadd.f32 0.0, %v4003
  %v4005 = vpop.f32.mrb[0].mxu0
  %4006 = vmatprep.mubr.bf16.mxu0 0
  %4007 = vmatmul.mubr.bf16.gmra.mrb[0].mxu0 %v3883
  %v4008 = vpop.f32.mrb[0].mxu0
  %v4009 = vadd.f32 0.0, %v4008
  %v4010 = vpop.f32.mrb[0].mxu0
  %v4011 = vpop.f32.mrb[0].mxu0
  %v4012 = vadd.f32 0.0, %v4011
  %v4013 = vpop.f32.mrb[0].mxu0
  %4014 = vmatprep.mubr.bf16.mxu0 0
  %4015 = vmatmul.mubr.bf16.gmra.mrb[0].mxu0 %v3884
  %v4016 = vpop.f32.mrb[0].mxu0
  %v4017 = vadd.f32 0.0, %v4016
  %v4018 = vpop.f32.mrb[0].mxu0
  %v4019 = vpop.f32.mrb[0].mxu0
  %v4020 = vpop.f32.mrb[0].mxu0
  %4021 = vdwg.mxu0
  %v4022 = vadd.f32 %v3871, %v3985
  %v4023 = vadd.f32 %v3872, %v3988
  %v4024 = vadd.f32 %v3873, %v3993
  %v4025 = vadd.f32 %v3874, %v3996
  %v4026 = vadd.f32 %v3875, %v4001
  %v4027 = vadd.f32 %v3876, %v4004
  %v4028 = vadd.f32 %v3877, %v4009
  %v4029 = vadd.f32 %v3878, %v4012
  %v4030 = vadd.f32 %v3879, %v4017
  %v4031 = vpack.c.bf16 %v1777, %v1776
  %v4032 = vpack.c.bf16 %v1779, %v1778
  %v4033 = vpack.c.bf16 %v1781, %v1780
  %v4034 = vpack.c.bf16 %v1783, %v1782
  %v4035 = vpack.c.bf16 %v1784, %v1784
  %s4036 = scalar_lea.vmem %s3, 960
  %v4037 = vld [vmem:[%s4036] sm:$0xf]
  %v4038 = vld [vmem:[%s4036 + $0x4] sm:$0xf]
  %v4039 = vld [vmem:[%s4036 + $0x8] sm:$0xf]
  %v4040 = vld [vmem:[%s4036 + $0xc] sm:$0xf]
  %v4041 = vld [vmem:[%s4036 + $0x10] sm:$0xf]
  %v4042 = vld [vmem:[%s4036 + $0x14] sm:$0xf]
  %v4043 = vld [vmem:[%s4036 + $0x18] sm:$0xf]
  %v4044 = vld [vmem:[%s4036 + $0x1c] sm:$0xf]
  %v4045 = vld [vmem:[%s4036 + $0x20] sm:$0xf]
  %v4046 = vld [vmem:[%s4036 + $0x24] sm:$0xf]
  %v4047 = vld [vmem:[%s4036 + $0x28] sm:$0xf]
  %v4048 = vld [vmem:[%s4036 + $0x2c] sm:$0xf]
  %v4049 = vld [vmem:[%s4036 + $0x30] sm:$0xf]
  %v4050 = vld [vmem:[%s4036 + $0x34] sm:$0xf]
  %v4051 = vld [vmem:[%s4036 + $0x38] sm:$0xf]
  %v4052 = vld [vmem:[%s4036 + $0x3c] sm:$0xf]
  %v4069 = vunpack.c.l.b16 %v4037
  %v4070 = vunpack.c.l.b16 %v4038
  %v4071 = vunpack.c.l.b16 %v4039
  %v4072 = vunpack.c.l.b16 %v4040
  %v4073 = vunpack.c.l.b16 %v4041
  %v4074 = vunpack.c.l.b16 %v4042
  %v4075 = vunpack.c.l.b16 %v4043
  %v4076 = vunpack.c.l.b16 %v4044
  %v4077 = vunpack.c.l.b16 %v4045
  %v4078 = vunpack.c.l.b16 %v4046
  %v4079 = vunpack.c.l.b16 %v4047
  %v4080 = vunpack.c.l.b16 %v4048
  %v4081 = vunpack.c.l.b16 %v4049
  %v4082 = vunpack.c.l.b16 %v4050
  %v4083 = vunpack.c.l.b16 %v4051
  %v4084 = vunpack.c.l.b16 %v4052
  %v4085 = vpack.c.b16 %v4070, %v4069
  %v4086 = vpack.c.b16 %v4072, %v4071
  %v4087 = vpack.c.b16 %v4074, %v4073
  %v4088 = vpack.c.b16 %v4076, %v4075
  %v4089 = vpack.c.b16 %v4078, %v4077
  %v4090 = vpack.c.b16 %v4080, %v4079
  %v4091 = vpack.c.b16 %v4082, %v4081
  %v4092 = vpack.c.b16 %v4084, %v4083
  %4101 = vmatprep.subr.bf16.mxu0 0
  %4102 = vmatpush1.bf16.msra.mxu0 %v4085
  %4103 = vmatprep.subr.bf16.mxu0 0
  %4104 = vmatpush1.bf16.msra.mxu0 %v4086
  %4105 = vmatprep.subr.bf16.mxu0 0
  %4106 = vmatpush1.bf16.msra.mxu0 %v4087
  %4107 = vmatprep.subr.bf16.mxu0 0
  %4108 = vmatpush1.bf16.msra.mxu0 %v4088
  %4109 = vmatprep.subr.bf16.mxu0 0
  %4110 = vmatpush1.bf16.msra.mxu0 %v4089
  %4111 = vmatprep.subr.bf16.mxu0 0
  %4112 = vmatpush1.bf16.msra.mxu0 %v4090
  %4113 = vmatprep.subr.bf16.mxu0 0
  %4114 = vmatpush1.bf16.msra.mxu0 %v4091
  %4115 = vmatprep.subr.bf16.mxu0 0
  %4116 = vmatpush1.bf16.msra.mxu0 %v4092
  %4117 = vmatprep.subr.bf16.mxu0 0
  %4118 = vmatpush1.bf16.msra.mxu0 0
  %4119 = vmatprep.subr.bf16.mxu0 0
  %4120 = vmatpush1.bf16.msra.mxu0 0
  %4121 = vmatprep.subr.bf16.mxu0 0
  %4122 = vmatpush1.bf16.msra.mxu0 0
  %4123 = vmatprep.subr.bf16.mxu0 0
  %4124 = vmatpush1.bf16.msra.mxu0 0
  %4125 = vmatprep.subr.bf16.mxu0 0
  %4126 = vmatpush1.bf16.msra.mxu0 0
  %4127 = vmatprep.subr.bf16.mxu0 0
  %4128 = vmatpush1.bf16.msra.mxu0 0
  %4129 = vmatprep.subr.bf16.mxu0 0
  %4130 = vmatpush1.bf16.msra.mxu0 0
  %4131 = vmatprep.subr.bf16.mxu0 0
  %4132 = vmatpush1.bf16.msra.mxu0 0
  %4133 = vmatprep.mubr.bf16.mxu0 0
  %4134 = vmatmul.mubr.bf16.gmra.mrb[0].mxu0 %v4031
  %v4135 = vpop.f32.mrb[0].mxu0
  %v4136 = vadd.f32 0.0, %v4135
  %v4137 = vpop.f32.mrb[0].mxu0
  %v4138 = vpop.f32.mrb[0].mxu0
  %v4139 = vadd.f32 0.0, %v4138
  %v4140 = vpop.f32.mrb[0].mxu0
  %4141 = vmatprep.mubr.bf16.mxu0 0
  %4142 = vmatmul.mubr.bf16.gmra.mrb[0].mxu0 %v4032
  %v4143 = vpop.f32.mrb[0].mxu0
  %v4144 = vadd.f32 0.0, %v4143
  %v4145 = vpop.f32.mrb[0].mxu0
  %v4146 = vpop.f32.mrb[0].mxu0
  %v4147 = vadd.f32 0.0, %v4146
  %v4148 = vpop.f32.mrb[0].mxu0
  %4149 = vmatprep.mubr.bf16.mxu0 0
  %4150 = vmatmul.mubr.bf16.gmra.mrb[0].mxu0 %v4033
  %v4151 = vpop.f32.mrb[0].mxu0
  %v4152 = vadd.f32 0.0, %v4151
  %v4153 = vpop.f32.mrb[0].mxu0
  %v4154 = vpop.f32.mrb[0].mxu0
  %v4155 = vadd.f32 0.0, %v4154
  %v4156 = vpop.f32.mrb[0].mxu0
  %4157 = vmatprep.mubr.bf16.mxu0 0
  %4158 = vmatmul.mubr.bf16.gmra.mrb[0].mxu0 %v4034
  %v4159 = vpop.f32.mrb[0].mxu0
  %v4160 = vadd.f32 0.0, %v4159
  %v4161 = vpop.f32.mrb[0].mxu0
  %v4162 = vpop.f32.mrb[0].mxu0
  %v4163 = vadd.f32 0.0, %v4162
  %v4164 = vpop.f32.mrb[0].mxu0
  %4165 = vmatprep.mubr.bf16.mxu0 0
  %4166 = vmatmul.mubr.bf16.gmra.mrb[0].mxu0 %v4035
  %v4167 = vpop.f32.mrb[0].mxu0
  %v4168 = vadd.f32 0.0, %v4167
  %v4169 = vpop.f32.mrb[0].mxu0
  %v4170 = vpop.f32.mrb[0].mxu0
  %v4171 = vpop.f32.mrb[0].mxu0
  %4172 = vdwg.mxu0
  %v4173 = vadd.f32 %v4022, %v4136
  %v4174 = vadd.f32 %v4023, %v4139
  %v4175 = vadd.f32 %v4024, %v4144
  %v4176 = vadd.f32 %v4025, %v4147
  %v4177 = vadd.f32 %v4026, %v4152
  %v4178 = vadd.f32 %v4027, %v4155
  %v4179 = vadd.f32 %v4028, %v4160
  %v4180 = vadd.f32 %v4029, %v4163
  %v4181 = vadd.f32 %v4030, %v4168
  %v4182 = vld [vmem:[%s4] sm:$0x1]
  %v4184 = vlaneseq
  %v4185 = vshrl.u32 %v4184, 7
  %v4186 = vsub.s32 0, %v4185
  %v4187 = vrot.slane %v4182, %v4186
  %v4189 = vadd.f32 %v4173, %v4187
  %v4190 = vadd.f32 %v4174, %v4187
  %v4191 = vadd.f32 %v4175, %v4187
  %v4192 = vadd.f32 %v4176, %v4187
  %v4193 = vadd.f32 %v4177, %v4187
  %v4194 = vadd.f32 %v4178, %v4187
  %v4195 = vadd.f32 %v4179, %v4187
  %v4196 = vadd.f32 %v4180, %v4187
  %v4197 = vadd.f32 %v4181, %v4187
  %v4198 = vmax.f32 %v4189, 0.0
  %v4199 = vmax.f32 %v4190, 0.0
  %v4200 = vmax.f32 %v4191, 0.0
  %v4201 = vmax.f32 %v4192, 0.0
  %v4202 = vmax.f32 %v4193, 0.0
  %v4203 = vmax.f32 %v4194, 0.0
  %v4204 = vmax.f32 %v4195, 0.0
  %v4205 = vmax.f32 %v4196, 0.0
  %v4206 = vmax.f32 %v4197, 0.0
  %v4207 = vpack.c.bf16 %v4198, %v4198
  %v4208 = vld [vmem:[%s5] sm:$0xf]
  %v4209 = vld [vmem:[%s5 + $0x4] sm:$0xf]
  %v4210 = vld [vmem:[%s5 + $0x8] sm:$0xf]
  %v4211 = vld [vmem:[%s5 + $0xc] sm:$0xf]
  %v4212 = vld [vmem:[%s5 + $0x10] sm:$0xf]
  %v4213 = vld [vmem:[%s5 + $0x14] sm:$0xf]
  %v4214 = vld [vmem:[%s5 + $0x18] sm:$0xf]
  %v4215 = vld [vmem:[%s5 + $0x1c] sm:$0xf]
  %v4216 = vld [vmem:[%s5 + $0x20] sm:$0xf]
  %v4217 = vld [vmem:[%s5 + $0x24] sm:$0xf]
  %v4218 = vld [vmem:[%s5 + $0x28] sm:$0xf]
  %v4219 = vld [vmem:[%s5 + $0x2c] sm:$0xf]
  %v4220 = vld [vmem:[%s5 + $0x30] sm:$0xf]
  %v4221 = vld [vmem:[%s5 + $0x34] sm:$0xf]
  %v4222 = vld [vmem:[%s5 + $0x38] sm:$0xf]
  %v4223 = vld [vmem:[%s5 + $0x3c] sm:$0xf]
  %v4224 = vpack.c.bf16 %v4199, %v4199
  %s4225 = scalar_lea.vmem %s5, 64
  %v4226 = vld [vmem:[%s4225] sm:$0xf]
  %v4227 = vld [vmem:[%s4225 + $0x4] sm:$0xf]
  %v4228 = vld [vmem:[%s4225 + $0x8] sm:$0xf]
  %v4229 = vld [vmem:[%s4225 + $0xc] sm:$0xf]
  %v4230 = vld [vmem:[%s4225 + $0x10] sm:$0xf]
  %v4231 = vld [vmem:[%s4225 + $0x14] sm:$0xf]
  %v4232 = vld [vmem:[%s4225 + $0x18] sm:$0xf]
  %v4233 = vld [vmem:[%s4225 + $0x1c] sm:$0xf]
  %v4234 = vld [vmem:[%s4225 + $0x20] sm:$0xf]
  %v4235 = vld [vmem:[%s4225 + $0x24] sm:$0xf]
  %v4236 = vld [vmem:[%s4225 + $0x28] sm:$0xf]
  %v4237 = vld [vmem:[%s4225 + $0x2c] sm:$0xf]
  %v4238 = vld [vmem:[%s4225 + $0x30] sm:$0xf]
  %v4239 = vld [vmem:[%s4225 + $0x34] sm:$0xf]
  %v4240 = vld [vmem:[%s4225 + $0x38] sm:$0xf]
  %v4241 = vld [vmem:[%s4225 + $0x3c] sm:$0xf]
  %v4258 = vunpack.c.l.b16 %v4226
  %v4259 = vunpack.c.l.b16 %v4227
  %v4260 = vunpack.c.l.b16 %v4228
  %v4261 = vunpack.c.l.b16 %v4229
  %v4262 = vunpack.c.l.b16 %v4230
  %v4263 = vunpack.c.l.b16 %v4231
  %v4264 = vunpack.c.l.b16 %v4232
  %v4265 = vunpack.c.l.b16 %v4233
  %v4266 = vunpack.c.l.b16 %v4234
  %v4267 = vunpack.c.l.b16 %v4235
  %v4268 = vunpack.c.l.b16 %v4236
  %v4269 = vunpack.c.l.b16 %v4237
  %v4270 = vunpack.c.l.b16 %v4238
  %v4271 = vunpack.c.l.b16 %v4239
  %v4272 = vunpack.c.l.b16 %v4240
  %v4273 = vunpack.c.l.b16 %v4241
  %v4274 = vpack.c.b16 %v4259, %v4258
  %v4275 = vpack.c.b16 %v4261, %v4260
  %v4276 = vpack.c.b16 %v4263, %v4262
  %v4277 = vpack.c.b16 %v4265, %v4264
  %v4278 = vpack.c.b16 %v4267, %v4266
  %v4279 = vpack.c.b16 %v4269, %v4268
  %v4280 = vpack.c.b16 %v4271, %v4270
  %v4281 = vpack.c.b16 %v4273, %v4272
  %4290 = vmatprep.subr.bf16.mxu0 0
  %4291 = vmatpush1.bf16.msra.mxu0 %v4274
  %4292 = vmatprep.subr.bf16.mxu0 0
  %4293 = vmatpush1.bf16.msra.mxu0 %v4275
  %4294 = vmatprep.subr.bf16.mxu0 0
  %4295 = vmatpush1.bf16.msra.mxu0 %v4276
  %4296 = vmatprep.subr.bf16.mxu0 0
  %4297 = vmatpush1.bf16.msra.mxu0 %v4277
  %4298 = vmatprep.subr.bf16.mxu0 0
  %4299 = vmatpush1.bf16.msra.mxu0 %v4278
  %4300 = vmatprep.subr.bf16.mxu0 0
  %4301 = vmatpush1.bf16.msra.mxu0 %v4279
  %4302 = vmatprep.subr.bf16.mxu0 0
  %4303 = vmatpush1.bf16.msra.mxu0 %v4280
  %4304 = vmatprep.subr.bf16.mxu0 0
  %4305 = vmatpush1.bf16.msra.mxu0 %v4281
  %4306 = vmatprep.subr.bf16.mxu0 0
  %4307 = vmatpush1.bf16.msra.mxu0 0
  %4308 = vmatprep.subr.bf16.mxu0 0
  %4309 = vmatpush1.bf16.msra.mxu0 0
  %4310 = vmatprep.subr.bf16.mxu0 0
  %4311 = vmatpush1.bf16.msra.mxu0 0
  %4312 = vmatprep.subr.bf16.mxu0 0
  %4313 = vmatpush1.bf16.msra.mxu0 0
  %4314 = vmatprep.subr.bf16.mxu0 0
  %4315 = vmatpush1.bf16.msra.mxu0 0
  %4316 = vmatprep.subr.bf16.mxu0 0
  %4317 = vmatpush1.bf16.msra.mxu0 0
  %4318 = vmatprep.subr.bf16.mxu0 0
  %4319 = vmatpush1.bf16.msra.mxu0 0
  %4320 = vmatprep.subr.bf16.mxu0 0
  %4321 = vmatpush1.bf16.msra.mxu0 0
  %4322 = vmatprep.mubr.bf16.mxu0 0
  %4323 = vmatmul.mubr.bf16.gmra.mrb[0].mxu0 %v4224
  %v4324 = vpop.f32.mrb[0].mxu0
  %v4325 = vadd.f32 0.0, %v4324
  %v4326 = vpop.f32.mrb[0].mxu0
  %v4327 = vpop.f32.mrb[0].mxu0
  %v4328 = vpop.f32.mrb[0].mxu0
  %4329 = vdwg.mxu0
  %v4346 = vunpack.c.l.b16 %v4208
  %v4347 = vunpack.c.l.b16 %v4209
  %v4348 = vunpack.c.l.b16 %v4210
  %v4349 = vunpack.c.l.b16 %v4211
  %v4350 = vunpack.c.l.b16 %v4212
  %v4351 = vunpack.c.l.b16 %v4213
  %v4352 = vunpack.c.l.b16 %v4214
  %v4353 = vunpack.c.l.b16 %v4215
  %v4354 = vunpack.c.l.b16 %v4216
  %v4355 = vunpack.c.l.b16 %v4217
  %v4356 = vunpack.c.l.b16 %v4218
  %v4357 = vunpack.c.l.b16 %v4219
  %v4358 = vunpack.c.l.b16 %v4220
  %v4359 = vunpack.c.l.b16 %v4221
  %v4360 = vunpack.c.l.b16 %v4222
  %v4361 = vunpack.c.l.b16 %v4223
  %v4362 = vpack.c.b16 %v4347, %v4346
  %v4363 = vpack.c.b16 %v4349, %v4348
  %v4364 = vpack.c.b16 %v4351, %v4350
  %v4365 = vpack.c.b16 %v4353, %v4352
  %v4366 = vpack.c.b16 %v4355, %v4354
  %v4367 = vpack.c.b16 %v4357, %v4356
  %v4368 = vpack.c.b16 %v4359, %v4358
  %v4369 = vpack.c.b16 %v4361, %v4360
  %4378 = vmatprep.subr.bf16.mxu0 0
  %4379 = vmatpush1.bf16.msra.mxu0 %v4362
  %4380 = vmatprep.subr.bf16.mxu0 0
  %4381 = vmatpush1.bf16.msra.mxu0 %v4363
  %4382 = vmatprep.subr.bf16.mxu0 0
  %4383 = vmatpush1.bf16.msra.mxu0 %v4364
  %4384 = vmatprep.subr.bf16.mxu0 0
  %4385 = vmatpush1.bf16.msra.mxu0 %v4365
  %4386 = vmatprep.subr.bf16.mxu0 0
  %4387 = vmatpush1.bf16.msra.mxu0 %v4366
  %4388 = vmatprep.subr.bf16.mxu0 0
  %4389 = vmatpush1.bf16.msra.mxu0 %v4367
  %4390 = vmatprep.subr.bf16.mxu0 0
  %4391 = vmatpush1.bf16.msra.mxu0 %v4368
  %4392 = vmatprep.subr.bf16.mxu0 0
  %4393 = vmatpush1.bf16.msra.mxu0 %v4369
  %4394 = vmatprep.subr.bf16.mxu0 0
  %4395 = vmatpush1.bf16.msra.mxu0 0
  %4396 = vmatprep.subr.bf16.mxu0 0
  %4397 = vmatpush1.bf16.msra.mxu0 0
  %4398 = vmatprep.subr.bf16.mxu0 0
  %4399 = vmatpush1.bf16.msra.mxu0 0
  %4400 = vmatprep.subr.bf16.mxu0 0
  %4401 = vmatpush1.bf16.msra.mxu0 0
  %4402 = vmatprep.subr.bf16.mxu0 0
  %4403 = vmatpush1.bf16.msra.mxu0 0
  %4404 = vmatprep.subr.bf16.mxu0 0
  %4405 = vmatpush1.bf16.msra.mxu0 0
  %4406 = vmatprep.subr.bf16.mxu0 0
  %4407 = vmatpush1.bf16.msra.mxu0 0
  %4408 = vmatprep.subr.bf16.mxu0 0
  %4409 = vmatpush1.bf16.msra.mxu0 0
  %4410 = vmatprep.mubr.bf16.mxu0 0
  %4411 = vmatmul.mubr.bf16.gmra.mrb[0].mxu0 %v4207
  %v4412 = vpop.f32.mrb[0].mxu0
  %v4413 = vadd.f32 %v4325, %v4412
  %v4414 = vpop.f32.mrb[0].mxu0
  %v4415 = vpop.f32.mrb[0].mxu0
  %v4416 = vpop.f32.mrb[0].mxu0
  %4417 = vdwg.mxu0
  %v4418 = vpack.c.bf16 %v4200, %v4200
  %s4419 = scalar_lea.vmem %s5, 128
  %v4420 = vld [vmem:[%s4419] sm:$0xf]
  %v4421 = vld [vmem:[%s4419 + $0x4] sm:$0xf]
  %v4422 = vld [vmem:[%s4419 + $0x8] sm:$0xf]
  %v4423 = vld [vmem:[%s4419 + $0xc] sm:$0xf]
  %v4424 = vld [vmem:[%s4419 + $0x10] sm:$0xf]
  %v4425 = vld [vmem:[%s4419 + $0x14] sm:$0xf]
  %v4426 = vld [vmem:[%s4419 + $0x18] sm:$0xf]
  %v4427 = vld [vmem:[%s4419 + $0x1c] sm:$0xf]
  %v4428 = vld [vmem:[%s4419 + $0x20] sm:$0xf]
  %v4429 = vld [vmem:[%s4419 + $0x24] sm:$0xf]
  %v4430 = vld [vmem:[%s4419 + $0x28] sm:$0xf]
  %v4431 = vld [vmem:[%s4419 + $0x2c] sm:$0xf]
  %v4432 = vld [vmem:[%s4419 + $0x30] sm:$0xf]
  %v4433 = vld [vmem:[%s4419 + $0x34] sm:$0xf]
  %v4434 = vld [vmem:[%s4419 + $0x38] sm:$0xf]
  %v4435 = vld [vmem:[%s4419 + $0x3c] sm:$0xf]
  %v4452 = vunpack.c.l.b16 %v4420
  %v4453 = vunpack.c.l.b16 %v4421
  %v4454 = vunpack.c.l.b16 %v4422
  %v4455 = vunpack.c.l.b16 %v4423
  %v4456 = vunpack.c.l.b16 %v4424
  %v4457 = vunpack.c.l.b16 %v4425
  %v4458 = vunpack.c.l.b16 %v4426
  %v4459 = vunpack.c.l.b16 %v4427
  %v4460 = vunpack.c.l.b16 %v4428
  %v4461 = vunpack.c.l.b16 %v4429
  %v4462 = vunpack.c.l.b16 %v4430
  %v4463 = vunpack.c.l.b16 %v4431
  %v4464 = vunpack.c.l.b16 %v4432
  %v4465 = vunpack.c.l.b16 %v4433
  %v4466 = vunpack.c.l.b16 %v4434
  %v4467 = vunpack.c.l.b16 %v4435
  %v4468 = vpack.c.b16 %v4453, %v4452
  %v4469 = vpack.c.b16 %v4455, %v4454
  %v4470 = vpack.c.b16 %v4457, %v4456
  %v4471 = vpack.c.b16 %v4459, %v4458
  %v4472 = vpack.c.b16 %v4461, %v4460
  %v4473 = vpack.c.b16 %v4463, %v4462
  %v4474 = vpack.c.b16 %v4465, %v4464
  %v4475 = vpack.c.b16 %v4467, %v4466
  %4484 = vmatprep.subr.bf16.mxu0 0
  %4485 = vmatpush1.bf16.msra.mxu0 %v4468
  %4486 = vmatprep.subr.bf16.mxu0 0
  %4487 = vmatpush1.bf16.msra.mxu0 %v4469
  %4488 = vmatprep.subr.bf16.mxu0 0
  %4489 = vmatpush1.bf16.msra.mxu0 %v4470
  %4490 = vmatprep.subr.bf16.mxu0 0
  %4491 = vmatpush1.bf16.msra.mxu0 %v4471
  %4492 = vmatprep.subr.bf16.mxu0 0
  %4493 = vmatpush1.bf16.msra.mxu0 %v4472
  %4494 = vmatprep.subr.bf16.mxu0 0
  %4495 = vmatpush1.bf16.msra.mxu0 %v4473
  %4496 = vmatprep.subr.bf16.mxu0 0
  %4497 = vmatpush1.bf16.msra.mxu0 %v4474
  %4498 = vmatprep.subr.bf16.mxu0 0
  %4499 = vmatpush1.bf16.msra.mxu0 %v4475
  %4500 = vmatprep.subr.bf16.mxu0 0
  %4501 = vmatpush1.bf16.msra.mxu0 0
  %4502 = vmatprep.subr.bf16.mxu0 0
  %4503 = vmatpush1.bf16.msra.mxu0 0
  %4504 = vmatprep.subr.bf16.mxu0 0
  %4505 = vmatpush1.bf16.msra.mxu0 0
  %4506 = vmatprep.subr.bf16.mxu0 0
  %4507 = vmatpush1.bf16.msra.mxu0 0
  %4508 = vmatprep.subr.bf16.mxu0 0
  %4509 = vmatpush1.bf16.msra.mxu0 0
  %4510 = vmatprep.subr.bf16.mxu0 0
  %4511 = vmatpush1.bf16.msra.mxu0 0
  %4512 = vmatprep.subr.bf16.mxu0 0
  %4513 = vmatpush1.bf16.msra.mxu0 0
  %4514 = vmatprep.subr.bf16.mxu0 0
  %4515 = vmatpush1.bf16.msra.mxu0 0
  %4516 = vmatprep.mubr.bf16.mxu0 0
  %4517 = vmatmul.mubr.bf16.gmra.mrb[0].mxu0 %v4418
  %v4518 = vpop.f32.mrb[0].mxu0
  %v4519 = vadd.f32 0.0, %v4518
  %v4520 = vpop.f32.mrb[0].mxu0
  %v4521 = vpop.f32.mrb[0].mxu0
  %v4522 = vpop.f32.mrb[0].mxu0
  %4523 = vdwg.mxu0
  %v4524 = vadd.f32 %v4413, %v4519
  %v4525 = vpack.c.bf16 %v4201, %v4201
  %s4526 = scalar_lea.vmem %s5, 192
  %v4527 = vld [vmem:[%s4526] sm:$0xf]
  %v4528 = vld [vmem:[%s4526 + $0x4] sm:$0xf]
  %v4529 = vld [vmem:[%s4526 + $0x8] sm:$0xf]
  %v4530 = vld [vmem:[%s4526 + $0xc] sm:$0xf]
  %v4531 = vld [vmem:[%s4526 + $0x10] sm:$0xf]
  %v4532 = vld [vmem:[%s4526 + $0x14] sm:$0xf]
  %v4533 = vld [vmem:[%s4526 + $0x18] sm:$0xf]
  %v4534 = vld [vmem:[%s4526 + $0x1c] sm:$0xf]
  %v4535 = vld [vmem:[%s4526 + $0x20] sm:$0xf]
  %v4536 = vld [vmem:[%s4526 + $0x24] sm:$0xf]
  %v4537 = vld [vmem:[%s4526 + $0x28] sm:$0xf]
  %v4538 = vld [vmem:[%s4526 + $0x2c] sm:$0xf]
  %v4539 = vld [vmem:[%s4526 + $0x30] sm:$0xf]
  %v4540 = vld [vmem:[%s4526 + $0x34] sm:$0xf]
  %v4541 = vld [vmem:[%s4526 + $0x38] sm:$0xf]
  %v4542 = vld [vmem:[%s4526 + $0x3c] sm:$0xf]
  %v4559 = vunpack.c.l.b16 %v4527
  %v4560 = vunpack.c.l.b16 %v4528
  %v4561 = vunpack.c.l.b16 %v4529
  %v4562 = vunpack.c.l.b16 %v4530
  %v4563 = vunpack.c.l.b16 %v4531
  %v4564 = vunpack.c.l.b16 %v4532
  %v4565 = vunpack.c.l.b16 %v4533
  %v4566 = vunpack.c.l.b16 %v4534
  %v4567 = vunpack.c.l.b16 %v4535
  %v4568 = vunpack.c.l.b16 %v4536
  %v4569 = vunpack.c.l.b16 %v4537
  %v4570 = vunpack.c.l.b16 %v4538
  %v4571 = vunpack.c.l.b16 %v4539
  %v4572 = vunpack.c.l.b16 %v4540
  %v4573 = vunpack.c.l.b16 %v4541
  %v4574 = vunpack.c.l.b16 %v4542
  %v4575 = vpack.c.b16 %v4560, %v4559
  %v4576 = vpack.c.b16 %v4562, %v4561
  %v4577 = vpack.c.b16 %v4564, %v4563
  %v4578 = vpack.c.b16 %v4566, %v4565
  %v4579 = vpack.c.b16 %v4568, %v4567
  %v4580 = vpack.c.b16 %v4570, %v4569
  %v4581 = vpack.c.b16 %v4572, %v4571
  %v4582 = vpack.c.b16 %v4574, %v4573
  %4591 = vmatprep.subr.bf16.mxu0 0
  %4592 = vmatpush1.bf16.msra.mxu0 %v4575
  %4593 = vmatprep.subr.bf16.mxu0 0
  %4594 = vmatpush1.bf16.msra.mxu0 %v4576
  %4595 = vmatprep.subr.bf16.mxu0 0
  %4596 = vmatpush1.bf16.msra.mxu0 %v4577
  %4597 = vmatprep.subr.bf16.mxu0 0
  %4598 = vmatpush1.bf16.msra.mxu0 %v4578
  %4599 = vmatprep.subr.bf16.mxu0 0
  %4600 = vmatpush1.bf16.msra.mxu0 %v4579
  %4601 = vmatprep.subr.bf16.mxu0 0
  %4602 = vmatpush1.bf16.msra.mxu0 %v4580
  %4603 = vmatprep.subr.bf16.mxu0 0
  %4604 = vmatpush1.bf16.msra.mxu0 %v4581
  %4605 = vmatprep.subr.bf16.mxu0 0
  %4606 = vmatpush1.bf16.msra.mxu0 %v4582
  %4607 = vmatprep.subr.bf16.mxu0 0
  %4608 = vmatpush1.bf16.msra.mxu0 0
  %4609 = vmatprep.subr.bf16.mxu0 0
  %4610 = vmatpush1.bf16.msra.mxu0 0
  %4611 = vmatprep.subr.bf16.mxu0 0
  %4612 = vmatpush1.bf16.msra.mxu0 0
  %4613 = vmatprep.subr.bf16.mxu0 0
  %4614 = vmatpush1.bf16.msra.mxu0 0
  %4615 = vmatprep.subr.bf16.mxu0 0
  %4616 = vmatpush1.bf16.msra.mxu0 0
  %4617 = vmatprep.subr.bf16.mxu0 0
  %4618 = vmatpush1.bf16.msra.mxu0 0
  %4619 = vmatprep.subr.bf16.mxu0 0
  %4620 = vmatpush1.bf16.msra.mxu0 0
  %4621 = vmatprep.subr.bf16.mxu0 0
  %4622 = vmatpush1.bf16.msra.mxu0 0
  %4623 = vmatprep.mubr.bf16.mxu0 0
  %4624 = vmatmul.mubr.bf16.gmra.mrb[0].mxu0 %v4525
  %v4625 = vpop.f32.mrb[0].mxu0
  %v4626 = vadd.f32 0.0, %v4625
  %v4627 = vpop.f32.mrb[0].mxu0
  %v4628 = vpop.f32.mrb[0].mxu0
  %v4629 = vpop.f32.mrb[0].mxu0
  %4630 = vdwg.mxu0
  %v4631 = vadd.f32 %v4524, %v4626
  %v4632 = vpack.c.bf16 %v4202, %v4202
  %s4633 = scalar_lea.vmem %s5, 256
  %v4634 = vld [vmem:[%s4633] sm:$0xf]
  %v4635 = vld [vmem:[%s4633 + $0x4] sm:$0xf]
  %v4636 = vld [vmem:[%s4633 + $0x8] sm:$0xf]
  %v4637 = vld [vmem:[%s4633 + $0xc] sm:$0xf]
  %v4638 = vld [vmem:[%s4633 + $0x10] sm:$0xf]
  %v4639 = vld [vmem:[%s4633 + $0x14] sm:$0xf]
  %v4640 = vld [vmem:[%s4633 + $0x18] sm:$0xf]
  %v4641 = vld [vmem:[%s4633 + $0x1c] sm:$0xf]
  %v4642 = vld [vmem:[%s4633 + $0x20] sm:$0xf]
  %v4643 = vld [vmem:[%s4633 + $0x24] sm:$0xf]
  %v4644 = vld [vmem:[%s4633 + $0x28] sm:$0xf]
  %v4645 = vld [vmem:[%s4633 + $0x2c] sm:$0xf]
  %v4646 = vld [vmem:[%s4633 + $0x30] sm:$0xf]
  %v4647 = vld [vmem:[%s4633 + $0x34] sm:$0xf]
  %v4648 = vld [vmem:[%s4633 + $0x38] sm:$0xf]
  %v4649 = vld [vmem:[%s4633 + $0x3c] sm:$0xf]
  %v4666 = vunpack.c.l.b16 %v4634
  %v4667 = vunpack.c.l.b16 %v4635
  %v4668 = vunpack.c.l.b16 %v4636
  %v4669 = vunpack.c.l.b16 %v4637
  %v4670 = vunpack.c.l.b16 %v4638
  %v4671 = vunpack.c.l.b16 %v4639
  %v4672 = vunpack.c.l.b16 %v4640
  %v4673 = vunpack.c.l.b16 %v4641
  %v4674 = vunpack.c.l.b16 %v4642
  %v4675 = vunpack.c.l.b16 %v4643
  %v4676 = vunpack.c.l.b16 %v4644
  %v4677 = vunpack.c.l.b16 %v4645
  %v4678 = vunpack.c.l.b16 %v4646
  %v4679 = vunpack.c.l.b16 %v4647
  %v4680 = vunpack.c.l.b16 %v4648
  %v4681 = vunpack.c.l.b16 %v4649
  %v4682 = vpack.c.b16 %v4667, %v4666
  %v4683 = vpack.c.b16 %v4669, %v4668
  %v4684 = vpack.c.b16 %v4671, %v4670
  %v4685 = vpack.c.b16 %v4673, %v4672
  %v4686 = vpack.c.b16 %v4675, %v4674
  %v4687 = vpack.c.b16 %v4677, %v4676
  %v4688 = vpack.c.b16 %v4679, %v4678
  %v4689 = vpack.c.b16 %v4681, %v4680
  %4698 = vmatprep.subr.bf16.mxu0 0
  %4699 = vmatpush1.bf16.msra.mxu0 %v4682
  %4700 = vmatprep.subr.bf16.mxu0 0
  %4701 = vmatpush1.bf16.msra.mxu0 %v4683
  %4702 = vmatprep.subr.bf16.mxu0 0
  %4703 = vmatpush1.bf16.msra.mxu0 %v4684
  %4704 = vmatprep.subr.bf16.mxu0 0
  %4705 = vmatpush1.bf16.msra.mxu0 %v4685
  %4706 = vmatprep.subr.bf16.mxu0 0
  %4707 = vmatpush1.bf16.msra.mxu0 %v4686
  %4708 = vmatprep.subr.bf16.mxu0 0
  %4709 = vmatpush1.bf16.msra.mxu0 %v4687
  %4710 = vmatprep.subr.bf16.mxu0 0
  %4711 = vmatpush1.bf16.msra.mxu0 %v4688
  %4712 = vmatprep.subr.bf16.mxu0 0
  %4713 = vmatpush1.bf16.msra.mxu0 %v4689
  %4714 = vmatprep.subr.bf16.mxu0 0
  %4715 = vmatpush1.bf16.msra.mxu0 0
  %4716 = vmatprep.subr.bf16.mxu0 0
  %4717 = vmatpush1.bf16.msra.mxu0 0
  %4718 = vmatprep.subr.bf16.mxu0 0
  %4719 = vmatpush1.bf16.msra.mxu0 0
  %4720 = vmatprep.subr.bf16.mxu0 0
  %4721 = vmatpush1.bf16.msra.mxu0 0
  %4722 = vmatprep.subr.bf16.mxu0 0
  %4723 = vmatpush1.bf16.msra.mxu0 0
  %4724 = vmatprep.subr.bf16.mxu0 0
  %4725 = vmatpush1.bf16.msra.mxu0 0
  %4726 = vmatprep.subr.bf16.mxu0 0
  %4727 = vmatpush1.bf16.msra.mxu0 0
  %4728 = vmatprep.subr.bf16.mxu0 0
  %4729 = vmatpush1.bf16.msra.mxu0 0
  %4730 = vmatprep.mubr.bf16.mxu0 0
  %4731 = vmatmul.mubr.bf16.gmra.mrb[0].mxu0 %v4632
  %v4732 = vpop.f32.mrb[0].mxu0
  %v4733 = vadd.f32 0.0, %v4732
  %v4734 = vpop.f32.mrb[0].mxu0
  %v4735 = vpop.f32.mrb[0].mxu0
  %v4736 = vpop.f32.mrb[0].mxu0
  %4737 = vdwg.mxu0
  %v4738 = vadd.f32 %v4631, %v4733
  %v4739 = vpack.c.bf16 %v4203, %v4203
  %s4740 = scalar_lea.vmem %s5, 320
  %v4741 = vld [vmem:[%s4740] sm:$0xf]
  %v4742 = vld [vmem:[%s4740 + $0x4] sm:$0xf]
  %v4743 = vld [vmem:[%s4740 + $0x8] sm:$0xf]
  %v4744 = vld [vmem:[%s4740 + $0xc] sm:$0xf]
  %v4745 = vld [vmem:[%s4740 + $0x10] sm:$0xf]
  %v4746 = vld [vmem:[%s4740 + $0x14] sm:$0xf]
  %v4747 = vld [vmem:[%s4740 + $0x18] sm:$0xf]
  %v4748 = vld [vmem:[%s4740 + $0x1c] sm:$0xf]
  %v4749 = vld [vmem:[%s4740 + $0x20] sm:$0xf]
  %v4750 = vld [vmem:[%s4740 + $0x24] sm:$0xf]
  %v4751 = vld [vmem:[%s4740 + $0x28] sm:$0xf]
  %v4752 = vld [vmem:[%s4740 + $0x2c] sm:$0xf]
  %v4753 = vld [vmem:[%s4740 + $0x30] sm:$0xf]
  %v4754 = vld [vmem:[%s4740 + $0x34] sm:$0xf]
  %v4755 = vld [vmem:[%s4740 + $0x38] sm:$0xf]
  %v4756 = vld [vmem:[%s4740 + $0x3c] sm:$0xf]
  %v4773 = vunpack.c.l.b16 %v4741
  %v4774 = vunpack.c.l.b16 %v4742
  %v4775 = vunpack.c.l.b16 %v4743
  %v4776 = vunpack.c.l.b16 %v4744
  %v4777 = vunpack.c.l.b16 %v4745
  %v4778 = vunpack.c.l.b16 %v4746
  %v4779 = vunpack.c.l.b16 %v4747
  %v4780 = vunpack.c.l.b16 %v4748
  %v4781 = vunpack.c.l.b16 %v4749
  %v4782 = vunpack.c.l.b16 %v4750
  %v4783 = vunpack.c.l.b16 %v4751
  %v4784 = vunpack.c.l.b16 %v4752
  %v4785 = vunpack.c.l.b16 %v4753
  %v4786 = vunpack.c.l.b16 %v4754
  %v4787 = vunpack.c.l.b16 %v4755
  %v4788 = vunpack.c.l.b16 %v4756
  %v4789 = vpack.c.b16 %v4774, %v4773
  %v4790 = vpack.c.b16 %v4776, %v4775
  %v4791 = vpack.c.b16 %v4778, %v4777
  %v4792 = vpack.c.b16 %v4780, %v4779
  %v4793 = vpack.c.b16 %v4782, %v4781
  %v4794 = vpack.c.b16 %v4784, %v4783
  %v4795 = vpack.c.b16 %v4786, %v4785
  %v4796 = vpack.c.b16 %v4788, %v4787
  %4805 = vmatprep.subr.bf16.mxu0 0
  %4806 = vmatpush1.bf16.msra.mxu0 %v4789
  %4807 = vmatprep.subr.bf16.mxu0 0
  %4808 = vmatpush1.bf16.msra.mxu0 %v4790
  %4809 = vmatprep.subr.bf16.mxu0 0
  %4810 = vmatpush1.bf16.msra.mxu0 %v4791
  %4811 = vmatprep.subr.bf16.mxu0 0
  %4812 = vmatpush1.bf16.msra.mxu0 %v4792
  %4813 = vmatprep.subr.bf16.mxu0 0
  %4814 = vmatpush1.bf16.msra.mxu0 %v4793
  %4815 = vmatprep.subr.bf16.mxu0 0
  %4816 = vmatpush1.bf16.msra.mxu0 %v4794
  %4817 = vmatprep.subr.bf16.mxu0 0
  %4818 = vmatpush1.bf16.msra.mxu0 %v4795
  %4819 = vmatprep.subr.bf16.mxu0 0
  %4820 = vmatpush1.bf16.msra.mxu0 %v4796
  %4821 = vmatprep.subr.bf16.mxu0 0
  %4822 = vmatpush1.bf16.msra.mxu0 0
  %4823 = vmatprep.subr.bf16.mxu0 0
  %4824 = vmatpush1.bf16.msra.mxu0 0
  %4825 = vmatprep.subr.bf16.mxu0 0
  %4826 = vmatpush1.bf16.msra.mxu0 0
  %4827 = vmatprep.subr.bf16.mxu0 0
  %4828 = vmatpush1.bf16.msra.mxu0 0
  %4829 = vmatprep.subr.bf16.mxu0 0
  %4830 = vmatpush1.bf16.msra.mxu0 0
  %4831 = vmatprep.subr.bf16.mxu0 0
  %4832 = vmatpush1.bf16.msra.mxu0 0
  %4833 = vmatprep.subr.bf16.mxu0 0
  %4834 = vmatpush1.bf16.msra.mxu0 0
  %4835 = vmatprep.subr.bf16.mxu0 0
  %4836 = vmatpush1.bf16.msra.mxu0 0
  %4837 = vmatprep.mubr.bf16.mxu0 0
  %4838 = vmatmul.mubr.bf16.gmra.mrb[0].mxu0 %v4739
  %v4839 = vpop.f32.mrb[0].mxu0
  %v4840 = vadd.f32 0.0, %v4839
  %v4841 = vpop.f32.mrb[0].mxu0
  %v4842 = vpop.f32.mrb[0].mxu0
  %v4843 = vpop.f32.mrb[0].mxu0
  %4844 = vdwg.mxu0
  %v4845 = vadd.f32 %v4738, %v4840
  %v4846 = vpack.c.bf16 %v4204, %v4204
  %s4847 = scalar_lea.vmem %s5, 384
  %v4848 = vld [vmem:[%s4847] sm:$0xf]
  %v4849 = vld [vmem:[%s4847 + $0x4] sm:$0xf]
  %v4850 = vld [vmem:[%s4847 + $0x8] sm:$0xf]
  %v4851 = vld [vmem:[%s4847 + $0xc] sm:$0xf]
  %v4852 = vld [vmem:[%s4847 + $0x10] sm:$0xf]
  %v4853 = vld [vmem:[%s4847 + $0x14] sm:$0xf]
  %v4854 = vld [vmem:[%s4847 + $0x18] sm:$0xf]
  %v4855 = vld [vmem:[%s4847 + $0x1c] sm:$0xf]
  %v4856 = vld [vmem:[%s4847 + $0x20] sm:$0xf]
  %v4857 = vld [vmem:[%s4847 + $0x24] sm:$0xf]
  %v4858 = vld [vmem:[%s4847 + $0x28] sm:$0xf]
  %v4859 = vld [vmem:[%s4847 + $0x2c] sm:$0xf]
  %v4860 = vld [vmem:[%s4847 + $0x30] sm:$0xf]
  %v4861 = vld [vmem:[%s4847 + $0x34] sm:$0xf]
  %v4862 = vld [vmem:[%s4847 + $0x38] sm:$0xf]
  %v4863 = vld [vmem:[%s4847 + $0x3c] sm:$0xf]
  %v4880 = vunpack.c.l.b16 %v4848
  %v4881 = vunpack.c.l.b16 %v4849
  %v4882 = vunpack.c.l.b16 %v4850
  %v4883 = vunpack.c.l.b16 %v4851
  %v4884 = vunpack.c.l.b16 %v4852
  %v4885 = vunpack.c.l.b16 %v4853
  %v4886 = vunpack.c.l.b16 %v4854
  %v4887 = vunpack.c.l.b16 %v4855
  %v4888 = vunpack.c.l.b16 %v4856
  %v4889 = vunpack.c.l.b16 %v4857
  %v4890 = vunpack.c.l.b16 %v4858
  %v4891 = vunpack.c.l.b16 %v4859
  %v4892 = vunpack.c.l.b16 %v4860
  %v4893 = vunpack.c.l.b16 %v4861
  %v4894 = vunpack.c.l.b16 %v4862
  %v4895 = vunpack.c.l.b16 %v4863
  %v4896 = vpack.c.b16 %v4881, %v4880
  %v4897 = vpack.c.b16 %v4883, %v4882
  %v4898 = vpack.c.b16 %v4885, %v4884
  %v4899 = vpack.c.b16 %v4887, %v4886
  %v4900 = vpack.c.b16 %v4889, %v4888
  %v4901 = vpack.c.b16 %v4891, %v4890
  %v4902 = vpack.c.b16 %v4893, %v4892
  %v4903 = vpack.c.b16 %v4895, %v4894
  %4912 = vmatprep.subr.bf16.mxu0 0
  %4913 = vmatpush1.bf16.msra.mxu0 %v4896
  %4914 = vmatprep.subr.bf16.mxu0 0
  %4915 = vmatpush1.bf16.msra.mxu0 %v4897
  %4916 = vmatprep.subr.bf16.mxu0 0
  %4917 = vmatpush1.bf16.msra.mxu0 %v4898
  %4918 = vmatprep.subr.bf16.mxu0 0
  %4919 = vmatpush1.bf16.msra.mxu0 %v4899
  %4920 = vmatprep.subr.bf16.mxu0 0
  %4921 = vmatpush1.bf16.msra.mxu0 %v4900
  %4922 = vmatprep.subr.bf16.mxu0 0
  %4923 = vmatpush1.bf16.msra.mxu0 %v4901
  %4924 = vmatprep.subr.bf16.mxu0 0
  %4925 = vmatpush1.bf16.msra.mxu0 %v4902
  %4926 = vmatprep.subr.bf16.mxu0 0
  %4927 = vmatpush1.bf16.msra.mxu0 %v4903
  %4928 = vmatprep.subr.bf16.mxu0 0
  %4929 = vmatpush1.bf16.msra.mxu0 0
  %4930 = vmatprep.subr.bf16.mxu0 0
  %4931 = vmatpush1.bf16.msra.mxu0 0
  %4932 = vmatprep.subr.bf16.mxu0 0
  %4933 = vmatpush1.bf16.msra.mxu0 0
  %4934 = vmatprep.subr.bf16.mxu0 0
  %4935 = vmatpush1.bf16.msra.mxu0 0
  %4936 = vmatprep.subr.bf16.mxu0 0
  %4937 = vmatpush1.bf16.msra.mxu0 0
  %4938 = vmatprep.subr.bf16.mxu0 0
  %4939 = vmatpush1.bf16.msra.mxu0 0
  %4940 = vmatprep.subr.bf16.mxu0 0
  %4941 = vmatpush1.bf16.msra.mxu0 0
  %4942 = vmatprep.subr.bf16.mxu0 0
  %4943 = vmatpush1.bf16.msra.mxu0 0
  %4944 = vmatprep.mubr.bf16.mxu0 0
  %4945 = vmatmul.mubr.bf16.gmra.mrb[0].mxu0 %v4846
  %v4946 = vpop.f32.mrb[0].mxu0
  %v4947 = vadd.f32 0.0, %v4946
  %v4948 = vpop.f32.mrb[0].mxu0
  %v4949 = vpop.f32.mrb[0].mxu0
  %v4950 = vpop.f32.mrb[0].mxu0
  %4951 = vdwg.mxu0
  %v4952 = vadd.f32 %v4845, %v4947
  %v4953 = vpack.c.bf16 %v4205, %v4205
  %s4954 = scalar_lea.vmem %s5, 448
  %v4955 = vld [vmem:[%s4954] sm:$0xf]
  %v4956 = vld [vmem:[%s4954 + $0x4] sm:$0xf]
  %v4957 = vld [vmem:[%s4954 + $0x8] sm:$0xf]
  %v4958 = vld [vmem:[%s4954 + $0xc] sm:$0xf]
  %v4959 = vld [vmem:[%s4954 + $0x10] sm:$0xf]
  %v4960 = vld [vmem:[%s4954 + $0x14] sm:$0xf]
  %v4961 = vld [vmem:[%s4954 + $0x18] sm:$0xf]
  %v4962 = vld [vmem:[%s4954 + $0x1c] sm:$0xf]
  %v4963 = vld [vmem:[%s4954 + $0x20] sm:$0xf]
  %v4964 = vld [vmem:[%s4954 + $0x24] sm:$0xf]
  %v4965 = vld [vmem:[%s4954 + $0x28] sm:$0xf]
  %v4966 = vld [vmem:[%s4954 + $0x2c] sm:$0xf]
  %v4967 = vld [vmem:[%s4954 + $0x30] sm:$0xf]
  %v4968 = vld [vmem:[%s4954 + $0x34] sm:$0xf]
  %v4969 = vld [vmem:[%s4954 + $0x38] sm:$0xf]
  %v4970 = vld [vmem:[%s4954 + $0x3c] sm:$0xf]
  %v4987 = vunpack.c.l.b16 %v4955
  %v4988 = vunpack.c.l.b16 %v4956
  %v4989 = vunpack.c.l.b16 %v4957
  %v4990 = vunpack.c.l.b16 %v4958
  %v4991 = vunpack.c.l.b16 %v4959
  %v4992 = vunpack.c.l.b16 %v4960
  %v4993 = vunpack.c.l.b16 %v4961
  %v4994 = vunpack.c.l.b16 %v4962
  %v4995 = vunpack.c.l.b16 %v4963
  %v4996 = vunpack.c.l.b16 %v4964
  %v4997 = vunpack.c.l.b16 %v4965
  %v4998 = vunpack.c.l.b16 %v4966
  %v4999 = vunpack.c.l.b16 %v4967
  %v5000 = vunpack.c.l.b16 %v4968
  %v5001 = vunpack.c.l.b16 %v4969
  %v5002 = vunpack.c.l.b16 %v4970
  %v5003 = vpack.c.b16 %v4988, %v4987
  %v5004 = vpack.c.b16 %v4990, %v4989
  %v5005 = vpack.c.b16 %v4992, %v4991
  %v5006 = vpack.c.b16 %v4994, %v4993
  %v5007 = vpack.c.b16 %v4996, %v4995
  %v5008 = vpack.c.b16 %v4998, %v4997
  %v5009 = vpack.c.b16 %v5000, %v4999
  %v5010 = vpack.c.b16 %v5002, %v5001
  %5019 = vmatprep.subr.bf16.mxu0 0
  %5020 = vmatpush1.bf16.msra.mxu0 %v5003
  %5021 = vmatprep.subr.bf16.mxu0 0
  %5022 = vmatpush1.bf16.msra.mxu0 %v5004
  %5023 = vmatprep.subr.bf16.mxu0 0
  %5024 = vmatpush1.bf16.msra.mxu0 %v5005
  %5025 = vmatprep.subr.bf16.mxu0 0
  %5026 = vmatpush1.bf16.msra.mxu0 %v5006
  %5027 = vmatprep.subr.bf16.mxu0 0
  %5028 = vmatpush1.bf16.msra.mxu0 %v5007
  %5029 = vmatprep.subr.bf16.mxu0 0
  %5030 = vmatpush1.bf16.msra.mxu0 %v5008
  %5031 = vmatprep.subr.bf16.mxu0 0
  %5032 = vmatpush1.bf16.msra.mxu0 %v5009
  %5033 = vmatprep.subr.bf16.mxu0 0
  %5034 = vmatpush1.bf16.msra.mxu0 %v5010
  %5035 = vmatprep.subr.bf16.mxu0 0
  %5036 = vmatpush1.bf16.msra.mxu0 0
  %5037 = vmatprep.subr.bf16.mxu0 0
  %5038 = vmatpush1.bf16.msra.mxu0 0
  %5039 = vmatprep.subr.bf16.mxu0 0
  %5040 = vmatpush1.bf16.msra.mxu0 0
  %5041 = vmatprep.subr.bf16.mxu0 0
  %5042 = vmatpush1.bf16.msra.mxu0 0
  %5043 = vmatprep.subr.bf16.mxu0 0
  %5044 = vmatpush1.bf16.msra.mxu0 0
  %5045 = vmatprep.subr.bf16.mxu0 0
  %5046 = vmatpush1.bf16.msra.mxu0 0
  %5047 = vmatprep.subr.bf16.mxu0 0
  %5048 = vmatpush1.bf16.msra.mxu0 0
  %5049 = vmatprep.subr.bf16.mxu0 0
  %5050 = vmatpush1.bf16.msra.mxu0 0
  %5051 = vmatprep.mubr.bf16.mxu0 0
  %5052 = vmatmul.mubr.bf16.gmra.mrb[0].mxu0 %v4953
  %v5053 = vpop.f32.mrb[0].mxu0
  %v5054 = vadd.f32 0.0, %v5053
  %v5055 = vpop.f32.mrb[0].mxu0
  %v5056 = vpop.f32.mrb[0].mxu0
  %v5057 = vpop.f32.mrb[0].mxu0
  %5058 = vdwg.mxu0
  %v5059 = vadd.f32 %v4952, %v5054
  %v5060 = vpack.c.bf16 %v4206, %v4206
  %s5061 = scalar_lea.vmem %s5, 512
  %v5062 = vld [vmem:[%s5061] sm:$0xf]
  %v5063 = vld [vmem:[%s5061 + $0x4] sm:$0xf]
  %v5064 = vld [vmem:[%s5061 + $0x8] sm:$0xf]
  %v5065 = vld [vmem:[%s5061 + $0xc] sm:$0xf]
  %v5066 = vld [vmem:[%s5061 + $0x10] sm:$0xf]
  %v5067 = vld [vmem:[%s5061 + $0x14] sm:$0xf]
  %v5068 = vld [vmem:[%s5061 + $0x18] sm:$0xf]
  %v5069 = vld [vmem:[%s5061 + $0x1c] sm:$0xf]
  %v5070 = vld [vmem:[%s5061 + $0x20] sm:$0xf]
  %v5071 = vld [vmem:[%s5061 + $0x24] sm:$0xf]
  %v5072 = vld [vmem:[%s5061 + $0x28] sm:$0xf]
  %v5073 = vld [vmem:[%s5061 + $0x2c] sm:$0xf]
  %v5074 = vld [vmem:[%s5061 + $0x30] sm:$0xf]
  %v5075 = vld [vmem:[%s5061 + $0x34] sm:$0xf]
  %v5076 = vld [vmem:[%s5061 + $0x38] sm:$0xf]
  %v5077 = vld [vmem:[%s5061 + $0x3c] sm:$0xf]
  %v5094 = vunpack.c.l.b16 %v5062
  %v5095 = vunpack.c.l.b16 %v5063
  %v5096 = vunpack.c.l.b16 %v5064
  %v5097 = vunpack.c.l.b16 %v5065
  %v5098 = vunpack.c.l.b16 %v5066
  %v5099 = vunpack.c.l.b16 %v5067
  %v5100 = vunpack.c.l.b16 %v5068
  %v5101 = vunpack.c.l.b16 %v5069
  %v5102 = vunpack.c.l.b16 %v5070
  %v5103 = vunpack.c.l.b16 %v5071
  %v5104 = vunpack.c.l.b16 %v5072
  %v5105 = vunpack.c.l.b16 %v5073
  %v5106 = vunpack.c.l.b16 %v5074
  %v5107 = vunpack.c.l.b16 %v5075
  %v5108 = vunpack.c.l.b16 %v5076
  %v5109 = vunpack.c.l.b16 %v5077
  %v5110 = vpack.c.b16 %v5095, %v5094
  %v5111 = vpack.c.b16 %v5097, %v5096
  %v5112 = vpack.c.b16 %v5099, %v5098
  %v5113 = vpack.c.b16 %v5101, %v5100
  %v5114 = vpack.c.b16 %v5103, %v5102
  %v5115 = vpack.c.b16 %v5105, %v5104
  %v5116 = vpack.c.b16 %v5107, %v5106
  %v5117 = vpack.c.b16 %v5109, %v5108
  %5126 = vmatprep.subr.bf16.mxu0 0
  %5127 = vmatpush1.bf16.msra.mxu0 %v5110
  %5128 = vmatprep.subr.bf16.mxu0 0
  %5129 = vmatpush1.bf16.msra.mxu0 %v5111
  %5130 = vmatprep.subr.bf16.mxu0 0
  %5131 = vmatpush1.bf16.msra.mxu0 %v5112
  %5132 = vmatprep.subr.bf16.mxu0 0
  %5133 = vmatpush1.bf16.msra.mxu0 %v5113
  %5134 = vmatprep.subr.bf16.mxu0 0
  %5135 = vmatpush1.bf16.msra.mxu0 %v5114
  %5136 = vmatprep.subr.bf16.mxu0 0
  %5137 = vmatpush1.bf16.msra.mxu0 %v5115
  %5138 = vmatprep.subr.bf16.mxu0 0
  %5139 = vmatpush1.bf16.msra.mxu0 %v5116
  %5140 = vmatprep.subr.bf16.mxu0 0
  %5141 = vmatpush1.bf16.msra.mxu0 %v5117
  %5142 = vmatprep.subr.bf16.mxu0 0
  %5143 = vmatpush1.bf16.msra.mxu0 0
  %5144 = vmatprep.subr.bf16.mxu0 0
  %5145 = vmatpush1.bf16.msra.mxu0 0
  %5146 = vmatprep.subr.bf16.mxu0 0
  %5147 = vmatpush1.bf16.msra.mxu0 0
  %5148 = vmatprep.subr.bf16.mxu0 0
  %5149 = vmatpush1.bf16.msra.mxu0 0
  %5150 = vmatprep.subr.bf16.mxu0 0
  %5151 = vmatpush1.bf16.msra.mxu0 0
  %5152 = vmatprep.subr.bf16.mxu0 0
  %5153 = vmatpush1.bf16.msra.mxu0 0
  %5154 = vmatprep.subr.bf16.mxu0 0
  %5155 = vmatpush1.bf16.msra.mxu0 0
  %5156 = vmatprep.subr.bf16.mxu0 0
  %5157 = vmatpush1.bf16.msra.mxu0 0
  %5158 = vmatprep.mubr.bf16.mxu0 0
  %5159 = vmatmul.mubr.bf16.gmra.mrb[0].mxu0 %v5060
  %v5160 = vpop.f32.mrb[0].mxu0
  %v5161 = vadd.f32 0.0, %v5160
  %v5162 = vpop.f32.mrb[0].mxu0
  %v5163 = vpop.f32.mrb[0].mxu0
  %v5164 = vpop.f32.mrb[0].mxu0
  %5165 = vdwg.mxu0
  %v5166 = vadd.f32 %v5059, %v5161
  %v5167 = vld [vmem:[%s6] sm:$0x1]
  %v5169 = vlaneseq
  %v5170 = vshrl.u32 %v5169, 7
  %v5171 = vsub.s32 0, %v5170
  %v5172 = vrot.slane %v5167, %v5171
  %v5174 = vadd.f32 %v5166, %v5172
  %v5175 = vmax.f32 %v5174, 0.0
  %v5176 = vpack.c.bf16 %v5175, %v5175
  %v5177 = vld [vmem:[%s7] sm:$0xf]
  %v5178 = vld [vmem:[%s7 + $0x4] sm:$0xf]
  %v5179 = vld [vmem:[%s7 + $0x8] sm:$0xf]
  %v5180 = vld [vmem:[%s7 + $0xc] sm:$0xf]
  %v5181 = vld [vmem:[%s7 + $0x10] sm:$0xf]
  %v5182 = vld [vmem:[%s7 + $0x14] sm:$0xf]
  %v5183 = vld [vmem:[%s7 + $0x18] sm:$0xf]
  %v5184 = vld [vmem:[%s7 + $0x1c] sm:$0xf]
  %v5185 = vld [vmem:[%s7 + $0x20] sm:$0xf]
  %v5186 = vld [vmem:[%s7 + $0x24] sm:$0xf]
  %v5187 = vld [vmem:[%s7 + $0x28] sm:$0xf]
  %v5188 = vld [vmem:[%s7 + $0x2c] sm:$0xf]
  %v5189 = vld [vmem:[%s7 + $0x30] sm:$0xf]
  %v5190 = vld [vmem:[%s7 + $0x34] sm:$0xf]
  %v5191 = vld [vmem:[%s7 + $0x38] sm:$0xf]
  %v5192 = vld [vmem:[%s7 + $0x3c] sm:$0xf]
  %v5193 = vld [vmem:[%s8] sm:$0x1]
  %v5195 = vlaneseq
  %v5196 = vshrl.u32 %v5195, 7
  %v5197 = vsub.s32 0, %v5196
  %v5198 = vrot.slane %v5193, %v5197
  %v5216 = vunpack.c.l.b16 %v5177
  %v5217 = vunpack.c.l.b16 %v5178
  %v5218 = vunpack.c.l.b16 %v5179
  %v5219 = vunpack.c.l.b16 %v5180
  %v5220 = vunpack.c.l.b16 %v5181
  %v5221 = vunpack.c.l.b16 %v5182
  %v5222 = vunpack.c.l.b16 %v5183
  %v5223 = vunpack.c.l.b16 %v5184
  %v5224 = vunpack.c.l.b16 %v5185
  %v5225 = vunpack.c.l.b16 %v5186
  %v5226 = vunpack.c.l.b16 %v5187
  %v5227 = vunpack.c.l.b16 %v5188
  %v5228 = vunpack.c.l.b16 %v5189
  %v5229 = vunpack.c.l.b16 %v5190
  %v5230 = vunpack.c.l.b16 %v5191
  %v5231 = vunpack.c.l.b16 %v5192
  %v5232 = vpack.c.b16 %v5217, %v5216
  %v5233 = vpack.c.b16 %v5219, %v5218
  %v5234 = vpack.c.b16 %v5221, %v5220
  %v5235 = vpack.c.b16 %v5223, %v5222
  %v5236 = vpack.c.b16 %v5225, %v5224
  %v5237 = vpack.c.b16 %v5227, %v5226
  %v5238 = vpack.c.b16 %v5229, %v5228
  %v5239 = vpack.c.b16 %v5231, %v5230
  %5248 = vmatprep.subr.bf16.mxu0 0
  %5249 = vmatpush1.bf16.msra.mxu0 %v5232
  %5250 = vmatprep.subr.bf16.mxu0 0
  %5251 = vmatpush1.bf16.msra.mxu0 %v5233
  %5252 = vmatprep.subr.bf16.mxu0 0
  %5253 = vmatpush1.bf16.msra.mxu0 %v5234
  %5254 = vmatprep.subr.bf16.mxu0 0
  %5255 = vmatpush1.bf16.msra.mxu0 %v5235
  %5256 = vmatprep.subr.bf16.mxu0 0
  %5257 = vmatpush1.bf16.msra.mxu0 %v5236
  %5258 = vmatprep.subr.bf16.mxu0 0
  %5259 = vmatpush1.bf16.msra.mxu0 %v5237
  %5260 = vmatprep.subr.bf16.mxu0 0
  %5261 = vmatpush1.bf16.msra.mxu0 %v5238
  %5262 = vmatprep.subr.bf16.mxu0 0
  %5263 = vmatpush1.bf16.msra.mxu0 %v5239
  %5264 = vmatprep.subr.bf16.mxu0 0
  %5265 = vmatpush1.bf16.msra.mxu0 0
  %5266 = vmatprep.subr.bf16.mxu0 0
  %5267 = vmatpush1.bf16.msra.mxu0 0
  %5268 = vmatprep.subr.bf16.mxu0 0
  %5269 = vmatpush1.bf16.msra.mxu0 0
  %5270 = vmatprep.subr.bf16.mxu0 0
  %5271 = vmatpush1.bf16.msra.mxu0 0
  %5272 = vmatprep.subr.bf16.mxu0 0
  %5273 = vmatpush1.bf16.msra.mxu0 0
  %5274 = vmatprep.subr.bf16.mxu0 0
  %5275 = vmatpush1.bf16.msra.mxu0 0
  %5276 = vmatprep.subr.bf16.mxu0 0
  %5277 = vmatpush1.bf16.msra.mxu0 0
  %5278 = vmatprep.subr.bf16.mxu0 0
  %5279 = vmatpush1.bf16.msra.mxu0 0
  %5280 = vmatprep.mubr.bf16.mxu0 0
  %5281 = vmatmul.mubr.bf16.gmra.mrb[0].mxu0 %v5176
  %v5282 = vpop.f32.mrb[0].mxu0
  %v5283 = vadd.f32 %v5198, %v5282
  %v5284 = vpop.f32.mrb[0].mxu0
  %v5285 = vpop.f32.mrb[0].mxu0
  %v5286 = vpop.f32.mrb[0].mxu0
  %5287 = vdwg.mxu0
  %5288 = vst [vmem:[%s9] sm:$0xff] %v5283
  // Predicated region
  $region38: #{dqn_forward.1} parent=0 // pred_check
    _
  $region39: #{dqn_forward.1} parent=0 // pred_check_branch
    %5290 = sbr.rel (0) target = $region41
  $region40: #{dqn_forward.1} parent=0 // pred_region
    _
  $region41: #{dqn_forward.1} parent=0 // pred_fallthru
    _
  // Predicated region
  $region42: #{dqn_forward.1} parent=0 // pred_check
    _
  $region43: #{dqn_forward.1} parent=0 // pred_check_branch
    %5292 = sbr.rel (0) target = $region45
  $region44: #{dqn_forward.1} parent=0 // pred_region
    _
  $region45: #{dqn_forward.1} parent=0 // pred_fallthru
    _

</llo_original>
